<compile_context>
chip_gen: v7x
topology: tpu7x:2x2x1
jax: 0.10.0
libtpu: 0.0.40
codegen_flags: <defaults>
</compile_context>

<pallas_src>
import math
import numpy as np
import jax
import jax.numpy as jnp
from jax.experimental import pallas as pl
from jax.experimental.pallas import tpu as pltpu

# ----------------------------- small config ---------------------------------
DIM = 32
N_LAYERS = 2
N_HEADS = 4
N_KV_HEADS = 2
VOCAB = 64
MULTIPLE_OF = 32
NORM_EPS = 1e-5
BATCH = 2
SEQ = 8

HEAD_DIM = DIM // N_HEADS            # 8
N_REP = N_HEADS // N_KV_HEADS        # 2
KV_DIM = N_KV_HEADS * HEAD_DIM       # 16
_hidden = int(2 * (4 * DIM) / 3)
HIDDEN = MULTIPLE_OF * ((_hidden + MULTIPLE_OF - 1) // MULTIPLE_OF)   # 96

QW = N_HEADS * HEAD_DIM              # 32  (q / q_rot column width)
KW = N_KV_HEADS * HEAD_DIM           # 16  (k / k_rot / v column width)
QKV_W = 2 * QW + 3 * KW              # 112 packed-QKV lane width
ROPE_W = 2 * (QW + KW)               # 96  packed cos/sin lane width
ROWS = BATCH * SEQ                   # 16  flattened (batch, seq) rows


# ----------------------------- kernel helpers --------------------------------
def _rmsnorm(x, w, eps=NORM_EPS):
    # x: (N, D), w: (1, D)
    ms = jnp.mean(x * x, axis=-1, keepdims=True)
    return x * jax.lax.rsqrt(ms + eps) * w


# --------------------- single fused transformer kernel -----------------------
def transformer_kernel(x_ref, norms_ref, wqkv_ref, wo_ref, w13_ref, w2_ref,
                       rope_ref, final_nw_ref, wout_ref, tgt_ref,
                       layer_out_ref, logits_ref, loss_ref):
    S, hd, H = SEQ, HEAD_DIM, N_HEADS

    x = x_ref[...]                                            # (ROWS, D)
    an_w = norms_ref[0:1, :]                                  # (1, D) attention_norm
    fn_w = norms_ref[1:2, :]                                  # (1, D) ffn_norm

    # ---------------- attention ----------------
    xn = _rmsnorm(x, an_w)                                    # (ROWS, D)
    # One lane-dense matmul: [q | q_rot | k | k_rot | v], scale folded into q.
    qkv = jnp.dot(xn, wqkv_ref[...],
                  preferred_element_type=jnp.float32)         # (ROWS, 112)
    rope = rope_ref[...]                                      # (ROWS, 96)

    # RoPE: x*cos + rotate_pairs(x)*sin; the pair rotation is baked into the
    # *_rot weight columns, so this is pure lane-dense VPU work.
    q = qkv[:, :QW] * rope[:, :QW] + qkv[:, QW:2 * QW] * rope[:, QW:2 * QW]
    k = (qkv[:, 2 * QW:2 * QW + KW] * rope[:, 2 * QW:2 * QW + KW]
         + qkv[:, 2 * QW + KW:2 * QW + 2 * KW] * rope[:, 2 * QW + KW:2 * QW + 2 * KW])
    v = qkv[:, 2 * QW + 2 * KW:]                              # (ROWS, KW)

    # Per-(batch, head) tiles for the scores / PV batched einsums.  repeat_kv is
    # realized by indexing the KV head slice (h // N_REP) — no duplicated matmul.
    q_h = jnp.stack([q[b * S:(b + 1) * S, h * hd:(h + 1) * hd]
                     for b in range(BATCH) for h in range(H)], axis=0)       # (B*H,S,hd)
    k_h = jnp.stack([k[b * S:(b + 1) * S, (h // N_REP) * hd:((h // N_REP) + 1) * hd]
                     for b in range(BATCH) for h in range(H)], axis=0)
    v_h = jnp.stack([v[b * S:(b + 1) * S, (h // N_REP) * hd:((h // N_REP) + 1) * hd]
                     for b in range(BATCH) for h in range(H)], axis=0)

    scores = jnp.einsum('nsd,ntd->nst', q_h, k_h,
                        preferred_element_type=jnp.float32)   # (B*H, S, S)
    m = jnp.max(scores, axis=-1, keepdims=True)
    e = jnp.exp(scores - m)
    probs = e * pl.reciprocal(jnp.sum(e, axis=-1, keepdims=True), approx=True)
    ctx = jnp.einsum('nst,ntd->nsd', probs, v_h,
                     preferred_element_type=jnp.float32)      # (B*H, S, hd)

    # Re-assemble contexts as (ROWS, H*hd) and do ONE output-projection matmul.
    ctx2d = jnp.concatenate(
        [jnp.concatenate([ctx[b * H + h] for h in range(H)], axis=-1)
         for b in range(BATCH)], axis=0)                      # (ROWS, H*hd)
    h1 = x + jnp.dot(ctx2d, wo_ref[...],
                     preferred_element_type=jnp.float32)      # (ROWS, D)

    # ---------------- SwiGLU FFN ----------------
    h1n = _rmsnorm(h1, fn_w)
    gu = jnp.dot(h1n, w13_ref[...],
                 preferred_element_type=jnp.float32)          # (ROWS, 2*HIDDEN)
    g, u = gu[:, :HIDDEN], gu[:, HIDDEN:]
    ffn = jnp.dot(g * jax.nn.sigmoid(g) * u, w2_ref[...],
                  preferred_element_type=jnp.float32)         # (ROWS, D)
    layer_out_ref[...] = h1 + ffn                             # one dense block store

    # -------- fused final norm + lm-head + cross-entropy --------
    # Faithful to the reference: layers return their input, so logits come from
    # the raw embeddings `x`.  Each grid program writes its OWN (l, ...) block so
    # this stays race-free under "parallel" (trivial duplicated compute).
    hn = _rmsnorm(x, final_nw_ref[...])
    logits = jnp.dot(hn, wout_ref[...],
                     preferred_element_type=jnp.float32)      # (ROWS, V)
    logits_ref[...] = logits

    m2 = jnp.max(logits, axis=-1, keepdims=True)
    lse = jnp.log(jnp.sum(jnp.exp(logits - m2), axis=-1, keepdims=True)) + m2
    vidx = jax.lax.broadcasted_iota(jnp.int32, logits.shape, 1)
    tgt = tgt_ref[...]                                        # (ROWS, 1) int32
    tgt_logit = jnp.sum(jnp.where(vidx == tgt, logits, 0.0), axis=-1, keepdims=True)
    per_example = lse - tgt_logit                             # (ROWS, 1)
    loss_ref[...] = jnp.sum(per_example, axis=0, keepdims=True) * (1.0 / logits.shape[0])


def fused_transformer(h2d, packed, rope, norm_w, wout, tgt2d):
    L = packed["wqkv"].shape[0]
    N, D = h2d.shape
    V = wout.shape[1]
    return pl.pallas_call(
        transformer_kernel,
        out_shape=(jax.ShapeDtypeStruct((L, N, D), jnp.float32),   # per-layer block outs
                   jax.ShapeDtypeStruct((L, N, V), jnp.float32),   # logits (per program)
                   jax.ShapeDtypeStruct((L, 1, 1), jnp.float32)),  # loss   (per program)
        grid_spec=pltpu.PrefetchScalarGridSpec(
            num_scalar_prefetch=0,
            grid=(L,),
            in_specs=[
                pl.BlockSpec((N, D), lambda l: (0, 0)),                         # x (shared)
                pl.BlockSpec((None, 2, D), lambda l: (l, 0, 0)),                # attn/ffn norms
                pl.BlockSpec((None, D, QKV_W), lambda l: (l, 0, 0)),            # packed QKV(+rot)
                pl.BlockSpec((None, D, D), lambda l: (l, 0, 0)),                # wo (H*hd, D)
                pl.BlockSpec((None, D, 2 * HIDDEN), lambda l: (l, 0, 0)),       # w1|w3
                pl.BlockSpec((None, HIDDEN, D), lambda l: (l, 0, 0)),           # w2
                pl.BlockSpec((N, ROPE_W), lambda l: (0, 0)),                    # cos/sin (shared)
                pl.BlockSpec((1, D), lambda l: (0, 0)),                         # final norm w
                pl.BlockSpec((D, V), lambda l: (0, 0)),                         # output proj
                pl.BlockSpec((N, 1), lambda l: (0, 0)),                         # targets
            ],
            out_specs=(pl.BlockSpec((None, N, D), lambda l: (l, 0, 0)),
                       pl.BlockSpec((None, N, V), lambda l: (l, 0, 0)),
                       pl.BlockSpec((None, 1, 1), lambda l: (l, 0, 0))),
        ),
        compiler_params=pltpu.CompilerParams(dimension_semantics=("parallel",)),
    )(h2d, packed["norms"], packed["wqkv"], packed["wo"], packed["w13"],
      packed["w2"], rope, norm_w, wout, tgt2d)


# ----------------------------- host-side packing ------------------------------
def _rot_cols(w):
    # (x @ _rot_cols(W)) == adjacent-pair-rotate(x @ W):
    #   col 2i -> -col(2i+1), col 2i+1 -> col(2i)
    wp = w.reshape(w.shape[0], -1, 2)
    return jnp.stack([-wp[..., 1], wp[..., 0]], axis=-1).reshape(w.shape)


def pack_layer_params(params):
    """Stack per-layer weights with a leading layer dim, lane-dense layouts."""
    scale = 1.0 / math.sqrt(HEAD_DIM)                 # folded into q / q_rot columns
    wqkv_l, wo_l, w13_l, w2_l, norms_l = [], [], [], [], []
    for lp in params["layers"]:
        q = lp["wq"] * scale                          # (D, H*hd)
        qr = _rot_cols(q)
        k = lp["wk"]                                  # (D, KV*hd)  (no repeat_kv baked)
        kr = _rot_cols(k)
        v = lp["wv"]                                  # (D, KV*hd)
        wqkv_l.append(jnp.concatenate([q, qr, k, kr, v], axis=1))     # (D, 112)
        wo_l.append(lp["wo"])                                         # (H*hd, D)
        w13_l.append(jnp.concatenate([lp["w1"], lp["w3"]], axis=1))   # (D, 2*HIDDEN)
        w2_l.append(lp["w2"])                                         # (HIDDEN, D)
        norms_l.append(jnp.stack([lp["attn_norm_w"][0], lp["ffn_norm_w"][0]], axis=0))
    return {"wqkv": jnp.stack(wqkv_l), "wo": jnp.stack(wo_l), "w13": jnp.stack(w13_l),
            "w2": jnp.stack(w2_l), "norms": jnp.stack(norms_l)}


def rope_table(start_pos, seq_len):
    # matches precompute_theta_pos_frequencies (+ [start_pos:start_pos+seq_len]),
    # adjacent-pair (view_as_complex) convention; pre-tiled to (B*S, ROPE_W)
    # so the kernel does NO broadcasting of the cos/sin tables.
    inv = 1.0 / (10000.0 ** (np.arange(0, HEAD_DIM, 2, dtype=np.float32) / HEAD_DIM))
    m = np.arange(start_pos, start_pos + seq_len, dtype=np.float32)
    freqs = np.outer(m, inv)                                   # (S, hd/2)
    cos = np.repeat(np.cos(freqs), 2, axis=-1)                 # (S, hd) paired layout
    sin = np.repeat(np.sin(freqs), 2, axis=-1)
    cos_q, sin_q = np.tile(cos, (1, N_HEADS)), np.tile(sin, (1, N_HEADS))         # (S, 32)
    cos_k, sin_k = np.tile(cos, (1, N_KV_HEADS)), np.tile(sin, (1, N_KV_HEADS))   # (S, 16)
    packed = np.concatenate([cos_q, sin_q, cos_k, sin_k], axis=1)                 # (S, 96)
    return jnp.asarray(np.tile(packed, (BATCH, 1)))            # (B*S, 96)


def init_params(key):
    keys = iter(jax.random.split(key, 4 + 8 * N_LAYERS))

    def nrm(shape, scale=0.02):
        return scale * jax.random.normal(next(keys), shape, dtype=jnp.float32)

    params = {
        "embedding": nrm((VOCAB, DIM)),
        "norm_w": jnp.ones((1, DIM), jnp.float32),
        "output": nrm((DIM, VOCAB)),          # stored as W.T (in, out)
        "layers": [],
    }
    for _ in range(N_LAYERS):
        params["layers"].append({
            "attn_norm_w": jnp.ones((1, DIM), jnp.float32),
            "wq": nrm((DIM, DIM)),
            "wk": nrm((DIM, KV_DIM)),
            "wv": nrm((DIM, KV_DIM)),
            "wo": nrm((DIM, DIM)),
            "ffn_norm_w": jnp.ones((1, DIM), jnp.float32),
            "w1": nrm((DIM, HIDDEN)),
            "w2": nrm((HIDDEN, DIM)),
            "w3": nrm((DIM, HIDDEN)),
        })
    return params


def transformer_forward(params, packed, tokens, target, start_pos=0, mode="train"):
    B, S = tokens.shape
    h = params["embedding"][tokens]                            # token embedding (gather, glue)
    rope = rope_table(start_pos, S)
    tgt = target if target is not None else jnp.zeros((B, S), jnp.int32)
    # TODO(synk): KV-cache in-place update only matters when mode != 'train'; not exercised here.

    layer_outs, logits_l, loss_l = fused_transformer(
        h.reshape(B * S, DIM), packed, rope,
        params["norm_w"], params["output"],
        tgt.reshape(B * S, 1).astype(jnp.int32))

    logits = logits_l[0].reshape(B, S, VOCAB)
    loss = loss_l[0, 0, 0] if target is not None else None
    block_outs = layer_outs.reshape(N_LAYERS, B, S, DIM)       # aux (faithfully unused)
    return logits, loss, block_outs


# ----------------------------- main -------------------------------------------
if __name__ == "__main__":
    key = jax.random.PRNGKey(0)
    pkey, tkey, ykey = jax.random.split(key, 3)
    params = init_params(pkey)
    packed = pack_layer_params(params)

    tokens = jax.random.randint(tkey, (BATCH, SEQ), 0, VOCAB, dtype=jnp.int32)
    target = jax.random.randint(ykey, (BATCH, SEQ), 0, VOCAB, dtype=jnp.int32)

    logits, loss, block_outs = transformer_forward(params, packed, tokens, target,
                                                   start_pos=0, mode="train")
    jax.block_until_ready((logits, loss, block_outs))

    assert logits.shape == (BATCH, SEQ, VOCAB)
    assert logits.dtype == jnp.float32
    assert block_outs.shape == (N_LAYERS, BATCH, SEQ, DIM)
    assert bool(jnp.isfinite(loss))
    print("KERNEL_OK")
</pallas_src>

<mosaic_0001>
module attributes {stable_mosaic.version = 11 : i64} {
  func.func @transformer_kernel(%arg0: i32, %arg1: memref<16x32xf32, #tpu.memory_space<vmem>>, %arg2: memref<1x2x32xf32, #tpu.memory_space<vmem>>, %arg3: memref<1x32x112xf32, #tpu.memory_space<vmem>>, %arg4: memref<1x32x32xf32, #tpu.memory_space<vmem>>, %arg5: memref<1x32x192xf32, #tpu.memory_space<vmem>>, %arg6: memref<1x96x32xf32, #tpu.memory_space<vmem>>, %arg7: memref<16x96xf32, #tpu.memory_space<vmem>>, %arg8: memref<1x32xf32, #tpu.memory_space<vmem>>, %arg9: memref<32x64xf32, #tpu.memory_space<vmem>>, %arg10: memref<16x1xi32, #tpu.memory_space<vmem>>, %arg11: memref<1x16x32xf32, #tpu.memory_space<vmem>>, %arg12: memref<1x16x64xf32, #tpu.memory_space<vmem>>, %arg13: memref<1x1x1xf32, #tpu.memory_space<vmem>>) attributes {dimension_semantics = [#tpu.dimension_semantics<parallel>], iteration_bounds = array<i64: 2>, scalar_prefetch = 0 : i64, scratch_operands = 0 : i64, tpu.core_type = #tpu.core_type<tc>, window_params = [{pipeline_mode = #tpu.pipeline_mode<synchronous>, transform_indices = @transform_0, window_bounds = array<i64: 16, 32>}, {transform_indices = @transform_1, window_bounds = array<i64: 1, 2, 32>}, {transform_indices = @transform_2, window_bounds = array<i64: 1, 32, 112>}, {transform_indices = @transform_3, window_bounds = array<i64: 1, 32, 32>}, {transform_indices = @transform_4, window_bounds = array<i64: 1, 32, 192>}, {transform_indices = @transform_5, window_bounds = array<i64: 1, 96, 32>}, {pipeline_mode = #tpu.pipeline_mode<synchronous>, transform_indices = @transform_6, window_bounds = array<i64: 16, 96>}, {pipeline_mode = #tpu.pipeline_mode<synchronous>, transform_indices = @transform_7, window_bounds = array<i64: 1, 32>}, {pipeline_mode = #tpu.pipeline_mode<synchronous>, transform_indices = @transform_8, window_bounds = array<i64: 32, 64>}, {pipeline_mode = #tpu.pipeline_mode<synchronous>, transform_indices = @transform_9, window_bounds = array<i64: 16, 1>}, {transform_indices = @transform_10, window_bounds = array<i64: 1, 16, 32>}, {transform_indices = @transform_11, window_bounds = array<i64: 1, 16, 64>}, {transform_indices = @transform_12, window_bounds = array<i64: 1, 1, 1>}]} {
    %c0 = arith.constant 0 : index
    %c0_0 = arith.constant 0 : index
    %0 = vector.load %arg1[%c0, %c0_0] : memref<16x32xf32, #tpu.memory_space<vmem>>, vector<16x32xf32>
    %c0_1 = arith.constant 0 : index
    %c0_2 = arith.constant 0 : index
    %c0_3 = arith.constant 0 : index
    %1 = vector.load %arg2[%c0_1, %c0_2, %c0_3] : memref<1x2x32xf32, #tpu.memory_space<vmem>>, vector<1x1x32xf32>
    %2 = vector.shape_cast %1 : vector<1x1x32xf32> to vector<1x32xf32>
    %c0_4 = arith.constant 0 : index
    %c1 = arith.constant 1 : index
    %c0_5 = arith.constant 0 : index
    %3 = vector.load %arg2[%c0_4, %c1, %c0_5] : memref<1x2x32xf32, #tpu.memory_space<vmem>>, vector<1x1x32xf32>
    %4 = vector.shape_cast %3 : vector<1x1x32xf32> to vector<1x32xf32>
    %5 = arith.mulf %0, %0 : vector<16x32xf32>
    %cst = arith.constant dense<0.000000e+00> : vector<16xf32>
    %6 = vector.multi_reduction <add>, %5, %cst [1] : vector<16x32xf32> to vector<16xf32>
    %7 = vector.shape_cast %6 : vector<16xf32> to vector<16x1xf32>
    %cst_6 = arith.constant 3.200000e+01 : f32
    %8 = vector.broadcast %cst_6 : f32 to vector<16x1xf32>
    %9 = arith.divf %7, %8 : vector<16x1xf32>
    %cst_7 = arith.constant 9.99999974E-6 : f32
    %10 = vector.broadcast %cst_7 : f32 to vector<16x1xf32>
    %11 = arith.addf %9, %10 : vector<16x1xf32>
    %12 = math.rsqrt %11 : vector<16x1xf32>
    %13 = vector.broadcast %12 : vector<16x1xf32> to vector<16x32xf32>
    %14 = arith.mulf %0, %13 : vector<16x32xf32>
    %15 = vector.broadcast %2 : vector<1x32xf32> to vector<16x32xf32>
    %16 = arith.mulf %14, %15 : vector<16x32xf32>
    %c0_8 = arith.constant 0 : index
    %c0_9 = arith.constant 0 : index
    %c0_10 = arith.constant 0 : index
    %17 = vector.load %arg3[%c0_8, %c0_9, %c0_10] : memref<1x32x112xf32, #tpu.memory_space<vmem>>, vector<1x32x112xf32>
    %18 = vector.shape_cast %17 : vector<1x32x112xf32> to vector<32x112xf32>
    %cst_11 = arith.constant dense<0.000000e+00> : vector<16x112xf32>
    %19 = tpu.matmul %16, %18, %cst_11 {dimension_numbers = #tpu.dot_dimension_numbers<[1], [0], [0], [1], [0, 0, 1, 1], [], []>} : vector<16x32xf32>, vector<32x112xf32>, vector<16x112xf32> -> vector<16x112xf32>
    %c0_12 = arith.constant 0 : index
    %c0_13 = arith.constant 0 : index
    %20 = vector.load %arg7[%c0_12, %c0_13] : memref<16x96xf32, #tpu.memory_space<vmem>>, vector<16x96xf32>
    %21 = vector.extract_strided_slice %19 {offsets = [0, 0], sizes = [16, 32], strides = [1, 1]} : vector<16x112xf32> to vector<16x32xf32>
    %22 = vector.extract_strided_slice %20 {offsets = [0, 0], sizes = [16, 32], strides = [1, 1]} : vector<16x96xf32> to vector<16x32xf32>
    %23 = arith.mulf %21, %22 : vector<16x32xf32>
    %24 = vector.extract_strided_slice %19 {offsets = [0, 32], sizes = [16, 32], strides = [1, 1]} : vector<16x112xf32> to vector<16x32xf32>
    %25 = vector.extract_strided_slice %20 {offsets = [0, 32], sizes = [16, 32], strides = [1, 1]} : vector<16x96xf32> to vector<16x32xf32>
    %26 = arith.mulf %24, %25 : vector<16x32xf32>
    %27 = arith.addf %23, %26 : vector<16x32xf32>
    %28 = vector.extract_strided_slice %19 {offsets = [0, 64], sizes = [16, 16], strides = [1, 1]} : vector<16x112xf32> to vector<16x16xf32>
    %29 = vector.extract_strided_slice %20 {offsets = [0, 64], sizes = [16, 16], strides = [1, 1]} : vector<16x96xf32> to vector<16x16xf32>
    %30 = arith.mulf %28, %29 : vector<16x16xf32>
    %31 = vector.extract_strided_slice %19 {offsets = [0, 80], sizes = [16, 16], strides = [1, 1]} : vector<16x112xf32> to vector<16x16xf32>
    %32 = vector.extract_strided_slice %20 {offsets = [0, 80], sizes = [16, 16], strides = [1, 1]} : vector<16x96xf32> to vector<16x16xf32>
    %33 = arith.mulf %31, %32 : vector<16x16xf32>
    %34 = arith.addf %30, %33 : vector<16x16xf32>
    %35 = vector.extract_strided_slice %19 {offsets = [0, 96], sizes = [16, 16], strides = [1, 1]} : vector<16x112xf32> to vector<16x16xf32>
    %36 = vector.extract_strided_slice %27 {offsets = [0, 0], sizes = [8, 8], strides = [1, 1]} : vector<16x32xf32> to vector<8x8xf32>
    %37 = vector.extract_strided_slice %27 {offsets = [0, 8], sizes = [8, 8], strides = [1, 1]} : vector<16x32xf32> to vector<8x8xf32>
    %38 = vector.extract_strided_slice %27 {offsets = [0, 16], sizes = [8, 8], strides = [1, 1]} : vector<16x32xf32> to vector<8x8xf32>
    %39 = vector.extract_strided_slice %27 {offsets = [0, 24], sizes = [8, 8], strides = [1, 1]} : vector<16x32xf32> to vector<8x8xf32>
    %40 = vector.extract_strided_slice %27 {offsets = [8, 0], sizes = [8, 8], strides = [1, 1]} : vector<16x32xf32> to vector<8x8xf32>
    %41 = vector.extract_strided_slice %27 {offsets = [8, 8], sizes = [8, 8], strides = [1, 1]} : vector<16x32xf32> to vector<8x8xf32>
    %42 = vector.extract_strided_slice %27 {offsets = [8, 16], sizes = [8, 8], strides = [1, 1]} : vector<16x32xf32> to vector<8x8xf32>
    %43 = vector.extract_strided_slice %27 {offsets = [8, 24], sizes = [8, 8], strides = [1, 1]} : vector<16x32xf32> to vector<8x8xf32>
    %44 = vector.shape_cast %36 : vector<8x8xf32> to vector<1x8x8xf32>
    %45 = vector.shape_cast %37 : vector<8x8xf32> to vector<1x8x8xf32>
    %46 = vector.shape_cast %38 : vector<8x8xf32> to vector<1x8x8xf32>
    %47 = vector.shape_cast %39 : vector<8x8xf32> to vector<1x8x8xf32>
    %48 = vector.shape_cast %40 : vector<8x8xf32> to vector<1x8x8xf32>
    %49 = vector.shape_cast %41 : vector<8x8xf32> to vector<1x8x8xf32>
    %50 = vector.shape_cast %42 : vector<8x8xf32> to vector<1x8x8xf32>
    %51 = vector.shape_cast %43 : vector<8x8xf32> to vector<1x8x8xf32>
    %52 = tpu.concatenate %44, %45, %46, %47, %48, %49, %50, %51 in 0 : vector<1x8x8xf32>, vector<1x8x8xf32>, vector<1x8x8xf32>, vector<1x8x8xf32>, vector<1x8x8xf32>, vector<1x8x8xf32>, vector<1x8x8xf32>, vector<1x8x8xf32> -> vector<8x8x8xf32>
    %53 = vector.extract_strided_slice %34 {offsets = [0, 0], sizes = [8, 8], strides = [1, 1]} : vector<16x16xf32> to vector<8x8xf32>
    %54 = vector.extract_strided_slice %34 {offsets = [0, 0], sizes = [8, 8], strides = [1, 1]} : vector<16x16xf32> to vector<8x8xf32>
    %55 = vector.extract_strided_slice %34 {offsets = [0, 8], sizes = [8, 8], strides = [1, 1]} : vector<16x16xf32> to vector<8x8xf32>
    %56 = vector.extract_strided_slice %34 {offsets = [0, 8], sizes = [8, 8], strides = [1, 1]} : vector<16x16xf32> to vector<8x8xf32>
    %57 = vector.extract_strided_slice %34 {offsets = [8, 0], sizes = [8, 8], strides = [1, 1]} : vector<16x16xf32> to vector<8x8xf32>
    %58 = vector.extract_strided_slice %34 {offsets = [8, 0], sizes = [8, 8], strides = [1, 1]} : vector<16x16xf32> to vector<8x8xf32>
    %59 = vector.extract_strided_slice %34 {offsets = [8, 8], sizes = [8, 8], strides = [1, 1]} : vector<16x16xf32> to vector<8x8xf32>
    %60 = vector.extract_strided_slice %34 {offsets = [8, 8], sizes = [8, 8], strides = [1, 1]} : vector<16x16xf32> to vector<8x8xf32>
    %61 = vector.shape_cast %53 : vector<8x8xf32> to vector<1x8x8xf32>
    %62 = vector.shape_cast %54 : vector<8x8xf32> to vector<1x8x8xf32>
    %63 = vector.shape_cast %55 : vector<8x8xf32> to vector<1x8x8xf32>
    %64 = vector.shape_cast %56 : vector<8x8xf32> to vector<1x8x8xf32>
    %65 = vector.shape_cast %57 : vector<8x8xf32> to vector<1x8x8xf32>
    %66 = vector.shape_cast %58 : vector<8x8xf32> to vector<1x8x8xf32>
    %67 = vector.shape_cast %59 : vector<8x8xf32> to vector<1x8x8xf32>
    %68 = vector.shape_cast %60 : vector<8x8xf32> to vector<1x8x8xf32>
    %69 = tpu.concatenate %61, %62, %63, %64, %65, %66, %67, %68 in 0 : vector<1x8x8xf32>, vector<1x8x8xf32>, vector<1x8x8xf32>, vector<1x8x8xf32>, vector<1x8x8xf32>, vector<1x8x8xf32>, vector<1x8x8xf32>, vector<1x8x8xf32> -> vector<8x8x8xf32>
    %70 = vector.extract_strided_slice %35 {offsets = [0, 0], sizes = [8, 8], strides = [1, 1]} : vector<16x16xf32> to vector<8x8xf32>
    %71 = vector.extract_strided_slice %35 {offsets = [0, 0], sizes = [8, 8], strides = [1, 1]} : vector<16x16xf32> to vector<8x8xf32>
    %72 = vector.extract_strided_slice %35 {offsets = [0, 8], sizes = [8, 8], strides = [1, 1]} : vector<16x16xf32> to vector<8x8xf32>
    %73 = vector.extract_strided_slice %35 {offsets = [0, 8], sizes = [8, 8], strides = [1, 1]} : vector<16x16xf32> to vector<8x8xf32>
    %74 = vector.extract_strided_slice %35 {offsets = [8, 0], sizes = [8, 8], strides = [1, 1]} : vector<16x16xf32> to vector<8x8xf32>
    %75 = vector.extract_strided_slice %35 {offsets = [8, 0], sizes = [8, 8], strides = [1, 1]} : vector<16x16xf32> to vector<8x8xf32>
    %76 = vector.extract_strided_slice %35 {offsets = [8, 8], sizes = [8, 8], strides = [1, 1]} : vector<16x16xf32> to vector<8x8xf32>
    %77 = vector.extract_strided_slice %35 {offsets = [8, 8], sizes = [8, 8], strides = [1, 1]} : vector<16x16xf32> to vector<8x8xf32>
    %78 = vector.shape_cast %70 : vector<8x8xf32> to vector<1x8x8xf32>
    %79 = vector.shape_cast %71 : vector<8x8xf32> to vector<1x8x8xf32>
    %80 = vector.shape_cast %72 : vector<8x8xf32> to vector<1x8x8xf32>
    %81 = vector.shape_cast %73 : vector<8x8xf32> to vector<1x8x8xf32>
    %82 = vector.shape_cast %74 : vector<8x8xf32> to vector<1x8x8xf32>
    %83 = vector.shape_cast %75 : vector<8x8xf32> to vector<1x8x8xf32>
    %84 = vector.shape_cast %76 : vector<8x8xf32> to vector<1x8x8xf32>
    %85 = vector.shape_cast %77 : vector<8x8xf32> to vector<1x8x8xf32>
    %86 = tpu.concatenate %78, %79, %80, %81, %82, %83, %84, %85 in 0 : vector<1x8x8xf32>, vector<1x8x8xf32>, vector<1x8x8xf32>, vector<1x8x8xf32>, vector<1x8x8xf32>, vector<1x8x8xf32>, vector<1x8x8xf32>, vector<1x8x8xf32> -> vector<8x8x8xf32>
    "tpu.trace_start"() <{level = 10 : i32, message = "nsd,ntd->nst"}> : () -> ()
    %cst_14 = arith.constant dense<0.000000e+00> : vector<8x8x8xf32>
    %87 = tpu.matmul %52, %69, %cst_14 {dimension_numbers = #tpu.dot_dimension_numbers<[2], [2], [1], [1], [0, 0, 0, 1, 1, 1], [0], [0]>} : vector<8x8x8xf32>, vector<8x8x8xf32>, vector<8x8x8xf32> -> vector<8x8x8xf32>
    "tpu.trace_stop"() : () -> ()
    %cst_15 = arith.constant dense<0xFF800000> : vector<8x8xf32>
    %88 = vector.multi_reduction <maximumf>, %87, %cst_15 [2] : vector<8x8x8xf32> to vector<8x8xf32>
    %89 = vector.shape_cast %88 : vector<8x8xf32> to vector<8x8x1xf32>
    %90 = vector.broadcast %89 : vector<8x8x1xf32> to vector<8x8x8xf32>
    %91 = arith.subf %87, %90 : vector<8x8x8xf32>
    %92 = math.exp %91 : vector<8x8x8xf32>
    %cst_16 = arith.constant dense<0.000000e+00> : vector<8x8xf32>
    %93 = vector.multi_reduction <add>, %92, %cst_16 [2] : vector<8x8x8xf32> to vector<8x8xf32>
    %94 = vector.shape_cast %93 : vector<8x8xf32> to vector<8x8x1xf32>
    %95 = tpu.reciprocal %94 {approx = true} : vector<8x8x1xf32> -> vector<8x8x1xf32>
    %96 = vector.broadcast %95 : vector<8x8x1xf32> to vector<8x8x8xf32>
    %97 = arith.mulf %92, %96 : vector<8x8x8xf32>
    "tpu.trace_start"() <{level = 10 : i32, message = "nst,ntd->nsd"}> : () -> ()
    %cst_17 = arith.constant dense<0.000000e+00> : vector<8x8x8xf32>
    %98 = tpu.matmul %97, %86, %cst_17 {dimension_numbers = #tpu.dot_dimension_numbers<[2], [1], [1], [2], [0, 0, 0, 1, 1, 2], [0], [0]>} : vector<8x8x8xf32>, vector<8x8x8xf32>, vector<8x8x8xf32> -> vector<8x8x8xf32>
    "tpu.trace_stop"() : () -> ()
    %99 = vector.extract_strided_slice %98 {offsets = [0, 0, 0], sizes = [1, 8, 8], strides = [1, 1, 1]} : vector<8x8x8xf32> to vector<1x8x8xf32>
    %100 = vector.shape_cast %99 : vector<1x8x8xf32> to vector<8x8xf32>
    %101 = vector.extract_strided_slice %98 {offsets = [1, 0, 0], sizes = [1, 8, 8], strides = [1, 1, 1]} : vector<8x8x8xf32> to vector<1x8x8xf32>
    %102 = vector.shape_cast %101 : vector<1x8x8xf32> to vector<8x8xf32>
    %103 = vector.extract_strided_slice %98 {offsets = [2, 0, 0], sizes = [1, 8, 8], strides = [1, 1, 1]} : vector<8x8x8xf32> to vector<1x8x8xf32>
    %104 = vector.shape_cast %103 : vector<1x8x8xf32> to vector<8x8xf32>
    %105 = vector.extract_strided_slice %98 {offsets = [3, 0, 0], sizes = [1, 8, 8], strides = [1, 1, 1]} : vector<8x8x8xf32> to vector<1x8x8xf32>
    %106 = vector.shape_cast %105 : vector<1x8x8xf32> to vector<8x8xf32>
    %107 = tpu.concatenate %100, %102, %104, %106 in 1 : vector<8x8xf32>, vector<8x8xf32>, vector<8x8xf32>, vector<8x8xf32> -> vector<8x32xf32>
    %108 = vector.extract_strided_slice %98 {offsets = [4, 0, 0], sizes = [1, 8, 8], strides = [1, 1, 1]} : vector<8x8x8xf32> to vector<1x8x8xf32>
    %109 = vector.shape_cast %108 : vector<1x8x8xf32> to vector<8x8xf32>
    %110 = vector.extract_strided_slice %98 {offsets = [5, 0, 0], sizes = [1, 8, 8], strides = [1, 1, 1]} : vector<8x8x8xf32> to vector<1x8x8xf32>
    %111 = vector.shape_cast %110 : vector<1x8x8xf32> to vector<8x8xf32>
    %112 = vector.extract_strided_slice %98 {offsets = [6, 0, 0], sizes = [1, 8, 8], strides = [1, 1, 1]} : vector<8x8x8xf32> to vector<1x8x8xf32>
    %113 = vector.shape_cast %112 : vector<1x8x8xf32> to vector<8x8xf32>
    %114 = vector.extract_strided_slice %98 {offsets = [7, 0, 0], sizes = [1, 8, 8], strides = [1, 1, 1]} : vector<8x8x8xf32> to vector<1x8x8xf32>
    %115 = vector.shape_cast %114 : vector<1x8x8xf32> to vector<8x8xf32>
    %116 = tpu.concatenate %109, %111, %113, %115 in 1 : vector<8x8xf32>, vector<8x8xf32>, vector<8x8xf32>, vector<8x8xf32> -> vector<8x32xf32>
    %117 = tpu.concatenate %107, %116 in 0 : vector<8x32xf32>, vector<8x32xf32> -> vector<16x32xf32>
    %c0_18 = arith.constant 0 : index
    %c0_19 = arith.constant 0 : index
    %c0_20 = arith.constant 0 : index
    %118 = vector.load %arg4[%c0_18, %c0_19, %c0_20] : memref<1x32x32xf32, #tpu.memory_space<vmem>>, vector<1x32x32xf32>
    %119 = vector.shape_cast %118 : vector<1x32x32xf32> to vector<32x32xf32>
    %cst_21 = arith.constant dense<0.000000e+00> : vector<16x32xf32>
    %120 = tpu.matmul %117, %119, %cst_21 {dimension_numbers = #tpu.dot_dimension_numbers<[1], [0], [0], [1], [0, 0, 1, 1], [], []>} : vector<16x32xf32>, vector<32x32xf32>, vector<16x32xf32> -> vector<16x32xf32>
    %121 = arith.addf %0, %120 : vector<16x32xf32>
    %122 = arith.mulf %121, %121 : vector<16x32xf32>
    %cst_22 = arith.constant dense<0.000000e+00> : vector<16xf32>
    %123 = vector.multi_reduction <add>, %122, %cst_22 [1] : vector<16x32xf32> to vector<16xf32>
    %124 = vector.shape_cast %123 : vector<16xf32> to vector<16x1xf32>
    %cst_23 = arith.constant 3.200000e+01 : f32
    %125 = vector.broadcast %cst_23 : f32 to vector<16x1xf32>
    %126 = arith.divf %124, %125 : vector<16x1xf32>
    %cst_24 = arith.constant 9.99999974E-6 : f32
    %127 = vector.broadcast %cst_24 : f32 to vector<16x1xf32>
    %128 = arith.addf %126, %127 : vector<16x1xf32>
    %129 = math.rsqrt %128 : vector<16x1xf32>
    %130 = vector.broadcast %129 : vector<16x1xf32> to vector<16x32xf32>
    %131 = arith.mulf %121, %130 : vector<16x32xf32>
    %132 = vector.broadcast %4 : vector<1x32xf32> to vector<16x32xf32>
    %133 = arith.mulf %131, %132 : vector<16x32xf32>
    %c0_25 = arith.constant 0 : index
    %c0_26 = arith.constant 0 : index
    %c0_27 = arith.constant 0 : index
    %134 = vector.load %arg5[%c0_25, %c0_26, %c0_27] : memref<1x32x192xf32, #tpu.memory_space<vmem>>, vector<1x32x192xf32>
    %135 = vector.shape_cast %134 : vector<1x32x192xf32> to vector<32x192xf32>
    %cst_28 = arith.constant dense<0.000000e+00> : vector<16x192xf32>
    %136 = tpu.matmul %133, %135, %cst_28 {dimension_numbers = #tpu.dot_dimension_numbers<[1], [0], [0], [1], [0, 0, 1, 1], [], []>} : vector<16x32xf32>, vector<32x192xf32>, vector<16x192xf32> -> vector<16x192xf32>
    %137 = vector.extract_strided_slice %136 {offsets = [0, 0], sizes = [16, 96], strides = [1, 1]} : vector<16x192xf32> to vector<16x96xf32>
    %138 = vector.extract_strided_slice %136 {offsets = [0, 96], sizes = [16, 96], strides = [1, 1]} : vector<16x192xf32> to vector<16x96xf32>
    %139 = arith.negf %137 : vector<16x96xf32>
    %140 = math.exp %139 : vector<16x96xf32>
    %cst_29 = arith.constant 1.000000e+00 : f32
    %141 = vector.broadcast %cst_29 : f32 to vector<16x96xf32>
    %142 = arith.addf %141, %140 : vector<16x96xf32>
    %143 = arith.divf %141, %142 : vector<16x96xf32>
    %144 = arith.mulf %137, %143 : vector<16x96xf32>
    %145 = arith.mulf %144, %138 : vector<16x96xf32>
    %c0_30 = arith.constant 0 : index
    %c0_31 = arith.constant 0 : index
    %c0_32 = arith.constant 0 : index
    %146 = vector.load %arg6[%c0_30, %c0_31, %c0_32] : memref<1x96x32xf32, #tpu.memory_space<vmem>>, vector<1x96x32xf32>
    %147 = vector.shape_cast %146 : vector<1x96x32xf32> to vector<96x32xf32>
    %cst_33 = arith.constant dense<0.000000e+00> : vector<16x32xf32>
    %148 = tpu.matmul %145, %147, %cst_33 {dimension_numbers = #tpu.dot_dimension_numbers<[1], [0], [0], [1], [0, 0, 1, 1], [], []>} : vector<16x96xf32>, vector<96x32xf32>, vector<16x32xf32> -> vector<16x32xf32>
    %149 = arith.addf %121, %148 : vector<16x32xf32>
    %c0_34 = arith.constant 0 : index
    %c0_35 = arith.constant 0 : index
    %c0_36 = arith.constant 0 : index
    %150 = vector.load %arg11[%c0_34, %c0_35, %c0_36] : memref<1x16x32xf32, #tpu.memory_space<vmem>>, vector<1x16x32xf32>
    %151 = vector.shape_cast %150 : vector<1x16x32xf32> to vector<16x32xf32>
    %152 = vector.shape_cast %149 : vector<16x32xf32> to vector<1x16x32xf32>
    tpu.vector_store %arg11[%c0_34, %c0_35, %c0_36], %152 {strides = array<i32>} : memref<1x16x32xf32, #tpu.memory_space<vmem>>, vector<1x16x32xf32>,
    %c0_37 = arith.constant 0 : index
    %c0_38 = arith.constant 0 : index
    %153 = vector.load %arg8[%c0_37, %c0_38] : memref<1x32xf32, #tpu.memory_space<vmem>>, vector<1x32xf32>
    %154 = arith.mulf %0, %0 : vector<16x32xf32>
    %cst_39 = arith.constant dense<0.000000e+00> : vector<16xf32>
    %155 = vector.multi_reduction <add>, %154, %cst_39 [1] : vector<16x32xf32> to vector<16xf32>
    %156 = vector.shape_cast %155 : vector<16xf32> to vector<16x1xf32>
    %cst_40 = arith.constant 3.200000e+01 : f32
    %157 = vector.broadcast %cst_40 : f32 to vector<16x1xf32>
    %158 = arith.divf %156, %157 : vector<16x1xf32>
    %cst_41 = arith.constant 9.99999974E-6 : f32
    %159 = vector.broadcast %cst_41 : f32 to vector<16x1xf32>
    %160 = arith.addf %158, %159 : vector<16x1xf32>
    %161 = math.rsqrt %160 : vector<16x1xf32>
    %162 = vector.broadcast %161 : vector<16x1xf32> to vector<16x32xf32>
    %163 = arith.mulf %0, %162 : vector<16x32xf32>
    %164 = vector.broadcast %153 : vector<1x32xf32> to vector<16x32xf32>
    %165 = arith.mulf %163, %164 : vector<16x32xf32>
    %c0_42 = arith.constant 0 : index
    %c0_43 = arith.constant 0 : index
    %166 = vector.load %arg9[%c0_42, %c0_43] : memref<32x64xf32, #tpu.memory_space<vmem>>, vector<32x64xf32>
    %cst_44 = arith.constant dense<0.000000e+00> : vector<16x64xf32>
    %167 = tpu.matmul %165, %166, %cst_44 {dimension_numbers = #tpu.dot_dimension_numbers<[1], [0], [0], [1], [0, 0, 1, 1], [], []>} : vector<16x32xf32>, vector<32x64xf32>, vector<16x64xf32> -> vector<16x64xf32>
    %c0_45 = arith.constant 0 : index
    %c0_46 = arith.constant 0 : index
    %c0_47 = arith.constant 0 : index
    %168 = vector.load %arg12[%c0_45, %c0_46, %c0_47] : memref<1x16x64xf32, #tpu.memory_space<vmem>>, vector<1x16x64xf32>
    %169 = vector.shape_cast %168 : vector<1x16x64xf32> to vector<16x64xf32>
    %170 = vector.shape_cast %167 : vector<16x64xf32> to vector<1x16x64xf32>
    tpu.vector_store %arg12[%c0_45, %c0_46, %c0_47], %170 {strides = array<i32>} : memref<1x16x64xf32, #tpu.memory_space<vmem>>, vector<1x16x64xf32>,
    %cst_48 = arith.constant dense<0xFF800000> : vector<16xf32>
    %171 = vector.multi_reduction <maximumf>, %167, %cst_48 [1] : vector<16x64xf32> to vector<16xf32>
    %172 = vector.shape_cast %171 : vector<16xf32> to vector<16x1xf32>
    %173 = vector.broadcast %172 : vector<16x1xf32> to vector<16x64xf32>
    %174 = arith.subf %167, %173 : vector<16x64xf32>
    %175 = math.exp %174 : vector<16x64xf32>
    %cst_49 = arith.constant dense<0.000000e+00> : vector<16xf32>
    %176 = vector.multi_reduction <add>, %175, %cst_49 [1] : vector<16x64xf32> to vector<16xf32>
    %177 = vector.shape_cast %176 : vector<16xf32> to vector<16x1xf32>
    %178 = math.log %177 : vector<16x1xf32>
    %179 = arith.addf %178, %172 : vector<16x1xf32>
    %180 = tpu.iota {dimensions = array<i32: 1>} : vector<16x64xi32>
    %c0_50 = arith.constant 0 : index
    %c0_51 = arith.constant 0 : index
    %181 = vector.load %arg10[%c0_50, %c0_51] : memref<16x1xi32, #tpu.memory_space<vmem>>, vector<16x1xi32>
    %182 = vector.broadcast %181 : vector<16x1xi32> to vector<16x64xi32>
    %183 = arith.cmpi eq, %180, %182 : vector<16x64xi32>
    %cst_52 = arith.constant 0.000000e+00 : f32
    %184 = vector.broadcast %cst_52 : f32 to vector<16x64xf32>
    %185 = arith.select %183, %167, %184 : vector<16x64xi1>, vector<16x64xf32>
    %cst_53 = arith.constant dense<0.000000e+00> : vector<16xf32>
    %186 = vector.multi_reduction <add>, %185, %cst_53 [1] : vector<16x64xf32> to vector<16xf32>
    %187 = vector.shape_cast %186 : vector<16xf32> to vector<16x1xf32>
    %188 = arith.subf %179, %187 : vector<16x1xf32>
    %cst_54 = arith.constant dense<0.000000e+00> : vector<1xf32>
    %189 = vector.multi_reduction <add>, %188, %cst_54 [0] : vector<16x1xf32> to vector<1xf32>
    %190 = vector.shape_cast %189 : vector<1xf32> to vector<1x1xf32>
    %cst_55 = arith.constant 6.250000e-02 : f32
    %191 = vector.broadcast %cst_55 : f32 to vector<1x1xf32>
    %192 = arith.mulf %190, %191 : vector<1x1xf32>
    %c0_56 = arith.constant 0 : index
    %c0_57 = arith.constant 0 : index
    %c0_58 = arith.constant 0 : index
    %193 = vector.load %arg13[%c0_56, %c0_57, %c0_58] : memref<1x1x1xf32, #tpu.memory_space<vmem>>, vector<1x1x1xf32>
    %194 = vector.shape_cast %193 : vector<1x1x1xf32> to vector<1x1xf32>
    %195 = vector.shape_cast %192 : vector<1x1xf32> to vector<1x1x1xf32>
    tpu.vector_store %arg13[%c0_56, %c0_57, %c0_58], %195 {strides = array<i32>} : memref<1x1x1xf32, #tpu.memory_space<vmem>>, vector<1x1x1xf32>,
    return
  }
  func.func @transform_0(%arg0: i32) -> (i32, i32) {
    %c0_i32 = arith.constant 0 : i32
    %c0_i32_0 = arith.constant 0 : i32
    %c0_i32_1 = arith.constant 0 : i32
    return %c0_i32, %c0_i32_0 : i32, i32
  }
  func.func @transform_1(%arg0: i32) -> (i32, i32, i32) {
    %c0_i32 = arith.constant 0 : i32
    %c0_i32_0 = arith.constant 0 : i32
    %c0_i32_1 = arith.constant 0 : i32
    return %arg0, %c0_i32, %c0_i32_0 : i32, i32, i32
  }
  func.func @transform_2(%arg0: i32) -> (i32, i32, i32) {
    %c0_i32 = arith.constant 0 : i32
    %c0_i32_0 = arith.constant 0 : i32
    %c0_i32_1 = arith.constant 0 : i32
    return %arg0, %c0_i32, %c0_i32_0 : i32, i32, i32
  }
  func.func @transform_3(%arg0: i32) -> (i32, i32, i32) {
    %c0_i32 = arith.constant 0 : i32
    %c0_i32_0 = arith.constant 0 : i32
    %c0_i32_1 = arith.constant 0 : i32
    return %arg0, %c0_i32, %c0_i32_0 : i32, i32, i32
  }
  func.func @transform_4(%arg0: i32) -> (i32, i32, i32) {
    %c0_i32 = arith.constant 0 : i32
    %c0_i32_0 = arith.constant 0 : i32
    %c0_i32_1 = arith.constant 0 : i32
    return %arg0, %c0_i32, %c0_i32_0 : i32, i32, i32
  }
  func.func @transform_5(%arg0: i32) -> (i32, i32, i32) {
    %c0_i32 = arith.constant 0 : i32
    %c0_i32_0 = arith.constant 0 : i32
    %c0_i32_1 = arith.constant 0 : i32
    return %arg0, %c0_i32, %c0_i32_0 : i32, i32, i32
  }
  func.func @transform_6(%arg0: i32) -> (i32, i32) {
    %c0_i32 = arith.constant 0 : i32
    %c0_i32_0 = arith.constant 0 : i32
    %c0_i32_1 = arith.constant 0 : i32
    return %c0_i32, %c0_i32_0 : i32, i32
  }
  func.func @transform_7(%arg0: i32) -> (i32, i32) {
    %c0_i32 = arith.constant 0 : i32
    %c0_i32_0 = arith.constant 0 : i32
    %c0_i32_1 = arith.constant 0 : i32
    return %c0_i32, %c0_i32_0 : i32, i32
  }
  func.func @transform_8(%arg0: i32) -> (i32, i32) {
    %c0_i32 = arith.constant 0 : i32
    %c0_i32_0 = arith.constant 0 : i32
    %c0_i32_1 = arith.constant 0 : i32
    return %c0_i32, %c0_i32_0 : i32, i32
  }
  func.func @transform_9(%arg0: i32) -> (i32, i32) {
    %c0_i32 = arith.constant 0 : i32
    %c0_i32_0 = arith.constant 0 : i32
    %c0_i32_1 = arith.constant 0 : i32
    return %c0_i32, %c0_i32_0 : i32, i32
  }
  func.func @transform_10(%arg0: i32) -> (i32, i32, i32) {
    %c0_i32 = arith.constant 0 : i32
    %c0_i32_0 = arith.constant 0 : i32
    %c0_i32_1 = arith.constant 0 : i32
    return %arg0, %c0_i32, %c0_i32_0 : i32, i32, i32
  }
  func.func @transform_11(%arg0: i32) -> (i32, i32, i32) {
    %c0_i32 = arith.constant 0 : i32
    %c0_i32_0 = arith.constant 0 : i32
    %c0_i32_1 = arith.constant 0 : i32
    return %arg0, %c0_i32, %c0_i32_0 : i32, i32, i32
  }
  func.func @transform_12(%arg0: i32) -> (i32, i32, i32) {
    %c0_i32 = arith.constant 0 : i32
    %c0_i32_0 = arith.constant 0 : i32
    %c0_i32_1 = arith.constant 0 : i32
    return %arg0, %c0_i32, %c0_i32_0 : i32, i32, i32
  }
}

</mosaic_0001>

<llo_original>
// kernel: tpu_custom_call.1
$region0: #{tpu_custom_call.1}
  #allocation0 [shape = 'u32[]', space=smem, size = 0x4, offset = 0x4, fixed_abs, tag = 'smem constant byte address 0x4 - core index']
  #allocation1 [shape = 'u32[144,128]{1,0:T(1,128)}', space=vmem, size = 0x12000, scoped, tag = 'internal scratch']
  %s0 = inlined_call_operand.hbm [shape: f32[16,32], index: 0, kind: input, shape index: {}]
  %s1 = inlined_call_operand.hbm [shape: f32[2,2,32], index: 1, kind: input, shape index: {}]
  %s2 = inlined_call_operand.vmem [shape: f32[2,32,112], index: 2, kind: input, shape index: {}]
  %s3 = inlined_call_operand.vmem [shape: f32[2,32,32], index: 3, kind: input, shape index: {}]
  %s4 = inlined_call_operand.vmem [shape: f32[2,32,192], index: 4, kind: input, shape index: {}]
  %s5 = inlined_call_operand.vmem [shape: f32[2,96,32], index: 5, kind: input, shape index: {}]
  %s6 = inlined_call_operand.hbm [shape: f32[16,96], index: 6, kind: input, shape index: {}]
  %s7 = inlined_call_operand.vmem [shape: f32[1,32], index: 7, kind: input, shape index: {}]
  %s8 = inlined_call_operand.vmem [shape: f32[32,64], index: 8, kind: input, shape index: {}]
  %s9 = inlined_call_operand.vmem [shape: s32[16,1], index: 9, kind: input, shape index: {}]
  %s10 = inlined_call_operand.hbm [shape: f32[2,16,32], index: 10, kind: output, shape index: {0}]
  %s11 = inlined_call_operand.hbm [shape: f32[2,16,64], index: 11, kind: output, shape index: {1}]
  %s12 = inlined_call_operand.vmem [shape: f32[2,1,1], index: 12, kind: output, shape index: {2}]
  %13 = xla_tuple %s10, %s11, %s12
  %s14 = sld [smem:[#allocation0]]
  $region101: #{tpu_custom_call.1} parent=0
    _
  %s16 = ssub.s32 1, %s14
  %s17 = scalar_select 0, %s16, %s14
  $region1: #{tpu_custom_call.1} parent=0
    #allocation2 [shape = 'u8[8192]{0}', space=vmem, size = 0x2000, scoped, tag = 'input window, operand 0, single buffered']
    #allocation3 [shape = 's32[2]{0}', space=sflag, size = 0x8, scoped, tag = 'scoped memory for tpu_custom_call.1']
    #allocation4 [shape = 's32[2]{0}', space=sflag, size = 0x8, scoped, tag = 'scoped memory for tpu_custom_call.1']
    #allocation5 [shape = 'u8[2048]{0}', space=vmem, size = 0x800, scoped, tag = 'input window, operand 1']
    #allocation6 [shape = 's32[2]{0}', space=sflag, size = 0x8, scoped, tag = 'scoped memory for tpu_custom_call.1']
    #allocation7 [shape = 'u8[8192]{0}', space=vmem, size = 0x2000, scoped, tag = 'input window, operand 6, single buffered']
    #allocation8 [shape = 'u8[16384]{0}', space=vmem, size = 0x4000, scoped, tag = 'output window, operand 0']
    #allocation9 [shape = 'u8[16384]{0}', space=vmem, size = 0x4000, scoped, tag = 'output window, operand 1']
    #allocation10 [shape = 's32[2]{0}', space=sflag, size = 0x8, scoped, tag = 'scoped memory for tpu_custom_call.1']
    %18 = vsyncpa [#allocation3], 0
    %19 = vsyncpa [#allocation6], 0
    %s20 = scalar_lea.sflag [#allocation6], 1
    %21 = vsyncpa %s20, 0
    %22 = vsyncpa [#allocation4], 0
    %s23 = scalar_lea.sflag [#allocation4], 1
    %24 = vsyncpa %s23, 0
    %25 = vsyncpa [#allocation10], 0
    %s26 = scalar_lea.sflag [#allocation10], 1
    %27 = vsyncpa %s26, 0
    loop: start=0, step=1, limit=4
    $region2: #{tpu_custom_call.1} parent=1 // loop_pre_header
      _
    $region3: #{tpu_custom_call.1} parent=1 // loop_header
      %s29 = sphi 0, %s33
      %p30 = scmp.ge.s32.totalorder %s29, 4
      %s37 = sphi 0, %s37
      %s39 = sphi 0, %s37
      %s40 = sphi 0, %s39
      %s54 = sphi 0, %s40
      %s60 = sphi 0, %s62
      %s63 = sphi 0, %s60
      %s64 = sphi 0, %s63
      %s80 = sphi 0, %s64
      %s86 = sphi 0, %s88
      %s89 = sphi 0, %s86
      %s90 = sphi 0, %s89
      %s106 = sphi 0, %s90
      %s112 = sphi 0, %s114
      %s115 = sphi 0, %s112
      %s116 = sphi 0, %s115
      %s132 = sphi 0, %s116
      %s138 = sphi 0, %s140
      %s141 = sphi 0, %s138
      %s142 = sphi 0, %s141
      %s158 = sphi 0, %s142
      %s164 = sphi 0, %s166
      %s167 = sphi 0, %s164
      %s168 = sphi 0, %s167
      %s184 = sphi 0, %s168
      %s188 = sphi 0, %s188
      %s190 = sphi 0, %s188
      %s191 = sphi 0, %s190
      %s205 = sphi 0, %s191
      %s209 = sphi 0, %s209
      %s211 = sphi 0, %s209
      %s212 = sphi 0, %s211
      %s226 = sphi 0, %s212
      %s230 = sphi 0, %s230
      %s232 = sphi 0, %s230
      %s233 = sphi 0, %s232
      %s247 = sphi 0, %s233
      %s251 = sphi 0, %s251
      %s253 = sphi 0, %s251
      %s254 = sphi 0, %s253
      %s268 = sphi 0, %s254
      %s274 = sphi 0, %s276
      %s277 = sphi 0, %s274
      %s278 = sphi 0, %s277
      %s294 = sphi 0, %s278
      %s300 = sphi 0, %s302
      %s303 = sphi 0, %s300
      %s304 = sphi 0, %s303
      %s320 = sphi 0, %s304
      %s326 = sphi 0, %s328
      %s329 = sphi 0, %s326
      %s330 = sphi 0, %s329
      %s346 = sphi 0, %s330
    $region4: #{tpu_custom_call.1} parent=1 // loop_header_branch
      %32 = sbr.rel (%p30) target = $region8
    $region5: #{tpu_custom_call.1} parent=1 // loop_body
      %s34 = ssub.s32 %s29, 1
      %s35 = ssub.s32 %s29, 2
      %s36 = sadd.s32 %s29, 1
      %s38 = sadd.s32 %s37, 1
      %p41 = scmp.eq.s32.totalorder %s29, 1
      %p42 = scmp.ne.s32.totalorder %s37, %s39
      %p43 = scmp.eq.s32.totalorder %s29, 0
      %p44 = por %p42, %p43
      %p45 = scmp.ne.s32.totalorder %s37, %s39
      %p46 = scmp.eq.s32.totalorder %s34, 1
      %p47 = por %p45, %p46
      %p48 = scmp.ne.s32.totalorder %s39, %s40
      %p49 = scmp.eq.s32.totalorder %s34, 0
      %p50 = por %p48, %p49
      %p51 = scmp.ne.s32.totalorder %s39, %s40
      %p52 = scmp.eq.s32.totalorder %s35, 1
      %p53 = por %p51, %p52
      %p55 = scmp.ne.s32.totalorder %s40, %s54
      %p56 = scmp.eq.s32.totalorder %s35, 0
      %p57 = por %p55, %p56
      %s58 = ssub.s32 %s29, %s36
      %p59 = scmp.eq.s32.totalorder %s58, 0
      %s61 = sadd.s32 %s60, 1
      %s62 = scalar_select %p59, %s60, %s61
      %p65 = pneg %p59
      %p66 = scmp.eq.s32.totalorder %s29, 1
      %p67 = por %p65, %p66
      %p68 = scmp.ne.s32.totalorder %s60, %s63
      %p69 = scmp.eq.s32.totalorder %s29, 0
      %p70 = por %p68, %p69
      %p71 = scmp.ne.s32.totalorder %s60, %s63
      %p72 = scmp.eq.s32.totalorder %s34, 1
      %p73 = por %p71, %p72
      %p74 = scmp.ne.s32.totalorder %s63, %s64
      %p75 = scmp.eq.s32.totalorder %s34, 0
      %p76 = por %p74, %p75
      %p77 = scmp.ne.s32.totalorder %s63, %s64
      %p78 = scmp.eq.s32.totalorder %s35, 1
      %p79 = por %p77, %p78
      %p81 = scmp.ne.s32.totalorder %s64, %s80
      %p82 = scmp.eq.s32.totalorder %s35, 0
      %p83 = por %p81, %p82
      %s84 = ssub.s32 %s29, %s36
      %p85 = scmp.eq.s32.totalorder %s84, 0
      %s87 = sadd.s32 %s86, 1
      %s88 = scalar_select %p85, %s86, %s87
      %p91 = pneg %p85
      %p92 = scmp.eq.s32.totalorder %s29, 1
      %p93 = por %p91, %p92
      %p94 = scmp.ne.s32.totalorder %s86, %s89
      %p95 = scmp.eq.s32.totalorder %s29, 0
      %p96 = por %p94, %p95
      %p97 = scmp.ne.s32.totalorder %s86, %s89
      %p98 = scmp.eq.s32.totalorder %s34, 1
      %p99 = por %p97, %p98
      %p100 = scmp.ne.s32.totalorder %s89, %s90
      %p101 = scmp.eq.s32.totalorder %s34, 0
      %p102 = por %p100, %p101
      %p103 = scmp.ne.s32.totalorder %s89, %s90
      %p104 = scmp.eq.s32.totalorder %s35, 1
      %p105 = por %p103, %p104
      %p107 = scmp.ne.s32.totalorder %s90, %s106
      %p108 = scmp.eq.s32.totalorder %s35, 0
      %p109 = por %p107, %p108
      %s110 = ssub.s32 %s29, %s36
      %p111 = scmp.eq.s32.totalorder %s110, 0
      %s113 = sadd.s32 %s112, 1
      %s114 = scalar_select %p111, %s112, %s113
      %p117 = pneg %p111
      %p118 = scmp.eq.s32.totalorder %s29, 1
      %p119 = por %p117, %p118
      %p120 = scmp.ne.s32.totalorder %s112, %s115
      %p121 = scmp.eq.s32.totalorder %s29, 0
      %p122 = por %p120, %p121
      %p123 = scmp.ne.s32.totalorder %s112, %s115
      %p124 = scmp.eq.s32.totalorder %s34, 1
      %p125 = por %p123, %p124
      %p126 = scmp.ne.s32.totalorder %s115, %s116
      %p127 = scmp.eq.s32.totalorder %s34, 0
      %p128 = por %p126, %p127
      %p129 = scmp.ne.s32.totalorder %s115, %s116
      %p130 = scmp.eq.s32.totalorder %s35, 1
      %p131 = por %p129, %p130
      %p133 = scmp.ne.s32.totalorder %s116, %s132
      %p134 = scmp.eq.s32.totalorder %s35, 0
      %p135 = por %p133, %p134
      %s136 = ssub.s32 %s29, %s36
      %p137 = scmp.eq.s32.totalorder %s136, 0
      %s139 = sadd.s32 %s138, 1
      %s140 = scalar_select %p137, %s138, %s139
      %p143 = pneg %p137
      %p144 = scmp.eq.s32.totalorder %s29, 1
      %p145 = por %p143, %p144
      %p146 = scmp.ne.s32.totalorder %s138, %s141
      %p147 = scmp.eq.s32.totalorder %s29, 0
      %p148 = por %p146, %p147
      %p149 = scmp.ne.s32.totalorder %s138, %s141
      %p150 = scmp.eq.s32.totalorder %s34, 1
      %p151 = por %p149, %p150
      %p152 = scmp.ne.s32.totalorder %s141, %s142
      %p153 = scmp.eq.s32.totalorder %s34, 0
      %p154 = por %p152, %p153
      %p155 = scmp.ne.s32.totalorder %s141, %s142
      %p156 = scmp.eq.s32.totalorder %s35, 1
      %p157 = por %p155, %p156
      %p159 = scmp.ne.s32.totalorder %s142, %s158
      %p160 = scmp.eq.s32.totalorder %s35, 0
      %p161 = por %p159, %p160
      %s162 = ssub.s32 %s29, %s36
      %p163 = scmp.eq.s32.totalorder %s162, 0
      %s165 = sadd.s32 %s164, 1
      %s166 = scalar_select %p163, %s164, %s165
      %p169 = pneg %p163
      %p170 = scmp.eq.s32.totalorder %s29, 1
      %p171 = por %p169, %p170
      %p172 = scmp.ne.s32.totalorder %s164, %s167
      %p173 = scmp.eq.s32.totalorder %s29, 0
      %p174 = por %p172, %p173
      %p175 = scmp.ne.s32.totalorder %s164, %s167
      %p176 = scmp.eq.s32.totalorder %s34, 1
      %p177 = por %p175, %p176
      %p178 = scmp.ne.s32.totalorder %s167, %s168
      %p179 = scmp.eq.s32.totalorder %s34, 0
      %p180 = por %p178, %p179
      %p181 = scmp.ne.s32.totalorder %s167, %s168
      %p182 = scmp.eq.s32.totalorder %s35, 1
      %p183 = por %p181, %p182
      %p185 = scmp.ne.s32.totalorder %s168, %s184
      %p186 = scmp.eq.s32.totalorder %s35, 0
      %p187 = por %p185, %p186
      %s189 = sadd.s32 %s188, 1
      %p192 = scmp.eq.s32.totalorder %s29, 1
      %p193 = scmp.ne.s32.totalorder %s188, %s190
      %p194 = scmp.eq.s32.totalorder %s29, 0
      %p195 = por %p193, %p194
      %p196 = scmp.ne.s32.totalorder %s188, %s190
      %p197 = scmp.eq.s32.totalorder %s34, 1
      %p198 = por %p196, %p197
      %p199 = scmp.ne.s32.totalorder %s190, %s191
      %p200 = scmp.eq.s32.totalorder %s34, 0
      %p201 = por %p199, %p200
      %p202 = scmp.ne.s32.totalorder %s190, %s191
      %p203 = scmp.eq.s32.totalorder %s35, 1
      %p204 = por %p202, %p203
      %p206 = scmp.ne.s32.totalorder %s191, %s205
      %p207 = scmp.eq.s32.totalorder %s35, 0
      %p208 = por %p206, %p207
      %s210 = sadd.s32 %s209, 1
      %p213 = scmp.eq.s32.totalorder %s29, 1
      %p214 = scmp.ne.s32.totalorder %s209, %s211
      %p215 = scmp.eq.s32.totalorder %s29, 0
      %p216 = por %p214, %p215
      %p217 = scmp.ne.s32.totalorder %s209, %s211
      %p218 = scmp.eq.s32.totalorder %s34, 1
      %p219 = por %p217, %p218
      %p220 = scmp.ne.s32.totalorder %s211, %s212
      %p221 = scmp.eq.s32.totalorder %s34, 0
      %p222 = por %p220, %p221
      %p223 = scmp.ne.s32.totalorder %s211, %s212
      %p224 = scmp.eq.s32.totalorder %s35, 1
      %p225 = por %p223, %p224
      %p227 = scmp.ne.s32.totalorder %s212, %s226
      %p228 = scmp.eq.s32.totalorder %s35, 0
      %p229 = por %p227, %p228
      %s231 = sadd.s32 %s230, 1
      %p234 = scmp.eq.s32.totalorder %s29, 1
      %p235 = scmp.ne.s32.totalorder %s230, %s232
      %p236 = scmp.eq.s32.totalorder %s29, 0
      %p237 = por %p235, %p236
      %p238 = scmp.ne.s32.totalorder %s230, %s232
      %p239 = scmp.eq.s32.totalorder %s34, 1
      %p240 = por %p238, %p239
      %p241 = scmp.ne.s32.totalorder %s232, %s233
      %p242 = scmp.eq.s32.totalorder %s34, 0
      %p243 = por %p241, %p242
      %p244 = scmp.ne.s32.totalorder %s232, %s233
      %p245 = scmp.eq.s32.totalorder %s35, 1
      %p246 = por %p244, %p245
      %p248 = scmp.ne.s32.totalorder %s233, %s247
      %p249 = scmp.eq.s32.totalorder %s35, 0
      %p250 = por %p248, %p249
      %s252 = sadd.s32 %s251, 1
      %p255 = scmp.eq.s32.totalorder %s29, 1
      %p256 = scmp.ne.s32.totalorder %s251, %s253
      %p257 = scmp.eq.s32.totalorder %s29, 0
      %p258 = por %p256, %p257
      %p259 = scmp.ne.s32.totalorder %s251, %s253
      %p260 = scmp.eq.s32.totalorder %s34, 1
      %p261 = por %p259, %p260
      %p262 = scmp.ne.s32.totalorder %s253, %s254
      %p263 = scmp.eq.s32.totalorder %s34, 0
      %p264 = por %p262, %p263
      %p265 = scmp.ne.s32.totalorder %s253, %s254
      %p266 = scmp.eq.s32.totalorder %s35, 1
      %p267 = por %p265, %p266
      %p269 = scmp.ne.s32.totalorder %s254, %s268
      %p270 = scmp.eq.s32.totalorder %s35, 0
      %p271 = por %p269, %p270
      %s272 = ssub.s32 %s29, %s36
      %p273 = scmp.eq.s32.totalorder %s272, 0
      %s275 = sadd.s32 %s274, 1
      %s276 = scalar_select %p273, %s274, %s275
      %p279 = pneg %p273
      %p280 = scmp.eq.s32.totalorder %s29, 1
      %p281 = por %p279, %p280
      %p282 = scmp.ne.s32.totalorder %s274, %s277
      %p283 = scmp.eq.s32.totalorder %s29, 0
      %p284 = por %p282, %p283
      %p285 = scmp.ne.s32.totalorder %s274, %s277
      %p286 = scmp.eq.s32.totalorder %s34, 1
      %p287 = por %p285, %p286
      %p288 = scmp.ne.s32.totalorder %s277, %s278
      %p289 = scmp.eq.s32.totalorder %s34, 0
      %p290 = por %p288, %p289
      %p291 = scmp.ne.s32.totalorder %s277, %s278
      %p292 = scmp.eq.s32.totalorder %s35, 1
      %p293 = por %p291, %p292
      %p295 = scmp.ne.s32.totalorder %s278, %s294
      %p296 = scmp.eq.s32.totalorder %s35, 0
      %p297 = por %p295, %p296
      %s298 = ssub.s32 %s29, %s36
      %p299 = scmp.eq.s32.totalorder %s298, 0
      %s301 = sadd.s32 %s300, 1
      %s302 = scalar_select %p299, %s300, %s301
      %p305 = pneg %p299
      %p306 = scmp.eq.s32.totalorder %s29, 1
      %p307 = por %p305, %p306
      %p308 = scmp.ne.s32.totalorder %s300, %s303
      %p309 = scmp.eq.s32.totalorder %s29, 0
      %p310 = por %p308, %p309
      %p311 = scmp.ne.s32.totalorder %s300, %s303
      %p312 = scmp.eq.s32.totalorder %s34, 1
      %p313 = por %p311, %p312
      %p314 = scmp.ne.s32.totalorder %s303, %s304
      %p315 = scmp.eq.s32.totalorder %s34, 0
      %p316 = por %p314, %p315
      %p317 = scmp.ne.s32.totalorder %s303, %s304
      %p318 = scmp.eq.s32.totalorder %s35, 1
      %p319 = por %p317, %p318
      %p321 = scmp.ne.s32.totalorder %s304, %s320
      %p322 = scmp.eq.s32.totalorder %s35, 0
      %p323 = por %p321, %p322
      %s324 = ssub.s32 %s29, %s36
      %p325 = scmp.eq.s32.totalorder %s324, 0
      %s327 = sadd.s32 %s326, 1
      %s328 = scalar_select %p325, %s326, %s327
      %p331 = pneg %p325
      %p332 = scmp.eq.s32.totalorder %s29, 1
      %p333 = por %p331, %p332
      %p334 = scmp.ne.s32.totalorder %s326, %s329
      %p335 = scmp.eq.s32.totalorder %s29, 0
      %p336 = por %p334, %p335
      %p337 = scmp.ne.s32.totalorder %s326, %s329
      %p338 = scmp.eq.s32.totalorder %s34, 1
      %p339 = por %p337, %p338
      %p340 = scmp.ne.s32.totalorder %s329, %s330
      %p341 = scmp.eq.s32.totalorder %s34, 0
      %p342 = por %p340, %p341
      %p343 = scmp.ne.s32.totalorder %s329, %s330
      %p344 = scmp.eq.s32.totalorder %s35, 1
      %p345 = por %p343, %p344
      %p347 = scmp.ne.s32.totalorder %s330, %s346
      %p348 = scmp.eq.s32.totalorder %s35, 0
      %p349 = por %p347, %p348
      %p350 = scmp.le.s32.totalorder 1, %s29
      %p351 = scmp.lt.s32.totalorder %s29, 3
      %p352 = pnand %p350, %p351
      %p353 = pneg %p352
      // Predicated region
      $region9: #{tpu_custom_call.1} parent=5 // pred_check
        _
      $region10: #{tpu_custom_call.1} parent=5 // pred_check_branch
        %355 = sbr.rel (%p352) target = $region12
      $region11: #{tpu_custom_call.1} parent=5 // pred_region
        %s356 = ssub.s32 %s29, 1
        // Predicated region
        $region13: #{tpu_custom_call.1} parent=11 // pred_check
          %p357 = pneg %p50
        $region14: #{tpu_custom_call.1} parent=11 // pred_check_branch
          %359 = sbr.rel (%p357) target = $region16
        $region15: #{tpu_custom_call.1} parent=11 // pred_region
          %s361 = ssub.s32 256, 256
          %362 = vsyncadd [#allocation3], %s361
          %s363 = sshll.u32 [#allocation2], 4
          %s364 = int_to_ptr.vmem [resolvable:$true] %s363
          %369 = dma.hbm_to_vmem [thread:$0]  %s0, 256, %s364, [#allocation3], 128, 128, 8
        $region16: #{tpu_custom_call.1} parent=11 // pred_fallthru
          _
        // Predicated region
        $region17: #{tpu_custom_call.1} parent=11 // pred_check
          %p370 = pneg %p201
        $region18: #{tpu_custom_call.1} parent=11 // pred_check_branch
          %372 = sbr.rel (%p370) target = $region20
        $region19: #{tpu_custom_call.1} parent=11 // pred_region
          %s374 = ssub.s32 256, 256
          %375 = vsyncadd [#allocation6], %s374
          %s376 = sshll.u32 [#allocation7], 4
          %s377 = int_to_ptr.vmem [resolvable:$true] %s376
          %382 = dma.hbm_to_vmem [thread:$0]  %s6, 256, %s377, [#allocation6], 128, 128, 8
        $region20: #{tpu_custom_call.1} parent=11 // pred_fallthru
          _
        // Predicated region
        $region21: #{tpu_custom_call.1} parent=11 // pred_check
          %p383 = pneg %p222
        $region22: #{tpu_custom_call.1} parent=11 // pred_check_branch
          %385 = sbr.rel (%p383) target = $region24
        $region23: #{tpu_custom_call.1} parent=11 // pred_region
          _
        $region24: #{tpu_custom_call.1} parent=11 // pred_fallthru
          _
        // Predicated region
        $region25: #{tpu_custom_call.1} parent=11 // pred_check
          %p386 = pneg %p243
        $region26: #{tpu_custom_call.1} parent=11 // pred_check_branch
          %388 = sbr.rel (%p386) target = $region28
        $region27: #{tpu_custom_call.1} parent=11 // pred_region
          _
        $region28: #{tpu_custom_call.1} parent=11 // pred_fallthru
          _
        // Predicated region
        $region29: #{tpu_custom_call.1} parent=11 // pred_check
          %p389 = pneg %p264
        $region30: #{tpu_custom_call.1} parent=11 // pred_check_branch
          %391 = sbr.rel (%p389) target = $region32
        $region31: #{tpu_custom_call.1} parent=11 // pred_region
          _
        $region32: #{tpu_custom_call.1} parent=11 // pred_fallthru
          _
      $region12: #{tpu_custom_call.1} parent=5 // pred_fallthru
        _
      %p392 = scmp.lt.s32.totalorder %s29, 2
      // Predicated region
      $region33: #{tpu_custom_call.1} parent=5 // pred_check
        %p393 = pneg %p392
      $region34: #{tpu_custom_call.1} parent=5 // pred_check_branch
        %395 = sbr.rel (%p393) target = $region36
      $region35: #{tpu_custom_call.1} parent=5 // pred_region
        // Predicated region
        $region37: #{tpu_custom_call.1} parent=35 // pred_check
          %p396 = pneg %p70
        $region38: #{tpu_custom_call.1} parent=35 // pred_check_branch
          %398 = sbr.rel (%p396) target = $region40
        $region39: #{tpu_custom_call.1} parent=35 // pred_region
          %s399 = sand.u32 %s29, 1
          %s400 = scalar_lea.sflag [#allocation6], %s399
          %s401 = sand.u32 %s60, 1
          %s402 = smul.addr %s401, 2
          %s403 = scalar_lea.vmem [#allocation5], %s402
          %s405 = ssub.s32 32, 32
          %406 = vsyncadd %s400, %s405
          %s407 = smul.addr %s29, 32
          %s408 = scalar_lea.hbm %s1, %s407
          %s410 = sshll.u32 %s403, 4
          %s411 = int_to_ptr.vmem [resolvable:$true] %s410
          %413 = dma.hbm_to_vmem [thread:$0]  %s408, 32, %s411, %s400
        $region40: #{tpu_custom_call.1} parent=35 // pred_fallthru
          _
        // Predicated region
        $region41: #{tpu_custom_call.1} parent=35 // pred_check
          %p414 = pneg %p96
        $region42: #{tpu_custom_call.1} parent=35 // pred_check_branch
          %416 = sbr.rel (%p414) target = $region44
        $region43: #{tpu_custom_call.1} parent=35 // pred_region
          %p417 = scmp.lt.s32.totalorder %s29, 1
          %s418 = scalar_select %p417, %s29, 1
          %s419 = smul.addr %s418, 4
          %s420 = smul.addr %s419, 8
          %s421 = scalar_lea.vmem %s2, %s420
        $region44: #{tpu_custom_call.1} parent=35 // pred_fallthru
          _
        // Predicated region
        $region45: #{tpu_custom_call.1} parent=35 // pred_check
          %p422 = pneg %p122
        $region46: #{tpu_custom_call.1} parent=35 // pred_check_branch
          %424 = sbr.rel (%p422) target = $region48
        $region47: #{tpu_custom_call.1} parent=35 // pred_region
          %p425 = scmp.lt.s32.totalorder %s29, 1
          %s426 = scalar_select %p425, %s29, 1
          %s427 = smul.addr %s426, 4
          %s428 = smul.addr %s427, 8
          %s429 = scalar_lea.vmem %s3, %s428
        $region48: #{tpu_custom_call.1} parent=35 // pred_fallthru
          _
        // Predicated region
        $region49: #{tpu_custom_call.1} parent=35 // pred_check
          %p430 = pneg %p148
        $region50: #{tpu_custom_call.1} parent=35 // pred_check_branch
          %432 = sbr.rel (%p430) target = $region52
        $region51: #{tpu_custom_call.1} parent=35 // pred_region
          %p433 = scmp.lt.s32.totalorder %s29, 1
          %s434 = scalar_select %p433, %s29, 1
          %s435 = smul.addr %s434, 8
          %s436 = smul.addr %s435, 8
          %s437 = scalar_lea.vmem %s4, %s436
        $region52: #{tpu_custom_call.1} parent=35 // pred_fallthru
          _
        // Predicated region
        $region53: #{tpu_custom_call.1} parent=35 // pred_check
          %p438 = pneg %p174
        $region54: #{tpu_custom_call.1} parent=35 // pred_check_branch
          %440 = sbr.rel (%p438) target = $region56
        $region55: #{tpu_custom_call.1} parent=35 // pred_region
          %p441 = scmp.lt.s32.totalorder %s29, 1
          %s442 = scalar_select %p441, %s29, 1
          %s443 = smul.addr %s442, 12
          %s444 = smul.addr %s443, 8
          %s445 = scalar_lea.vmem %s5, %s444
        $region56: #{tpu_custom_call.1} parent=35 // pred_fallthru
          _
      $region36: #{tpu_custom_call.1} parent=5 // pred_fallthru
        _
      %p446 = scmp.le.s32.totalorder 1, %s29
      %p447 = scmp.lt.s32.totalorder %s29, 3
      %p448 = pnand %p446, %p447
      %p449 = pneg %p448
      // Predicated region
      $region57: #{tpu_custom_call.1} parent=5 // pred_check
        _
      $region58: #{tpu_custom_call.1} parent=5 // pred_check_branch
        %451 = sbr.rel (%p448) target = $region60
      $region59: #{tpu_custom_call.1} parent=5 // pred_region
        %s452 = ssub.s32 %s29, 1
        // Predicated region
        $region61: #{tpu_custom_call.1} parent=59 // pred_check
          %p453 = pneg %p50
        $region62: #{tpu_custom_call.1} parent=59 // pred_check_branch
          %455 = sbr.rel (%p453) target = $region64
        $region63: #{tpu_custom_call.1} parent=59 // pred_region
          %456 = dma.done [#allocation3], 256
        $region64: #{tpu_custom_call.1} parent=59 // pred_fallthru
          _
        %s457 = sand.u32 %s34, 1
        %s458 = scalar_lea.sflag [#allocation6], %s457
        %s459 = sand.u32 %s63, 1
        %s460 = smul.addr %s459, 2
        %s461 = scalar_lea.vmem [#allocation5], %s460
        // Predicated region
        $region65: #{tpu_custom_call.1} parent=59 // pred_check
          %p462 = pneg %p76
        $region66: #{tpu_custom_call.1} parent=59 // pred_check_branch
          %464 = sbr.rel (%p462) target = $region68
        $region67: #{tpu_custom_call.1} parent=59 // pred_region
          %465 = dma.done %s458, 32
        $region68: #{tpu_custom_call.1} parent=59 // pred_fallthru
          _
        // Predicated region
        $region69: #{tpu_custom_call.1} parent=59 // pred_check
          %p466 = pneg %p201
        $region70: #{tpu_custom_call.1} parent=59 // pred_check_branch
          %468 = sbr.rel (%p466) target = $region72
        $region71: #{tpu_custom_call.1} parent=59 // pred_region
          %469 = dma.done [#allocation6], 256
        $region72: #{tpu_custom_call.1} parent=59 // pred_fallthru
          _
        %p470 = pneg %p50
        %p471 = pneg %p47
        %s472 = sand.u32 %s34, 1
        %s473 = scalar_lea.sflag [#allocation6], %s472
        %s474 = sand.u32 %s63, 1
        %s475 = smul.addr %s474, 2
        %s476 = scalar_lea.vmem [#allocation5], %s475
        %p477 = pneg %p76
        %p478 = pneg %p73
        %p479 = scmp.lt.s32.totalorder %s34, 1
        %s480 = scalar_select %p479, %s34, 1
        %s481 = smul.addr %s480, 4
        %s482 = smul.addr %s481, 8
        %s483 = scalar_lea.vmem %s2, %s482
        %p484 = pneg %p102
        %p485 = pneg %p99
        %p486 = scmp.lt.s32.totalorder %s34, 1
        %s487 = scalar_select %p486, %s34, 1
        %s488 = smul.addr %s487, 4
        %s489 = smul.addr %s488, 8
        %s490 = scalar_lea.vmem %s3, %s489
        %p491 = pneg %p128
        %p492 = pneg %p125
        %p493 = scmp.lt.s32.totalorder %s34, 1
        %s494 = scalar_select %p493, %s34, 1
        %s495 = smul.addr %s494, 8
        %s496 = smul.addr %s495, 8
        %s497 = scalar_lea.vmem %s4, %s496
        %p498 = pneg %p154
        %p499 = pneg %p151
        %p500 = scmp.lt.s32.totalorder %s34, 1
        %s501 = scalar_select %p500, %s34, 1
        %s502 = smul.addr %s501, 12
        %s503 = smul.addr %s502, 8
        %s504 = scalar_lea.vmem %s5, %s503
        %p505 = pneg %p180
        %p506 = pneg %p177
        %p507 = pneg %p201
        %p508 = pneg %p198
        %p509 = pneg %p222
        %p510 = pneg %p219
        %p511 = pneg %p243
        %p512 = pneg %p240
        %p513 = pneg %p264
        %p514 = pneg %p261
        %p515 = pneg %p290
        %p516 = pneg %p287
        %s517 = sand.u32 %s277, 1
        %s518 = scalar_lea.sflag [#allocation4], %s517
        %s519 = sand.u32 %s277, 1
        %s520 = smul.addr %s519, 16
        %s521 = scalar_lea.vmem [#allocation8], %s520
        %p522 = pneg %p316
        %p523 = pneg %p313
        %s524 = sand.u32 %s303, 1
        %s525 = scalar_lea.sflag [#allocation10], %s524
        %s526 = sand.u32 %s303, 1
        %s527 = smul.addr %s526, 16
        %s528 = scalar_lea.vmem [#allocation9], %s527
        %p529 = pneg %p342
        %p530 = pneg %p339
        %p531 = scmp.lt.s32.totalorder %s34, 1
        %s532 = scalar_select %p531, %s34, 1
        %s533 = scalar_lea.vmem %s12, %s532
        %p534 = scmp.lt.s32.totalorder %s34, 1
        %s535 = scalar_select %p534, %s34, 1
        %s536 = smul.addr %s535, 4
        %s537 = smul.addr %s536, 8
        %s538 = scalar_lea.vmem %s2, %s537
        %p539 = scmp.lt.s32.totalorder %s34, 1
        %s540 = scalar_select %p539, %s34, 1
        %s541 = smul.addr %s540, 4
        %s542 = smul.addr %s541, 8
        %s543 = scalar_lea.vmem %s3, %s542
        %p544 = scmp.lt.s32.totalorder %s34, 1
        %s545 = scalar_select %p544, %s34, 1
        %s546 = smul.addr %s545, 8
        %s547 = smul.addr %s546, 8
        %s548 = scalar_lea.vmem %s4, %s547
        %p549 = scmp.lt.s32.totalorder %s34, 1
        %s550 = scalar_select %p549, %s34, 1
        %s551 = smul.addr %s550, 12
        %s552 = smul.addr %s551, 8
        %s553 = scalar_lea.vmem %s5, %s552
        %p554 = scmp.lt.s32.totalorder %s34, 1
        %s555 = scalar_select %p554, %s34, 1
        %s556 = scalar_lea.vmem %s12, %s555
        %v557 = vld [vmem:[#allocation2] sm:$0xff]
        %v558 = vld [vmem:[#allocation2 + $0x8] sm:$0xff]
        %v559 = vld [vmem:[%s461] sm:$0x1]
        %v560 = vld [vmem:[%s461 + $0x1] sm:$0x1]
        %v561 = vmul.f32 %v557, %v557
        %v562 = vmul.f32 %v558, %v558
        %vm563 = vcmask 261120
        %v564 = vsel %vm563, %v561, 0.0
        %565 = vadd.xlane.f32.xlu0 %v564
        %v566 = vpop.xlane.xlu0 %565
        %v567 = vsel %vm563, %v562, 0.0
        %568 = vadd.xlane.f32.xlu0 %v567
        %v569 = vpop.xlane.xlu0 %568
        %v570 = vrcp.pop 32.0
        %v571 = vmul.f32 %v566, %v570
        %v572 = vmul.f32 %v569, %v570
        %v573 = vadd.f32 %v571, 1e-05
        %v574 = vadd.f32 %v572, 1e-05
        %v575 = vrsqrt.pop %v573
        %v576 = vrsqrt.pop %v574
        %v577 = vmul.f32 %v557, %v575
        %v578 = vmul.f32 %v558, %v576
        %v579 = vlaneseq
        %v580 = vshrl.u32 %v579, 7
        %v581 = vsub.s32 0, %v580
        %v582 = vrot.slane %v559, %v581
        %v583 = vmul.f32 %v577, %v582
        %v584 = vmul.f32 %v578, %v582
        %v585 = vld [vmem:[%s538] sm:$0xff]
        %v586 = vld [vmem:[%s538 + $0x8] sm:$0xff]
        %v587 = vld [vmem:[%s538 + $0x10] sm:$0xff]
        %v588 = vld [vmem:[%s538 + $0x18] sm:$0xff]
        %v590 = vsel %vm563, %v583, 0
        %v593 = vsel %vm563, %v584, 0
        %595 = vmatprep.subr.mxu0 0.0
        %596 = vmatpush1.msra.mxu0 %v585
        %597 = vmatprep.subr.mxu0 0.0
        %598 = vmatpush1.msra.mxu0 %v586
        %599 = vmatprep.subr.mxu0 0.0
        %600 = vmatpush1.msra.mxu0 %v587
        %601 = vmatprep.subr.mxu0 0.0
        %602 = vmatpush1.msra.mxu0 %v588
        %603 = vmatprep.subr.mxu0 0.0
        %604 = vmatpush1.msra.mxu0 0.0
        %605 = vmatprep.subr.mxu0 0.0
        %606 = vmatpush1.msra.mxu0 0.0
        %607 = vmatprep.subr.mxu0 0.0
        %608 = vmatpush1.msra.mxu0 0.0
        %609 = vmatprep.subr.mxu0 0.0
        %610 = vmatpush1.msra.mxu0 0.0
        %611 = vmatprep.subr.mxu0 0.0
        %612 = vmatpush1.msra.mxu0 0.0
        %613 = vmatprep.subr.mxu0 0.0
        %614 = vmatpush1.msra.mxu0 0.0
        %615 = vmatprep.subr.mxu0 0.0
        %616 = vmatpush1.msra.mxu0 0.0
        %617 = vmatprep.subr.mxu0 0.0
        %618 = vmatpush1.msra.mxu0 0.0
        %619 = vmatprep.subr.mxu0 0.0
        %620 = vmatpush1.msra.mxu0 0.0
        %621 = vmatprep.subr.mxu0 0.0
        %622 = vmatpush1.msra.mxu0 0.0
        %623 = vmatprep.subr.mxu0 0.0
        %624 = vmatpush1.msra.mxu0 0.0
        %625 = vmatprep.subr.mxu0 0.0
        %626 = vmatpush1.msra.mxu0 0.0
        %627 = vmatprep.subr.mxu0 0.0
        %628 = vmatpush1.msra.mxu0 0.0
        %629 = vmatprep.subr.mxu0 0.0
        %630 = vmatpush1.msra.mxu0 0.0
        %631 = vmatprep.subr.mxu0 0.0
        %632 = vmatpush1.msra.mxu0 0.0
        %633 = vmatprep.subr.mxu0 0.0
        %634 = vmatpush1.msra.mxu0 0.0
        %635 = vmatprep.subr.mxu0 0.0
        %636 = vmatpush1.msra.mxu0 0.0
        %637 = vmatprep.subr.mxu0 0.0
        %638 = vmatpush1.msra.mxu0 0.0
        %639 = vmatprep.subr.mxu0 0.0
        %640 = vmatpush1.msra.mxu0 0.0
        %641 = vmatprep.subr.mxu0 0.0
        %642 = vmatpush1.msra.mxu0 0.0
        %643 = vmatprep.subr.mxu0 0.0
        %644 = vmatpush1.msra.mxu0 0.0
        %645 = vmatprep.subr.mxu0 0.0
        %646 = vmatpush1.msra.mxu0 0.0
        %647 = vmatprep.subr.mxu0 0.0
        %648 = vmatpush1.msra.mxu0 0.0
        %649 = vmatprep.subr.mxu0 0.0
        %650 = vmatpush1.msra.mxu0 0.0
        %651 = vmatprep.subr.mxu0 0.0
        %652 = vmatpush1.msra.mxu0 0.0
        %653 = vmatprep.subr.mxu0 0.0
        %654 = vmatpush1.msra.mxu0 0.0
        %655 = vmatprep.subr.mxu0 0.0
        %656 = vmatpush1.msra.mxu0 0.0
        %657 = vmatprep.subr.mxu0 0.0
        %658 = vmatpush1.msra.mxu0 0.0
        %659 = vmatprep.mubr.f32.mxu0 0.0
        %660 = vmatmul.mubr.f32.gmra.mrb[0].mxu0 %v590
        %v661 = vpop.f32.mrb[0].mxu0
        %v662 = vadd.f32 0.0, %v661
        %v663 = vpop.f32.mrb[0].mxu0
        %664 = vmatprep.mubr.f32.mxu0 0.0
        %665 = vmatmul.mubr.f32.gmra.mrb[0].mxu0 %v593
        %v666 = vpop.f32.mrb[0].mxu0
        %v667 = vadd.f32 0.0, %v666
        %v668 = vpop.f32.mrb[0].mxu0
        %669 = vdwg.mxu0
        %v670 = vld [vmem:[#allocation7] sm:$0xff]
        %v671 = vld [vmem:[#allocation7 + $0x8] sm:$0xff]
        %v672 = vmul.f32 %v662, %v670
        %v673 = vmul.f32 %v667, %v671
        %676 = vrot.lane.b32.xlu0 %v672, 96
        %v677 = vpop.permute.xlu0 %676
        %678 = vrot.lane.b32.xlu0 %v673, 96
        %v679 = vpop.permute.xlu0 %678
        %v682 = vadd.f32 %v672, %v677
        %v683 = vadd.f32 %v673, %v679
        %684 = vrot.lane.b32.xlu0 %v672, 112
        %v685 = vpop.permute.xlu0 %684
        %686 = vrot.lane.b32.xlu0 %v673, 112
        %v687 = vpop.permute.xlu0 %686
        %v690 = vadd.f32 %v672, %v685
        %v691 = vadd.f32 %v673, %v687
        %693 = vrot.lane.b32.xlu0 %v682, 120
        %v694 = vpop.permute.xlu0 %693
        %695 = vrot.lane.b32.xlu0 %v682, 112
        %v696 = vpop.permute.xlu0 %695
        %697 = vrot.lane.b32.xlu0 %v682, 104
        %v698 = vpop.permute.xlu0 %697
        %700 = vrot.lane.b32.xlu0 %v683, 120
        %v701 = vpop.permute.xlu0 %700
        %702 = vrot.lane.b32.xlu0 %v683, 112
        %v703 = vpop.permute.xlu0 %702
        %704 = vrot.lane.b32.xlu0 %v683, 104
        %v705 = vpop.permute.xlu0 %704
        %707 = vrot.lane.b32.xlu0 %v690, 120
        %v708 = vpop.permute.xlu0 %707
        %710 = vrot.lane.b32.xlu0 %v691, 120
        %v711 = vpop.permute.xlu0 %710
        %713 = vrot.lane.b32.xlu0 %v662, 120
        %v714 = vpop.permute.xlu0 %713
        %716 = vrot.lane.b32.xlu0 %v667, 120
        %v717 = vpop.permute.xlu0 %716
        %718 = vrot.lane.b32.xlu0 %v690, 64
        %v719 = vpop.permute.xlu0 %718
        %vm720 = vcmask 64512
        %v721 = vsel %vm720, %v682, 0
        %v723 = vsel %vm720, %v719, 0
        %725 = vmatprep.subr.mxu0 0.0
        %726 = vmatpush1.xpose.msra.mxu0 %v723
        %727 = vmatprep.subr.mxu0 0.0
        %728 = vmatpush1.xpose.msra.mxu0 0.0
        %729 = vmatprep.subr.mxu0 0.0
        %730 = vmatpush1.xpose.msra.mxu0 0.0
        %731 = vmatprep.subr.mxu0 0.0
        %732 = vmatpush1.xpose.msra.mxu0 0.0
        %733 = vmatprep.subr.mxu0 0.0
        %734 = vmatpush1.xpose.msra.mxu0 0.0
        %735 = vmatprep.subr.mxu0 0.0
        %736 = vmatpush1.xpose.msra.mxu0 0.0
        %737 = vmatprep.subr.mxu0 0.0
        %738 = vmatpush1.xpose.msra.mxu0 0.0
        %739 = vmatprep.subr.mxu0 0.0
        %740 = vmatpush1.xpose.msra.mxu0 0.0
        %741 = vmatprep.subr.mxu0 0.0
        %742 = vmatpush1.xpose.msra.mxu0 0.0
        %743 = vmatprep.subr.mxu0 0.0
        %744 = vmatpush1.xpose.msra.mxu0 0.0
        %745 = vmatprep.subr.mxu0 0.0
        %746 = vmatpush1.xpose.msra.mxu0 0.0
        %747 = vmatprep.subr.mxu0 0.0
        %748 = vmatpush1.xpose.msra.mxu0 0.0
        %749 = vmatprep.subr.mxu0 0.0
        %750 = vmatpush1.xpose.msra.mxu0 0.0
        %751 = vmatprep.subr.mxu0 0.0
        %752 = vmatpush1.xpose.msra.mxu0 0.0
        %753 = vmatprep.subr.mxu0 0.0
        %754 = vmatpush1.xpose.msra.mxu0 0.0
        %755 = vmatprep.subr.mxu0 0.0
        %756 = vmatpush1.xpose.msra.mxu0 0.0
        %757 = vmatprep.subr.mxu0 0.0
        %758 = vmatpush1.xpose.msra.mxu0 0.0
        %759 = vmatprep.subr.mxu0 0.0
        %760 = vmatpush1.xpose.msra.mxu0 0.0
        %761 = vmatprep.subr.mxu0 0.0
        %762 = vmatpush1.xpose.msra.mxu0 0.0
        %763 = vmatprep.subr.mxu0 0.0
        %764 = vmatpush1.xpose.msra.mxu0 0.0
        %765 = vmatprep.subr.mxu0 0.0
        %766 = vmatpush1.xpose.msra.mxu0 0.0
        %767 = vmatprep.subr.mxu0 0.0
        %768 = vmatpush1.xpose.msra.mxu0 0.0
        %769 = vmatprep.subr.mxu0 0.0
        %770 = vmatpush1.xpose.msra.mxu0 0.0
        %771 = vmatprep.subr.mxu0 0.0
        %772 = vmatpush1.xpose.msra.mxu0 0.0
        %773 = vmatprep.subr.mxu0 0.0
        %774 = vmatpush1.xpose.msra.mxu0 0.0
        %775 = vmatprep.subr.mxu0 0.0
        %776 = vmatpush1.xpose.msra.mxu0 0.0
        %777 = vmatprep.subr.mxu0 0.0
        %778 = vmatpush1.xpose.msra.mxu0 0.0
        %779 = vmatprep.subr.mxu0 0.0
        %780 = vmatpush1.xpose.msra.mxu0 0.0
        %781 = vmatprep.subr.mxu0 0.0
        %782 = vmatpush1.xpose.msra.mxu0 0.0
        %783 = vmatprep.subr.mxu0 0.0
        %784 = vmatpush1.xpose.msra.mxu0 0.0
        %785 = vmatprep.subr.mxu0 0.0
        %786 = vmatpush1.xpose.msra.mxu0 0.0
        %787 = vmatprep.subr.mxu0 0.0
        %788 = vmatpush1.xpose.msra.mxu0 0.0
        %789 = vmatprep.mubr.f32.mxu0 0.0
        %790 = vmatmul.mubr.f32.gmra.mrb[0].mxu0 %v721
        %v791 = vpop.f32.mrb[0].mxu0
        %v792 = vadd.f32 0.0, %v791
        %v793 = vpop.f32.mrb[0].mxu0
        %794 = vdwg.mxu0
        %v795 = vsel %vm720, %v694, 0
        %797 = vmatprep.subr.mxu0 0.0
        %798 = vmatpush1.xpose.msra.mxu0 %v723
        %799 = vmatprep.subr.mxu0 0.0
        %800 = vmatpush1.xpose.msra.mxu0 0.0
        %801 = vmatprep.subr.mxu0 0.0
        %802 = vmatpush1.xpose.msra.mxu0 0.0
        %803 = vmatprep.subr.mxu0 0.0
        %804 = vmatpush1.xpose.msra.mxu0 0.0
        %805 = vmatprep.subr.mxu0 0.0
        %806 = vmatpush1.xpose.msra.mxu0 0.0
        %807 = vmatprep.subr.mxu0 0.0
        %808 = vmatpush1.xpose.msra.mxu0 0.0
        %809 = vmatprep.subr.mxu0 0.0
        %810 = vmatpush1.xpose.msra.mxu0 0.0
        %811 = vmatprep.subr.mxu0 0.0
        %812 = vmatpush1.xpose.msra.mxu0 0.0
        %813 = vmatprep.subr.mxu0 0.0
        %814 = vmatpush1.xpose.msra.mxu0 0.0
        %815 = vmatprep.subr.mxu0 0.0
        %816 = vmatpush1.xpose.msra.mxu0 0.0
        %817 = vmatprep.subr.mxu0 0.0
        %818 = vmatpush1.xpose.msra.mxu0 0.0
        %819 = vmatprep.subr.mxu0 0.0
        %820 = vmatpush1.xpose.msra.mxu0 0.0
        %821 = vmatprep.subr.mxu0 0.0
        %822 = vmatpush1.xpose.msra.mxu0 0.0
        %823 = vmatprep.subr.mxu0 0.0
        %824 = vmatpush1.xpose.msra.mxu0 0.0
        %825 = vmatprep.subr.mxu0 0.0
        %826 = vmatpush1.xpose.msra.mxu0 0.0
        %827 = vmatprep.subr.mxu0 0.0
        %828 = vmatpush1.xpose.msra.mxu0 0.0
        %829 = vmatprep.subr.mxu0 0.0
        %830 = vmatpush1.xpose.msra.mxu0 0.0
        %831 = vmatprep.subr.mxu0 0.0
        %832 = vmatpush1.xpose.msra.mxu0 0.0
        %833 = vmatprep.subr.mxu0 0.0
        %834 = vmatpush1.xpose.msra.mxu0 0.0
        %835 = vmatprep.subr.mxu0 0.0
        %836 = vmatpush1.xpose.msra.mxu0 0.0
        %837 = vmatprep.subr.mxu0 0.0
        %838 = vmatpush1.xpose.msra.mxu0 0.0
        %839 = vmatprep.subr.mxu0 0.0
        %840 = vmatpush1.xpose.msra.mxu0 0.0
        %841 = vmatprep.subr.mxu0 0.0
        %842 = vmatpush1.xpose.msra.mxu0 0.0
        %843 = vmatprep.subr.mxu0 0.0
        %844 = vmatpush1.xpose.msra.mxu0 0.0
        %845 = vmatprep.subr.mxu0 0.0
        %846 = vmatpush1.xpose.msra.mxu0 0.0
        %847 = vmatprep.subr.mxu0 0.0
        %848 = vmatpush1.xpose.msra.mxu0 0.0
        %849 = vmatprep.subr.mxu0 0.0
        %850 = vmatpush1.xpose.msra.mxu0 0.0
        %851 = vmatprep.subr.mxu0 0.0
        %852 = vmatpush1.xpose.msra.mxu0 0.0
        %853 = vmatprep.subr.mxu0 0.0
        %854 = vmatpush1.xpose.msra.mxu0 0.0
        %855 = vmatprep.subr.mxu0 0.0
        %856 = vmatpush1.xpose.msra.mxu0 0.0
        %857 = vmatprep.subr.mxu0 0.0
        %858 = vmatpush1.xpose.msra.mxu0 0.0
        %859 = vmatprep.subr.mxu0 0.0
        %860 = vmatpush1.xpose.msra.mxu0 0.0
        %861 = vmatprep.mubr.f32.mxu0 0.0
        %862 = vmatmul.mubr.f32.gmra.mrb[0].mxu0 %v795
        %v863 = vpop.f32.mrb[0].mxu0
        %v864 = vadd.f32 0.0, %v863
        %v865 = vpop.f32.mrb[0].mxu0
        %866 = vdwg.mxu0
        %867 = vrot.lane.b32.xlu0 %v708, 64
        %v868 = vpop.permute.xlu0 %867
        %v869 = vsel %vm720, %v696, 0
        %v871 = vsel %vm720, %v868, 0
        %873 = vmatprep.subr.mxu0 0.0
        %874 = vmatpush1.xpose.msra.mxu0 %v871
        %875 = vmatprep.subr.mxu0 0.0
        %876 = vmatpush1.xpose.msra.mxu0 0.0
        %877 = vmatprep.subr.mxu0 0.0
        %878 = vmatpush1.xpose.msra.mxu0 0.0
        %879 = vmatprep.subr.mxu0 0.0
        %880 = vmatpush1.xpose.msra.mxu0 0.0
        %881 = vmatprep.subr.mxu0 0.0
        %882 = vmatpush1.xpose.msra.mxu0 0.0
        %883 = vmatprep.subr.mxu0 0.0
        %884 = vmatpush1.xpose.msra.mxu0 0.0
        %885 = vmatprep.subr.mxu0 0.0
        %886 = vmatpush1.xpose.msra.mxu0 0.0
        %887 = vmatprep.subr.mxu0 0.0
        %888 = vmatpush1.xpose.msra.mxu0 0.0
        %889 = vmatprep.subr.mxu0 0.0
        %890 = vmatpush1.xpose.msra.mxu0 0.0
        %891 = vmatprep.subr.mxu0 0.0
        %892 = vmatpush1.xpose.msra.mxu0 0.0
        %893 = vmatprep.subr.mxu0 0.0
        %894 = vmatpush1.xpose.msra.mxu0 0.0
        %895 = vmatprep.subr.mxu0 0.0
        %896 = vmatpush1.xpose.msra.mxu0 0.0
        %897 = vmatprep.subr.mxu0 0.0
        %898 = vmatpush1.xpose.msra.mxu0 0.0
        %899 = vmatprep.subr.mxu0 0.0
        %900 = vmatpush1.xpose.msra.mxu0 0.0
        %901 = vmatprep.subr.mxu0 0.0
        %902 = vmatpush1.xpose.msra.mxu0 0.0
        %903 = vmatprep.subr.mxu0 0.0
        %904 = vmatpush1.xpose.msra.mxu0 0.0
        %905 = vmatprep.subr.mxu0 0.0
        %906 = vmatpush1.xpose.msra.mxu0 0.0
        %907 = vmatprep.subr.mxu0 0.0
        %908 = vmatpush1.xpose.msra.mxu0 0.0
        %909 = vmatprep.subr.mxu0 0.0
        %910 = vmatpush1.xpose.msra.mxu0 0.0
        %911 = vmatprep.subr.mxu0 0.0
        %912 = vmatpush1.xpose.msra.mxu0 0.0
        %913 = vmatprep.subr.mxu0 0.0
        %914 = vmatpush1.xpose.msra.mxu0 0.0
        %915 = vmatprep.subr.mxu0 0.0
        %916 = vmatpush1.xpose.msra.mxu0 0.0
        %917 = vmatprep.subr.mxu0 0.0
        %918 = vmatpush1.xpose.msra.mxu0 0.0
        %919 = vmatprep.subr.mxu0 0.0
        %920 = vmatpush1.xpose.msra.mxu0 0.0
        %921 = vmatprep.subr.mxu0 0.0
        %922 = vmatpush1.xpose.msra.mxu0 0.0
        %923 = vmatprep.subr.mxu0 0.0
        %924 = vmatpush1.xpose.msra.mxu0 0.0
        %925 = vmatprep.subr.mxu0 0.0
        %926 = vmatpush1.xpose.msra.mxu0 0.0
        %927 = vmatprep.subr.mxu0 0.0
        %928 = vmatpush1.xpose.msra.mxu0 0.0
        %929 = vmatprep.subr.mxu0 0.0
        %930 = vmatpush1.xpose.msra.mxu0 0.0
        %931 = vmatprep.subr.mxu0 0.0
        %932 = vmatpush1.xpose.msra.mxu0 0.0
        %933 = vmatprep.subr.mxu0 0.0
        %934 = vmatpush1.xpose.msra.mxu0 0.0
        %935 = vmatprep.subr.mxu0 0.0
        %936 = vmatpush1.xpose.msra.mxu0 0.0
        %937 = vmatprep.mubr.f32.mxu0 0.0
        %938 = vmatmul.mubr.f32.gmra.mrb[0].mxu0 %v869
        %v939 = vpop.f32.mrb[0].mxu0
        %v940 = vadd.f32 0.0, %v939
        %v941 = vpop.f32.mrb[0].mxu0
        %942 = vdwg.mxu0
        %v943 = vsel %vm720, %v698, 0
        %945 = vmatprep.subr.mxu0 0.0
        %946 = vmatpush1.xpose.msra.mxu0 %v871
        %947 = vmatprep.subr.mxu0 0.0
        %948 = vmatpush1.xpose.msra.mxu0 0.0
        %949 = vmatprep.subr.mxu0 0.0
        %950 = vmatpush1.xpose.msra.mxu0 0.0
        %951 = vmatprep.subr.mxu0 0.0
        %952 = vmatpush1.xpose.msra.mxu0 0.0
        %953 = vmatprep.subr.mxu0 0.0
        %954 = vmatpush1.xpose.msra.mxu0 0.0
        %955 = vmatprep.subr.mxu0 0.0
        %956 = vmatpush1.xpose.msra.mxu0 0.0
        %957 = vmatprep.subr.mxu0 0.0
        %958 = vmatpush1.xpose.msra.mxu0 0.0
        %959 = vmatprep.subr.mxu0 0.0
        %960 = vmatpush1.xpose.msra.mxu0 0.0
        %961 = vmatprep.subr.mxu0 0.0
        %962 = vmatpush1.xpose.msra.mxu0 0.0
        %963 = vmatprep.subr.mxu0 0.0
        %964 = vmatpush1.xpose.msra.mxu0 0.0
        %965 = vmatprep.subr.mxu0 0.0
        %966 = vmatpush1.xpose.msra.mxu0 0.0
        %967 = vmatprep.subr.mxu0 0.0
        %968 = vmatpush1.xpose.msra.mxu0 0.0
        %969 = vmatprep.subr.mxu0 0.0
        %970 = vmatpush1.xpose.msra.mxu0 0.0
        %971 = vmatprep.subr.mxu0 0.0
        %972 = vmatpush1.xpose.msra.mxu0 0.0
        %973 = vmatprep.subr.mxu0 0.0
        %974 = vmatpush1.xpose.msra.mxu0 0.0
        %975 = vmatprep.subr.mxu0 0.0
        %976 = vmatpush1.xpose.msra.mxu0 0.0
        %977 = vmatprep.subr.mxu0 0.0
        %978 = vmatpush1.xpose.msra.mxu0 0.0
        %979 = vmatprep.subr.mxu0 0.0
        %980 = vmatpush1.xpose.msra.mxu0 0.0
        %981 = vmatprep.subr.mxu0 0.0
        %982 = vmatpush1.xpose.msra.mxu0 0.0
        %983 = vmatprep.subr.mxu0 0.0
        %984 = vmatpush1.xpose.msra.mxu0 0.0
        %985 = vmatprep.subr.mxu0 0.0
        %986 = vmatpush1.xpose.msra.mxu0 0.0
        %987 = vmatprep.subr.mxu0 0.0
        %988 = vmatpush1.xpose.msra.mxu0 0.0
        %989 = vmatprep.subr.mxu0 0.0
        %990 = vmatpush1.xpose.msra.mxu0 0.0
        %991 = vmatprep.subr.mxu0 0.0
        %992 = vmatpush1.xpose.msra.mxu0 0.0
        %993 = vmatprep.subr.mxu0 0.0
        %994 = vmatpush1.xpose.msra.mxu0 0.0
        %995 = vmatprep.subr.mxu0 0.0
        %996 = vmatpush1.xpose.msra.mxu0 0.0
        %997 = vmatprep.subr.mxu0 0.0
        %998 = vmatpush1.xpose.msra.mxu0 0.0
        %999 = vmatprep.subr.mxu0 0.0
        %1000 = vmatpush1.xpose.msra.mxu0 0.0
        %1001 = vmatprep.subr.mxu0 0.0
        %1002 = vmatpush1.xpose.msra.mxu0 0.0
        %1003 = vmatprep.subr.mxu0 0.0
        %1004 = vmatpush1.xpose.msra.mxu0 0.0
        %1005 = vmatprep.subr.mxu0 0.0
        %1006 = vmatpush1.xpose.msra.mxu0 0.0
        %1007 = vmatprep.subr.mxu0 0.0
        %1008 = vmatpush1.xpose.msra.mxu0 0.0
        %1009 = vmatprep.mubr.f32.mxu0 0.0
        %1010 = vmatmul.mubr.f32.gmra.mrb[0].mxu0 %v943
        %v1011 = vpop.f32.mrb[0].mxu0
        %v1012 = vadd.f32 0.0, %v1011
        %v1013 = vpop.f32.mrb[0].mxu0
        %1014 = vdwg.mxu0
        %1015 = vrot.lane.b32.xlu0 %v691, 64
        %v1016 = vpop.permute.xlu0 %1015
        %v1017 = vsel %vm720, %v683, 0
        %v1019 = vsel %vm720, %v1016, 0
        %1021 = vmatprep.subr.mxu0 0.0
        %1022 = vmatpush1.xpose.msra.mxu0 %v1019
        %1023 = vmatprep.subr.mxu0 0.0
        %1024 = vmatpush1.xpose.msra.mxu0 0.0
        %1025 = vmatprep.subr.mxu0 0.0
        %1026 = vmatpush1.xpose.msra.mxu0 0.0
        %1027 = vmatprep.subr.mxu0 0.0
        %1028 = vmatpush1.xpose.msra.mxu0 0.0
        %1029 = vmatprep.subr.mxu0 0.0
        %1030 = vmatpush1.xpose.msra.mxu0 0.0
        %1031 = vmatprep.subr.mxu0 0.0
        %1032 = vmatpush1.xpose.msra.mxu0 0.0
        %1033 = vmatprep.subr.mxu0 0.0
        %1034 = vmatpush1.xpose.msra.mxu0 0.0
        %1035 = vmatprep.subr.mxu0 0.0
        %1036 = vmatpush1.xpose.msra.mxu0 0.0
        %1037 = vmatprep.subr.mxu0 0.0
        %1038 = vmatpush1.xpose.msra.mxu0 0.0
        %1039 = vmatprep.subr.mxu0 0.0
        %1040 = vmatpush1.xpose.msra.mxu0 0.0
        %1041 = vmatprep.subr.mxu0 0.0
        %1042 = vmatpush1.xpose.msra.mxu0 0.0
        %1043 = vmatprep.subr.mxu0 0.0
        %1044 = vmatpush1.xpose.msra.mxu0 0.0
        %1045 = vmatprep.subr.mxu0 0.0
        %1046 = vmatpush1.xpose.msra.mxu0 0.0
        %1047 = vmatprep.subr.mxu0 0.0
        %1048 = vmatpush1.xpose.msra.mxu0 0.0
        %1049 = vmatprep.subr.mxu0 0.0
        %1050 = vmatpush1.xpose.msra.mxu0 0.0
        %1051 = vmatprep.subr.mxu0 0.0
        %1052 = vmatpush1.xpose.msra.mxu0 0.0
        %1053 = vmatprep.subr.mxu0 0.0
        %1054 = vmatpush1.xpose.msra.mxu0 0.0
        %1055 = vmatprep.subr.mxu0 0.0
        %1056 = vmatpush1.xpose.msra.mxu0 0.0
        %1057 = vmatprep.subr.mxu0 0.0
        %1058 = vmatpush1.xpose.msra.mxu0 0.0
        %1059 = vmatprep.subr.mxu0 0.0
        %1060 = vmatpush1.xpose.msra.mxu0 0.0
        %1061 = vmatprep.subr.mxu0 0.0
        %1062 = vmatpush1.xpose.msra.mxu0 0.0
        %1063 = vmatprep.subr.mxu0 0.0
        %1064 = vmatpush1.xpose.msra.mxu0 0.0
        %1065 = vmatprep.subr.mxu0 0.0
        %1066 = vmatpush1.xpose.msra.mxu0 0.0
        %1067 = vmatprep.subr.mxu0 0.0
        %1068 = vmatpush1.xpose.msra.mxu0 0.0
        %1069 = vmatprep.subr.mxu0 0.0
        %1070 = vmatpush1.xpose.msra.mxu0 0.0
        %1071 = vmatprep.subr.mxu0 0.0
        %1072 = vmatpush1.xpose.msra.mxu0 0.0
        %1073 = vmatprep.subr.mxu0 0.0
        %1074 = vmatpush1.xpose.msra.mxu0 0.0
        %1075 = vmatprep.subr.mxu0 0.0
        %1076 = vmatpush1.xpose.msra.mxu0 0.0
        %1077 = vmatprep.subr.mxu0 0.0
        %1078 = vmatpush1.xpose.msra.mxu0 0.0
        %1079 = vmatprep.subr.mxu0 0.0
        %1080 = vmatpush1.xpose.msra.mxu0 0.0
        %1081 = vmatprep.subr.mxu0 0.0
        %1082 = vmatpush1.xpose.msra.mxu0 0.0
        %1083 = vmatprep.subr.mxu0 0.0
        %1084 = vmatpush1.xpose.msra.mxu0 0.0
        %1085 = vmatprep.mubr.f32.mxu0 0.0
        %1086 = vmatmul.mubr.f32.gmra.mrb[0].mxu0 %v1017
        %v1087 = vpop.f32.mrb[0].mxu0
        %v1088 = vadd.f32 0.0, %v1087
        %v1089 = vpop.f32.mrb[0].mxu0
        %1090 = vdwg.mxu0
        %v1091 = vsel %vm720, %v701, 0
        %1093 = vmatprep.subr.mxu0 0.0
        %1094 = vmatpush1.xpose.msra.mxu0 %v1019
        %1095 = vmatprep.subr.mxu0 0.0
        %1096 = vmatpush1.xpose.msra.mxu0 0.0
        %1097 = vmatprep.subr.mxu0 0.0
        %1098 = vmatpush1.xpose.msra.mxu0 0.0
        %1099 = vmatprep.subr.mxu0 0.0
        %1100 = vmatpush1.xpose.msra.mxu0 0.0
        %1101 = vmatprep.subr.mxu0 0.0
        %1102 = vmatpush1.xpose.msra.mxu0 0.0
        %1103 = vmatprep.subr.mxu0 0.0
        %1104 = vmatpush1.xpose.msra.mxu0 0.0
        %1105 = vmatprep.subr.mxu0 0.0
        %1106 = vmatpush1.xpose.msra.mxu0 0.0
        %1107 = vmatprep.subr.mxu0 0.0
        %1108 = vmatpush1.xpose.msra.mxu0 0.0
        %1109 = vmatprep.subr.mxu0 0.0
        %1110 = vmatpush1.xpose.msra.mxu0 0.0
        %1111 = vmatprep.subr.mxu0 0.0
        %1112 = vmatpush1.xpose.msra.mxu0 0.0
        %1113 = vmatprep.subr.mxu0 0.0
        %1114 = vmatpush1.xpose.msra.mxu0 0.0
        %1115 = vmatprep.subr.mxu0 0.0
        %1116 = vmatpush1.xpose.msra.mxu0 0.0
        %1117 = vmatprep.subr.mxu0 0.0
        %1118 = vmatpush1.xpose.msra.mxu0 0.0
        %1119 = vmatprep.subr.mxu0 0.0
        %1120 = vmatpush1.xpose.msra.mxu0 0.0
        %1121 = vmatprep.subr.mxu0 0.0
        %1122 = vmatpush1.xpose.msra.mxu0 0.0
        %1123 = vmatprep.subr.mxu0 0.0
        %1124 = vmatpush1.xpose.msra.mxu0 0.0
        %1125 = vmatprep.subr.mxu0 0.0
        %1126 = vmatpush1.xpose.msra.mxu0 0.0
        %1127 = vmatprep.subr.mxu0 0.0
        %1128 = vmatpush1.xpose.msra.mxu0 0.0
        %1129 = vmatprep.subr.mxu0 0.0
        %1130 = vmatpush1.xpose.msra.mxu0 0.0
        %1131 = vmatprep.subr.mxu0 0.0
        %1132 = vmatpush1.xpose.msra.mxu0 0.0
        %1133 = vmatprep.subr.mxu0 0.0
        %1134 = vmatpush1.xpose.msra.mxu0 0.0
        %1135 = vmatprep.subr.mxu0 0.0
        %1136 = vmatpush1.xpose.msra.mxu0 0.0
        %1137 = vmatprep.subr.mxu0 0.0
        %1138 = vmatpush1.xpose.msra.mxu0 0.0
        %1139 = vmatprep.subr.mxu0 0.0
        %1140 = vmatpush1.xpose.msra.mxu0 0.0
        %1141 = vmatprep.subr.mxu0 0.0
        %1142 = vmatpush1.xpose.msra.mxu0 0.0
        %1143 = vmatprep.subr.mxu0 0.0
        %1144 = vmatpush1.xpose.msra.mxu0 0.0
        %1145 = vmatprep.subr.mxu0 0.0
        %1146 = vmatpush1.xpose.msra.mxu0 0.0
        %1147 = vmatprep.subr.mxu0 0.0
        %1148 = vmatpush1.xpose.msra.mxu0 0.0
        %1149 = vmatprep.subr.mxu0 0.0
        %1150 = vmatpush1.xpose.msra.mxu0 0.0
        %1151 = vmatprep.subr.mxu0 0.0
        %1152 = vmatpush1.xpose.msra.mxu0 0.0
        %1153 = vmatprep.subr.mxu0 0.0
        %1154 = vmatpush1.xpose.msra.mxu0 0.0
        %1155 = vmatprep.subr.mxu0 0.0
        %1156 = vmatpush1.xpose.msra.mxu0 0.0
        %1157 = vmatprep.mubr.f32.mxu0 0.0
        %1158 = vmatmul.mubr.f32.gmra.mrb[0].mxu0 %v1091
        %v1159 = vpop.f32.mrb[0].mxu0
        %v1160 = vadd.f32 0.0, %v1159
        %v1161 = vpop.f32.mrb[0].mxu0
        %1162 = vdwg.mxu0
        %1163 = vrot.lane.b32.xlu0 %v711, 64
        %v1164 = vpop.permute.xlu0 %1163
        %v1165 = vsel %vm720, %v703, 0
        %v1167 = vsel %vm720, %v1164, 0
        %1169 = vmatprep.subr.mxu0 0.0
        %1170 = vmatpush1.xpose.msra.mxu0 %v1167
        %1171 = vmatprep.subr.mxu0 0.0
        %1172 = vmatpush1.xpose.msra.mxu0 0.0
        %1173 = vmatprep.subr.mxu0 0.0
        %1174 = vmatpush1.xpose.msra.mxu0 0.0
        %1175 = vmatprep.subr.mxu0 0.0
        %1176 = vmatpush1.xpose.msra.mxu0 0.0
        %1177 = vmatprep.subr.mxu0 0.0
        %1178 = vmatpush1.xpose.msra.mxu0 0.0
        %1179 = vmatprep.subr.mxu0 0.0
        %1180 = vmatpush1.xpose.msra.mxu0 0.0
        %1181 = vmatprep.subr.mxu0 0.0
        %1182 = vmatpush1.xpose.msra.mxu0 0.0
        %1183 = vmatprep.subr.mxu0 0.0
        %1184 = vmatpush1.xpose.msra.mxu0 0.0
        %1185 = vmatprep.subr.mxu0 0.0
        %1186 = vmatpush1.xpose.msra.mxu0 0.0
        %1187 = vmatprep.subr.mxu0 0.0
        %1188 = vmatpush1.xpose.msra.mxu0 0.0
        %1189 = vmatprep.subr.mxu0 0.0
        %1190 = vmatpush1.xpose.msra.mxu0 0.0
        %1191 = vmatprep.subr.mxu0 0.0
        %1192 = vmatpush1.xpose.msra.mxu0 0.0
        %1193 = vmatprep.subr.mxu0 0.0
        %1194 = vmatpush1.xpose.msra.mxu0 0.0
        %1195 = vmatprep.subr.mxu0 0.0
        %1196 = vmatpush1.xpose.msra.mxu0 0.0
        %1197 = vmatprep.subr.mxu0 0.0
        %1198 = vmatpush1.xpose.msra.mxu0 0.0
        %1199 = vmatprep.subr.mxu0 0.0
        %1200 = vmatpush1.xpose.msra.mxu0 0.0
        %1201 = vmatprep.subr.mxu0 0.0
        %1202 = vmatpush1.xpose.msra.mxu0 0.0
        %1203 = vmatprep.subr.mxu0 0.0
        %1204 = vmatpush1.xpose.msra.mxu0 0.0
        %1205 = vmatprep.subr.mxu0 0.0
        %1206 = vmatpush1.xpose.msra.mxu0 0.0
        %1207 = vmatprep.subr.mxu0 0.0
        %1208 = vmatpush1.xpose.msra.mxu0 0.0
        %1209 = vmatprep.subr.mxu0 0.0
        %1210 = vmatpush1.xpose.msra.mxu0 0.0
        %1211 = vmatprep.subr.mxu0 0.0
        %1212 = vmatpush1.xpose.msra.mxu0 0.0
        %1213 = vmatprep.subr.mxu0 0.0
        %1214 = vmatpush1.xpose.msra.mxu0 0.0
        %1215 = vmatprep.subr.mxu0 0.0
        %1216 = vmatpush1.xpose.msra.mxu0 0.0
        %1217 = vmatprep.subr.mxu0 0.0
        %1218 = vmatpush1.xpose.msra.mxu0 0.0
        %1219 = vmatprep.subr.mxu0 0.0
        %1220 = vmatpush1.xpose.msra.mxu0 0.0
        %1221 = vmatprep.subr.mxu0 0.0
        %1222 = vmatpush1.xpose.msra.mxu0 0.0
        %1223 = vmatprep.subr.mxu0 0.0
        %1224 = vmatpush1.xpose.msra.mxu0 0.0
        %1225 = vmatprep.subr.mxu0 0.0
        %1226 = vmatpush1.xpose.msra.mxu0 0.0
        %1227 = vmatprep.subr.mxu0 0.0
        %1228 = vmatpush1.xpose.msra.mxu0 0.0
        %1229 = vmatprep.subr.mxu0 0.0
        %1230 = vmatpush1.xpose.msra.mxu0 0.0
        %1231 = vmatprep.subr.mxu0 0.0
        %1232 = vmatpush1.xpose.msra.mxu0 0.0
        %1233 = vmatprep.mubr.f32.mxu0 0.0
        %1234 = vmatmul.mubr.f32.gmra.mrb[0].mxu0 %v1165
        %v1235 = vpop.f32.mrb[0].mxu0
        %v1236 = vadd.f32 0.0, %v1235
        %v1237 = vpop.f32.mrb[0].mxu0
        %1238 = vdwg.mxu0
        %v1239 = vsel %vm720, %v705, 0
        %1241 = vmatprep.subr.mxu0 0.0
        %1242 = vmatpush1.xpose.msra.mxu0 %v1167
        %1243 = vmatprep.subr.mxu0 0.0
        %1244 = vmatpush1.xpose.msra.mxu0 0.0
        %1245 = vmatprep.subr.mxu0 0.0
        %1246 = vmatpush1.xpose.msra.mxu0 0.0
        %1247 = vmatprep.subr.mxu0 0.0
        %1248 = vmatpush1.xpose.msra.mxu0 0.0
        %1249 = vmatprep.subr.mxu0 0.0
        %1250 = vmatpush1.xpose.msra.mxu0 0.0
        %1251 = vmatprep.subr.mxu0 0.0
        %1252 = vmatpush1.xpose.msra.mxu0 0.0
        %1253 = vmatprep.subr.mxu0 0.0
        %1254 = vmatpush1.xpose.msra.mxu0 0.0
        %1255 = vmatprep.subr.mxu0 0.0
        %1256 = vmatpush1.xpose.msra.mxu0 0.0
        %1257 = vmatprep.subr.mxu0 0.0
        %1258 = vmatpush1.xpose.msra.mxu0 0.0
        %1259 = vmatprep.subr.mxu0 0.0
        %1260 = vmatpush1.xpose.msra.mxu0 0.0
        %1261 = vmatprep.subr.mxu0 0.0
        %1262 = vmatpush1.xpose.msra.mxu0 0.0
        %1263 = vmatprep.subr.mxu0 0.0
        %1264 = vmatpush1.xpose.msra.mxu0 0.0
        %1265 = vmatprep.subr.mxu0 0.0
        %1266 = vmatpush1.xpose.msra.mxu0 0.0
        %1267 = vmatprep.subr.mxu0 0.0
        %1268 = vmatpush1.xpose.msra.mxu0 0.0
        %1269 = vmatprep.subr.mxu0 0.0
        %1270 = vmatpush1.xpose.msra.mxu0 0.0
        %1271 = vmatprep.subr.mxu0 0.0
        %1272 = vmatpush1.xpose.msra.mxu0 0.0
        %1273 = vmatprep.subr.mxu0 0.0
        %1274 = vmatpush1.xpose.msra.mxu0 0.0
        %1275 = vmatprep.subr.mxu0 0.0
        %1276 = vmatpush1.xpose.msra.mxu0 0.0
        %1277 = vmatprep.subr.mxu0 0.0
        %1278 = vmatpush1.xpose.msra.mxu0 0.0
        %1279 = vmatprep.subr.mxu0 0.0
        %1280 = vmatpush1.xpose.msra.mxu0 0.0
        %1281 = vmatprep.subr.mxu0 0.0
        %1282 = vmatpush1.xpose.msra.mxu0 0.0
        %1283 = vmatprep.subr.mxu0 0.0
        %1284 = vmatpush1.xpose.msra.mxu0 0.0
        %1285 = vmatprep.subr.mxu0 0.0
        %1286 = vmatpush1.xpose.msra.mxu0 0.0
        %1287 = vmatprep.subr.mxu0 0.0
        %1288 = vmatpush1.xpose.msra.mxu0 0.0
        %1289 = vmatprep.subr.mxu0 0.0
        %1290 = vmatpush1.xpose.msra.mxu0 0.0
        %1291 = vmatprep.subr.mxu0 0.0
        %1292 = vmatpush1.xpose.msra.mxu0 0.0
        %1293 = vmatprep.subr.mxu0 0.0
        %1294 = vmatpush1.xpose.msra.mxu0 0.0
        %1295 = vmatprep.subr.mxu0 0.0
        %1296 = vmatpush1.xpose.msra.mxu0 0.0
        %1297 = vmatprep.subr.mxu0 0.0
        %1298 = vmatpush1.xpose.msra.mxu0 0.0
        %1299 = vmatprep.subr.mxu0 0.0
        %1300 = vmatpush1.xpose.msra.mxu0 0.0
        %1301 = vmatprep.subr.mxu0 0.0
        %1302 = vmatpush1.xpose.msra.mxu0 0.0
        %1303 = vmatprep.subr.mxu0 0.0
        %1304 = vmatpush1.xpose.msra.mxu0 0.0
        %1305 = vmatprep.mubr.f32.mxu0 0.0
        %1306 = vmatmul.mubr.f32.gmra.mrb[0].mxu0 %v1239
        %v1307 = vpop.f32.mrb[0].mxu0
        %v1308 = vadd.f32 0.0, %v1307
        %v1309 = vpop.f32.mrb[0].mxu0
        %1310 = vdwg.mxu0
        %v1311 = vsel %vm720, %v792, -inf
        %1312 = vmax.xlane.f32.xlu0 %v1311
        %v1313 = vpop.xlane.xlu0 %1312
        %v1314 = vsel %vm720, %v864, -inf
        %1315 = vmax.xlane.f32.xlu0 %v1314
        %v1316 = vpop.xlane.xlu0 %1315
        %v1317 = vsel %vm720, %v940, -inf
        %1318 = vmax.xlane.f32.xlu0 %v1317
        %v1319 = vpop.xlane.xlu0 %1318
        %v1320 = vsel %vm720, %v1012, -inf
        %1321 = vmax.xlane.f32.xlu0 %v1320
        %v1322 = vpop.xlane.xlu0 %1321
        %v1323 = vsel %vm720, %v1088, -inf
        %1324 = vmax.xlane.f32.xlu0 %v1323
        %v1325 = vpop.xlane.xlu0 %1324
        %v1326 = vsel %vm720, %v1160, -inf
        %1327 = vmax.xlane.f32.xlu0 %v1326
        %v1328 = vpop.xlane.xlu0 %1327
        %v1329 = vsel %vm720, %v1236, -inf
        %1330 = vmax.xlane.f32.xlu0 %v1329
        %v1331 = vpop.xlane.xlu0 %1330
        %v1332 = vsel %vm720, %v1308, -inf
        %1333 = vmax.xlane.f32.xlu0 %v1332
        %v1334 = vpop.xlane.xlu0 %1333
        %v1335 = vsub.f32 %v792, %v1313
        %v1336 = vsub.f32 %v864, %v1316
        %v1337 = vsub.f32 %v940, %v1319
        %v1338 = vsub.f32 %v1012, %v1322
        %v1339 = vsub.f32 %v1088, %v1325
        %v1340 = vsub.f32 %v1160, %v1328
        %v1341 = vsub.f32 %v1236, %v1331
        %v1342 = vsub.f32 %v1308, %v1334
        %v1343 = vmul.f32 %v1335, 1.442695
        %v1344 = vpow.pop %v1343
        %v1345 = vmul.f32 %v1336, 1.442695
        %v1346 = vpow.pop %v1345
        %v1347 = vmul.f32 %v1337, 1.442695
        %v1348 = vpow.pop %v1347
        %v1349 = vmul.f32 %v1338, 1.442695
        %v1350 = vpow.pop %v1349
        %v1351 = vmul.f32 %v1339, 1.442695
        %v1352 = vpow.pop %v1351
        %v1353 = vmul.f32 %v1340, 1.442695
        %v1354 = vpow.pop %v1353
        %v1355 = vmul.f32 %v1341, 1.442695
        %v1356 = vpow.pop %v1355
        %v1357 = vmul.f32 %v1342, 1.442695
        %v1358 = vpow.pop %v1357
        %v1359 = vsel %vm720, %v1344, 0.0
        %1360 = vadd.xlane.f32.xlu0 %v1359
        %v1361 = vpop.xlane.xlu0 %1360
        %v1362 = vsel %vm720, %v1346, 0.0
        %1363 = vadd.xlane.f32.xlu0 %v1362
        %v1364 = vpop.xlane.xlu0 %1363
        %v1365 = vsel %vm720, %v1348, 0.0
        %1366 = vadd.xlane.f32.xlu0 %v1365
        %v1367 = vpop.xlane.xlu0 %1366
        %v1368 = vsel %vm720, %v1350, 0.0
        %1369 = vadd.xlane.f32.xlu0 %v1368
        %v1370 = vpop.xlane.xlu0 %1369
        %v1371 = vsel %vm720, %v1352, 0.0
        %1372 = vadd.xlane.f32.xlu0 %v1371
        %v1373 = vpop.xlane.xlu0 %1372
        %v1374 = vsel %vm720, %v1354, 0.0
        %1375 = vadd.xlane.f32.xlu0 %v1374
        %v1376 = vpop.xlane.xlu0 %1375
        %v1377 = vsel %vm720, %v1356, 0.0
        %1378 = vadd.xlane.f32.xlu0 %v1377
        %v1379 = vpop.xlane.xlu0 %1378
        %v1380 = vsel %vm720, %v1358, 0.0
        %1381 = vadd.xlane.f32.xlu0 %v1380
        %v1382 = vpop.xlane.xlu0 %1381
        %v1383 = vrcp.pop %v1361
        %v1384 = vrcp.pop %v1364
        %v1385 = vrcp.pop %v1367
        %v1386 = vrcp.pop %v1370
        %v1387 = vrcp.pop %v1373
        %v1388 = vrcp.pop %v1376
        %v1389 = vrcp.pop %v1379
        %v1390 = vrcp.pop %v1382
        %v1391 = vmul.f32 %v1344, %v1383
        %v1392 = vmul.f32 %v1346, %v1384
        %v1393 = vmul.f32 %v1348, %v1385
        %v1394 = vmul.f32 %v1350, %v1386
        %v1395 = vmul.f32 %v1352, %v1387
        %v1396 = vmul.f32 %v1354, %v1388
        %v1397 = vmul.f32 %v1356, %v1389
        %v1398 = vmul.f32 %v1358, %v1390
        %1399 = vrot.lane.b32.xlu0 %v662, 32
        %v1400 = vpop.permute.xlu0 %1399
        %v1403 = vsel %vm720, %v1391, 0
        %1405 = vmatprep.subr.mxu0 0.0
        %1406 = vmatpush1.msra.mxu0 %v1400
        %1407 = vmatprep.subr.mxu0 0.0
        %1408 = vmatpush1.msra.mxu0 0.0
        %1409 = vmatprep.subr.mxu0 0.0
        %1410 = vmatpush1.msra.mxu0 0.0
        %1411 = vmatprep.subr.mxu0 0.0
        %1412 = vmatpush1.msra.mxu0 0.0
        %1413 = vmatprep.subr.mxu0 0.0
        %1414 = vmatpush1.msra.mxu0 0.0
        %1415 = vmatprep.subr.mxu0 0.0
        %1416 = vmatpush1.msra.mxu0 0.0
        %1417 = vmatprep.subr.mxu0 0.0
        %1418 = vmatpush1.msra.mxu0 0.0
        %1419 = vmatprep.subr.mxu0 0.0
        %1420 = vmatpush1.msra.mxu0 0.0
        %1421 = vmatprep.subr.mxu0 0.0
        %1422 = vmatpush1.msra.mxu0 0.0
        %1423 = vmatprep.subr.mxu0 0.0
        %1424 = vmatpush1.msra.mxu0 0.0
        %1425 = vmatprep.subr.mxu0 0.0
        %1426 = vmatpush1.msra.mxu0 0.0
        %1427 = vmatprep.subr.mxu0 0.0
        %1428 = vmatpush1.msra.mxu0 0.0
        %1429 = vmatprep.subr.mxu0 0.0
        %1430 = vmatpush1.msra.mxu0 0.0
        %1431 = vmatprep.subr.mxu0 0.0
        %1432 = vmatpush1.msra.mxu0 0.0
        %1433 = vmatprep.subr.mxu0 0.0
        %1434 = vmatpush1.msra.mxu0 0.0
        %1435 = vmatprep.subr.mxu0 0.0
        %1436 = vmatpush1.msra.mxu0 0.0
        %1437 = vmatprep.subr.mxu0 0.0
        %1438 = vmatpush1.msra.mxu0 0.0
        %1439 = vmatprep.subr.mxu0 0.0
        %1440 = vmatpush1.msra.mxu0 0.0
        %1441 = vmatprep.subr.mxu0 0.0
        %1442 = vmatpush1.msra.mxu0 0.0
        %1443 = vmatprep.subr.mxu0 0.0
        %1444 = vmatpush1.msra.mxu0 0.0
        %1445 = vmatprep.subr.mxu0 0.0
        %1446 = vmatpush1.msra.mxu0 0.0
        %1447 = vmatprep.subr.mxu0 0.0
        %1448 = vmatpush1.msra.mxu0 0.0
        %1449 = vmatprep.subr.mxu0 0.0
        %1450 = vmatpush1.msra.mxu0 0.0
        %1451 = vmatprep.subr.mxu0 0.0
        %1452 = vmatpush1.msra.mxu0 0.0
        %1453 = vmatprep.subr.mxu0 0.0
        %1454 = vmatpush1.msra.mxu0 0.0
        %1455 = vmatprep.subr.mxu0 0.0
        %1456 = vmatpush1.msra.mxu0 0.0
        %1457 = vmatprep.subr.mxu0 0.0
        %1458 = vmatpush1.msra.mxu0 0.0
        %1459 = vmatprep.subr.mxu0 0.0
        %1460 = vmatpush1.msra.mxu0 0.0
        %1461 = vmatprep.subr.mxu0 0.0
        %1462 = vmatpush1.msra.mxu0 0.0
        %1463 = vmatprep.subr.mxu0 0.0
        %1464 = vmatpush1.msra.mxu0 0.0
        %1465 = vmatprep.subr.mxu0 0.0
        %1466 = vmatpush1.msra.mxu0 0.0
        %1467 = vmatprep.subr.mxu0 0.0
        %1468 = vmatpush1.msra.mxu0 0.0
        %1469 = vmatprep.mubr.f32.mxu0 0.0
        %1470 = vmatmul.mubr.f32.gmra.mrb[0].mxu0 %v1403
        %v1471 = vpop.f32.mrb[0].mxu0
        %v1472 = vadd.f32 0.0, %v1471
        %v1473 = vpop.f32.mrb[0].mxu0
        %1474 = vdwg.mxu0
        %v1476 = vsel %vm720, %v1392, 0
        %1478 = vmatprep.subr.mxu0 0.0
        %1479 = vmatpush1.msra.mxu0 %v1400
        %1480 = vmatprep.subr.mxu0 0.0
        %1481 = vmatpush1.msra.mxu0 0.0
        %1482 = vmatprep.subr.mxu0 0.0
        %1483 = vmatpush1.msra.mxu0 0.0
        %1484 = vmatprep.subr.mxu0 0.0
        %1485 = vmatpush1.msra.mxu0 0.0
        %1486 = vmatprep.subr.mxu0 0.0
        %1487 = vmatpush1.msra.mxu0 0.0
        %1488 = vmatprep.subr.mxu0 0.0
        %1489 = vmatpush1.msra.mxu0 0.0
        %1490 = vmatprep.subr.mxu0 0.0
        %1491 = vmatpush1.msra.mxu0 0.0
        %1492 = vmatprep.subr.mxu0 0.0
        %1493 = vmatpush1.msra.mxu0 0.0
        %1494 = vmatprep.subr.mxu0 0.0
        %1495 = vmatpush1.msra.mxu0 0.0
        %1496 = vmatprep.subr.mxu0 0.0
        %1497 = vmatpush1.msra.mxu0 0.0
        %1498 = vmatprep.subr.mxu0 0.0
        %1499 = vmatpush1.msra.mxu0 0.0
        %1500 = vmatprep.subr.mxu0 0.0
        %1501 = vmatpush1.msra.mxu0 0.0
        %1502 = vmatprep.subr.mxu0 0.0
        %1503 = vmatpush1.msra.mxu0 0.0
        %1504 = vmatprep.subr.mxu0 0.0
        %1505 = vmatpush1.msra.mxu0 0.0
        %1506 = vmatprep.subr.mxu0 0.0
        %1507 = vmatpush1.msra.mxu0 0.0
        %1508 = vmatprep.subr.mxu0 0.0
        %1509 = vmatpush1.msra.mxu0 0.0
        %1510 = vmatprep.subr.mxu0 0.0
        %1511 = vmatpush1.msra.mxu0 0.0
        %1512 = vmatprep.subr.mxu0 0.0
        %1513 = vmatpush1.msra.mxu0 0.0
        %1514 = vmatprep.subr.mxu0 0.0
        %1515 = vmatpush1.msra.mxu0 0.0
        %1516 = vmatprep.subr.mxu0 0.0
        %1517 = vmatpush1.msra.mxu0 0.0
        %1518 = vmatprep.subr.mxu0 0.0
        %1519 = vmatpush1.msra.mxu0 0.0
        %1520 = vmatprep.subr.mxu0 0.0
        %1521 = vmatpush1.msra.mxu0 0.0
        %1522 = vmatprep.subr.mxu0 0.0
        %1523 = vmatpush1.msra.mxu0 0.0
        %1524 = vmatprep.subr.mxu0 0.0
        %1525 = vmatpush1.msra.mxu0 0.0
        %1526 = vmatprep.subr.mxu0 0.0
        %1527 = vmatpush1.msra.mxu0 0.0
        %1528 = vmatprep.subr.mxu0 0.0
        %1529 = vmatpush1.msra.mxu0 0.0
        %1530 = vmatprep.subr.mxu0 0.0
        %1531 = vmatpush1.msra.mxu0 0.0
        %1532 = vmatprep.subr.mxu0 0.0
        %1533 = vmatpush1.msra.mxu0 0.0
        %1534 = vmatprep.subr.mxu0 0.0
        %1535 = vmatpush1.msra.mxu0 0.0
        %1536 = vmatprep.subr.mxu0 0.0
        %1537 = vmatpush1.msra.mxu0 0.0
        %1538 = vmatprep.subr.mxu0 0.0
        %1539 = vmatpush1.msra.mxu0 0.0
        %1540 = vmatprep.subr.mxu0 0.0
        %1541 = vmatpush1.msra.mxu0 0.0
        %1542 = vmatprep.mubr.f32.mxu0 0.0
        %1543 = vmatmul.mubr.f32.gmra.mrb[0].mxu0 %v1476
        %v1544 = vpop.f32.mrb[0].mxu0
        %v1545 = vadd.f32 0.0, %v1544
        %v1546 = vpop.f32.mrb[0].mxu0
        %1547 = vdwg.mxu0
        %1548 = vrot.lane.b32.xlu0 %v714, 32
        %v1549 = vpop.permute.xlu0 %1548
        %v1552 = vsel %vm720, %v1393, 0
        %1554 = vmatprep.subr.mxu0 0.0
        %1555 = vmatpush1.msra.mxu0 %v1549
        %1556 = vmatprep.subr.mxu0 0.0
        %1557 = vmatpush1.msra.mxu0 0.0
        %1558 = vmatprep.subr.mxu0 0.0
        %1559 = vmatpush1.msra.mxu0 0.0
        %1560 = vmatprep.subr.mxu0 0.0
        %1561 = vmatpush1.msra.mxu0 0.0
        %1562 = vmatprep.subr.mxu0 0.0
        %1563 = vmatpush1.msra.mxu0 0.0
        %1564 = vmatprep.subr.mxu0 0.0
        %1565 = vmatpush1.msra.mxu0 0.0
        %1566 = vmatprep.subr.mxu0 0.0
        %1567 = vmatpush1.msra.mxu0 0.0
        %1568 = vmatprep.subr.mxu0 0.0
        %1569 = vmatpush1.msra.mxu0 0.0
        %1570 = vmatprep.subr.mxu0 0.0
        %1571 = vmatpush1.msra.mxu0 0.0
        %1572 = vmatprep.subr.mxu0 0.0
        %1573 = vmatpush1.msra.mxu0 0.0
        %1574 = vmatprep.subr.mxu0 0.0
        %1575 = vmatpush1.msra.mxu0 0.0
        %1576 = vmatprep.subr.mxu0 0.0
        %1577 = vmatpush1.msra.mxu0 0.0
        %1578 = vmatprep.subr.mxu0 0.0
        %1579 = vmatpush1.msra.mxu0 0.0
        %1580 = vmatprep.subr.mxu0 0.0
        %1581 = vmatpush1.msra.mxu0 0.0
        %1582 = vmatprep.subr.mxu0 0.0
        %1583 = vmatpush1.msra.mxu0 0.0
        %1584 = vmatprep.subr.mxu0 0.0
        %1585 = vmatpush1.msra.mxu0 0.0
        %1586 = vmatprep.subr.mxu0 0.0
        %1587 = vmatpush1.msra.mxu0 0.0
        %1588 = vmatprep.subr.mxu0 0.0
        %1589 = vmatpush1.msra.mxu0 0.0
        %1590 = vmatprep.subr.mxu0 0.0
        %1591 = vmatpush1.msra.mxu0 0.0
        %1592 = vmatprep.subr.mxu0 0.0
        %1593 = vmatpush1.msra.mxu0 0.0
        %1594 = vmatprep.subr.mxu0 0.0
        %1595 = vmatpush1.msra.mxu0 0.0
        %1596 = vmatprep.subr.mxu0 0.0
        %1597 = vmatpush1.msra.mxu0 0.0
        %1598 = vmatprep.subr.mxu0 0.0
        %1599 = vmatpush1.msra.mxu0 0.0
        %1600 = vmatprep.subr.mxu0 0.0
        %1601 = vmatpush1.msra.mxu0 0.0
        %1602 = vmatprep.subr.mxu0 0.0
        %1603 = vmatpush1.msra.mxu0 0.0
        %1604 = vmatprep.subr.mxu0 0.0
        %1605 = vmatpush1.msra.mxu0 0.0
        %1606 = vmatprep.subr.mxu0 0.0
        %1607 = vmatpush1.msra.mxu0 0.0
        %1608 = vmatprep.subr.mxu0 0.0
        %1609 = vmatpush1.msra.mxu0 0.0
        %1610 = vmatprep.subr.mxu0 0.0
        %1611 = vmatpush1.msra.mxu0 0.0
        %1612 = vmatprep.subr.mxu0 0.0
        %1613 = vmatpush1.msra.mxu0 0.0
        %1614 = vmatprep.subr.mxu0 0.0
        %1615 = vmatpush1.msra.mxu0 0.0
        %1616 = vmatprep.subr.mxu0 0.0
        %1617 = vmatpush1.msra.mxu0 0.0
        %1618 = vmatprep.mubr.f32.mxu0 0.0
        %1619 = vmatmul.mubr.f32.gmra.mrb[0].mxu0 %v1552
        %v1620 = vpop.f32.mrb[0].mxu0
        %v1621 = vadd.f32 0.0, %v1620
        %v1622 = vpop.f32.mrb[0].mxu0
        %1623 = vdwg.mxu0
        %v1625 = vsel %vm720, %v1394, 0
        %1627 = vmatprep.subr.mxu0 0.0
        %1628 = vmatpush1.msra.mxu0 %v1549
        %1629 = vmatprep.subr.mxu0 0.0
        %1630 = vmatpush1.msra.mxu0 0.0
        %1631 = vmatprep.subr.mxu0 0.0
        %1632 = vmatpush1.msra.mxu0 0.0
        %1633 = vmatprep.subr.mxu0 0.0
        %1634 = vmatpush1.msra.mxu0 0.0
        %1635 = vmatprep.subr.mxu0 0.0
        %1636 = vmatpush1.msra.mxu0 0.0
        %1637 = vmatprep.subr.mxu0 0.0
        %1638 = vmatpush1.msra.mxu0 0.0
        %1639 = vmatprep.subr.mxu0 0.0
        %1640 = vmatpush1.msra.mxu0 0.0
        %1641 = vmatprep.subr.mxu0 0.0
        %1642 = vmatpush1.msra.mxu0 0.0
        %1643 = vmatprep.subr.mxu0 0.0
        %1644 = vmatpush1.msra.mxu0 0.0
        %1645 = vmatprep.subr.mxu0 0.0
        %1646 = vmatpush1.msra.mxu0 0.0
        %1647 = vmatprep.subr.mxu0 0.0
        %1648 = vmatpush1.msra.mxu0 0.0
        %1649 = vmatprep.subr.mxu0 0.0
        %1650 = vmatpush1.msra.mxu0 0.0
        %1651 = vmatprep.subr.mxu0 0.0
        %1652 = vmatpush1.msra.mxu0 0.0
        %1653 = vmatprep.subr.mxu0 0.0
        %1654 = vmatpush1.msra.mxu0 0.0
        %1655 = vmatprep.subr.mxu0 0.0
        %1656 = vmatpush1.msra.mxu0 0.0
        %1657 = vmatprep.subr.mxu0 0.0
        %1658 = vmatpush1.msra.mxu0 0.0
        %1659 = vmatprep.subr.mxu0 0.0
        %1660 = vmatpush1.msra.mxu0 0.0
        %1661 = vmatprep.subr.mxu0 0.0
        %1662 = vmatpush1.msra.mxu0 0.0
        %1663 = vmatprep.subr.mxu0 0.0
        %1664 = vmatpush1.msra.mxu0 0.0
        %1665 = vmatprep.subr.mxu0 0.0
        %1666 = vmatpush1.msra.mxu0 0.0
        %1667 = vmatprep.subr.mxu0 0.0
        %1668 = vmatpush1.msra.mxu0 0.0
        %1669 = vmatprep.subr.mxu0 0.0
        %1670 = vmatpush1.msra.mxu0 0.0
        %1671 = vmatprep.subr.mxu0 0.0
        %1672 = vmatpush1.msra.mxu0 0.0
        %1673 = vmatprep.subr.mxu0 0.0
        %1674 = vmatpush1.msra.mxu0 0.0
        %1675 = vmatprep.subr.mxu0 0.0
        %1676 = vmatpush1.msra.mxu0 0.0
        %1677 = vmatprep.subr.mxu0 0.0
        %1678 = vmatpush1.msra.mxu0 0.0
        %1679 = vmatprep.subr.mxu0 0.0
        %1680 = vmatpush1.msra.mxu0 0.0
        %1681 = vmatprep.subr.mxu0 0.0
        %1682 = vmatpush1.msra.mxu0 0.0
        %1683 = vmatprep.subr.mxu0 0.0
        %1684 = vmatpush1.msra.mxu0 0.0
        %1685 = vmatprep.subr.mxu0 0.0
        %1686 = vmatpush1.msra.mxu0 0.0
        %1687 = vmatprep.subr.mxu0 0.0
        %1688 = vmatpush1.msra.mxu0 0.0
        %1689 = vmatprep.subr.mxu0 0.0
        %1690 = vmatpush1.msra.mxu0 0.0
        %1691 = vmatprep.mubr.f32.mxu0 0.0
        %1692 = vmatmul.mubr.f32.gmra.mrb[0].mxu0 %v1625
        %v1693 = vpop.f32.mrb[0].mxu0
        %v1694 = vadd.f32 0.0, %v1693
        %v1695 = vpop.f32.mrb[0].mxu0
        %1696 = vdwg.mxu0
        %1697 = vrot.lane.b32.xlu0 %v667, 32
        %v1698 = vpop.permute.xlu0 %1697
        %v1701 = vsel %vm720, %v1395, 0
        %1703 = vmatprep.subr.mxu0 0.0
        %1704 = vmatpush1.msra.mxu0 %v1698
        %1705 = vmatprep.subr.mxu0 0.0
        %1706 = vmatpush1.msra.mxu0 0.0
        %1707 = vmatprep.subr.mxu0 0.0
        %1708 = vmatpush1.msra.mxu0 0.0
        %1709 = vmatprep.subr.mxu0 0.0
        %1710 = vmatpush1.msra.mxu0 0.0
        %1711 = vmatprep.subr.mxu0 0.0
        %1712 = vmatpush1.msra.mxu0 0.0
        %1713 = vmatprep.subr.mxu0 0.0
        %1714 = vmatpush1.msra.mxu0 0.0
        %1715 = vmatprep.subr.mxu0 0.0
        %1716 = vmatpush1.msra.mxu0 0.0
        %1717 = vmatprep.subr.mxu0 0.0
        %1718 = vmatpush1.msra.mxu0 0.0
        %1719 = vmatprep.subr.mxu0 0.0
        %1720 = vmatpush1.msra.mxu0 0.0
        %1721 = vmatprep.subr.mxu0 0.0
        %1722 = vmatpush1.msra.mxu0 0.0
        %1723 = vmatprep.subr.mxu0 0.0
        %1724 = vmatpush1.msra.mxu0 0.0
        %1725 = vmatprep.subr.mxu0 0.0
        %1726 = vmatpush1.msra.mxu0 0.0
        %1727 = vmatprep.subr.mxu0 0.0
        %1728 = vmatpush1.msra.mxu0 0.0
        %1729 = vmatprep.subr.mxu0 0.0
        %1730 = vmatpush1.msra.mxu0 0.0
        %1731 = vmatprep.subr.mxu0 0.0
        %1732 = vmatpush1.msra.mxu0 0.0
        %1733 = vmatprep.subr.mxu0 0.0
        %1734 = vmatpush1.msra.mxu0 0.0
        %1735 = vmatprep.subr.mxu0 0.0
        %1736 = vmatpush1.msra.mxu0 0.0
        %1737 = vmatprep.subr.mxu0 0.0
        %1738 = vmatpush1.msra.mxu0 0.0
        %1739 = vmatprep.subr.mxu0 0.0
        %1740 = vmatpush1.msra.mxu0 0.0
        %1741 = vmatprep.subr.mxu0 0.0
        %1742 = vmatpush1.msra.mxu0 0.0
        %1743 = vmatprep.subr.mxu0 0.0
        %1744 = vmatpush1.msra.mxu0 0.0
        %1745 = vmatprep.subr.mxu0 0.0
        %1746 = vmatpush1.msra.mxu0 0.0
        %1747 = vmatprep.subr.mxu0 0.0
        %1748 = vmatpush1.msra.mxu0 0.0
        %1749 = vmatprep.subr.mxu0 0.0
        %1750 = vmatpush1.msra.mxu0 0.0
        %1751 = vmatprep.subr.mxu0 0.0
        %1752 = vmatpush1.msra.mxu0 0.0
        %1753 = vmatprep.subr.mxu0 0.0
        %1754 = vmatpush1.msra.mxu0 0.0
        %1755 = vmatprep.subr.mxu0 0.0
        %1756 = vmatpush1.msra.mxu0 0.0
        %1757 = vmatprep.subr.mxu0 0.0
        %1758 = vmatpush1.msra.mxu0 0.0
        %1759 = vmatprep.subr.mxu0 0.0
        %1760 = vmatpush1.msra.mxu0 0.0
        %1761 = vmatprep.subr.mxu0 0.0
        %1762 = vmatpush1.msra.mxu0 0.0
        %1763 = vmatprep.subr.mxu0 0.0
        %1764 = vmatpush1.msra.mxu0 0.0
        %1765 = vmatprep.subr.mxu0 0.0
        %1766 = vmatpush1.msra.mxu0 0.0
        %1767 = vmatprep.mubr.f32.mxu0 0.0
        %1768 = vmatmul.mubr.f32.gmra.mrb[0].mxu0 %v1701
        %v1769 = vpop.f32.mrb[0].mxu0
        %v1770 = vadd.f32 0.0, %v1769
        %v1771 = vpop.f32.mrb[0].mxu0
        %1772 = vdwg.mxu0
        %v1774 = vsel %vm720, %v1396, 0
        %1776 = vmatprep.subr.mxu0 0.0
        %1777 = vmatpush1.msra.mxu0 %v1698
        %1778 = vmatprep.subr.mxu0 0.0
        %1779 = vmatpush1.msra.mxu0 0.0
        %1780 = vmatprep.subr.mxu0 0.0
        %1781 = vmatpush1.msra.mxu0 0.0
        %1782 = vmatprep.subr.mxu0 0.0
        %1783 = vmatpush1.msra.mxu0 0.0
        %1784 = vmatprep.subr.mxu0 0.0
        %1785 = vmatpush1.msra.mxu0 0.0
        %1786 = vmatprep.subr.mxu0 0.0
        %1787 = vmatpush1.msra.mxu0 0.0
        %1788 = vmatprep.subr.mxu0 0.0
        %1789 = vmatpush1.msra.mxu0 0.0
        %1790 = vmatprep.subr.mxu0 0.0
        %1791 = vmatpush1.msra.mxu0 0.0
        %1792 = vmatprep.subr.mxu0 0.0
        %1793 = vmatpush1.msra.mxu0 0.0
        %1794 = vmatprep.subr.mxu0 0.0
        %1795 = vmatpush1.msra.mxu0 0.0
        %1796 = vmatprep.subr.mxu0 0.0
        %1797 = vmatpush1.msra.mxu0 0.0
        %1798 = vmatprep.subr.mxu0 0.0
        %1799 = vmatpush1.msra.mxu0 0.0
        %1800 = vmatprep.subr.mxu0 0.0
        %1801 = vmatpush1.msra.mxu0 0.0
        %1802 = vmatprep.subr.mxu0 0.0
        %1803 = vmatpush1.msra.mxu0 0.0
        %1804 = vmatprep.subr.mxu0 0.0
        %1805 = vmatpush1.msra.mxu0 0.0
        %1806 = vmatprep.subr.mxu0 0.0
        %1807 = vmatpush1.msra.mxu0 0.0
        %1808 = vmatprep.subr.mxu0 0.0
        %1809 = vmatpush1.msra.mxu0 0.0
        %1810 = vmatprep.subr.mxu0 0.0
        %1811 = vmatpush1.msra.mxu0 0.0
        %1812 = vmatprep.subr.mxu0 0.0
        %1813 = vmatpush1.msra.mxu0 0.0
        %1814 = vmatprep.subr.mxu0 0.0
        %1815 = vmatpush1.msra.mxu0 0.0
        %1816 = vmatprep.subr.mxu0 0.0
        %1817 = vmatpush1.msra.mxu0 0.0
        %1818 = vmatprep.subr.mxu0 0.0
        %1819 = vmatpush1.msra.mxu0 0.0
        %1820 = vmatprep.subr.mxu0 0.0
        %1821 = vmatpush1.msra.mxu0 0.0
        %1822 = vmatprep.subr.mxu0 0.0
        %1823 = vmatpush1.msra.mxu0 0.0
        %1824 = vmatprep.subr.mxu0 0.0
        %1825 = vmatpush1.msra.mxu0 0.0
        %1826 = vmatprep.subr.mxu0 0.0
        %1827 = vmatpush1.msra.mxu0 0.0
        %1828 = vmatprep.subr.mxu0 0.0
        %1829 = vmatpush1.msra.mxu0 0.0
        %1830 = vmatprep.subr.mxu0 0.0
        %1831 = vmatpush1.msra.mxu0 0.0
        %1832 = vmatprep.subr.mxu0 0.0
        %1833 = vmatpush1.msra.mxu0 0.0
        %1834 = vmatprep.subr.mxu0 0.0
        %1835 = vmatpush1.msra.mxu0 0.0
        %1836 = vmatprep.subr.mxu0 0.0
        %1837 = vmatpush1.msra.mxu0 0.0
        %1838 = vmatprep.subr.mxu0 0.0
        %1839 = vmatpush1.msra.mxu0 0.0
        %1840 = vmatprep.mubr.f32.mxu0 0.0
        %1841 = vmatmul.mubr.f32.gmra.mrb[0].mxu0 %v1774
        %v1842 = vpop.f32.mrb[0].mxu0
        %v1843 = vadd.f32 0.0, %v1842
        %v1844 = vpop.f32.mrb[0].mxu0
        %1845 = vdwg.mxu0
        %1846 = vrot.lane.b32.xlu0 %v717, 32
        %v1847 = vpop.permute.xlu0 %1846
        %v1850 = vsel %vm720, %v1397, 0
        %1852 = vmatprep.subr.mxu0 0.0
        %1853 = vmatpush1.msra.mxu0 %v1847
        %1854 = vmatprep.subr.mxu0 0.0
        %1855 = vmatpush1.msra.mxu0 0.0
        %1856 = vmatprep.subr.mxu0 0.0
        %1857 = vmatpush1.msra.mxu0 0.0
        %1858 = vmatprep.subr.mxu0 0.0
        %1859 = vmatpush1.msra.mxu0 0.0
        %1860 = vmatprep.subr.mxu0 0.0
        %1861 = vmatpush1.msra.mxu0 0.0
        %1862 = vmatprep.subr.mxu0 0.0
        %1863 = vmatpush1.msra.mxu0 0.0
        %1864 = vmatprep.subr.mxu0 0.0
        %1865 = vmatpush1.msra.mxu0 0.0
        %1866 = vmatprep.subr.mxu0 0.0
        %1867 = vmatpush1.msra.mxu0 0.0
        %1868 = vmatprep.subr.mxu0 0.0
        %1869 = vmatpush1.msra.mxu0 0.0
        %1870 = vmatprep.subr.mxu0 0.0
        %1871 = vmatpush1.msra.mxu0 0.0
        %1872 = vmatprep.subr.mxu0 0.0
        %1873 = vmatpush1.msra.mxu0 0.0
        %1874 = vmatprep.subr.mxu0 0.0
        %1875 = vmatpush1.msra.mxu0 0.0
        %1876 = vmatprep.subr.mxu0 0.0
        %1877 = vmatpush1.msra.mxu0 0.0
        %1878 = vmatprep.subr.mxu0 0.0
        %1879 = vmatpush1.msra.mxu0 0.0
        %1880 = vmatprep.subr.mxu0 0.0
        %1881 = vmatpush1.msra.mxu0 0.0
        %1882 = vmatprep.subr.mxu0 0.0
        %1883 = vmatpush1.msra.mxu0 0.0
        %1884 = vmatprep.subr.mxu0 0.0
        %1885 = vmatpush1.msra.mxu0 0.0
        %1886 = vmatprep.subr.mxu0 0.0
        %1887 = vmatpush1.msra.mxu0 0.0
        %1888 = vmatprep.subr.mxu0 0.0
        %1889 = vmatpush1.msra.mxu0 0.0
        %1890 = vmatprep.subr.mxu0 0.0
        %1891 = vmatpush1.msra.mxu0 0.0
        %1892 = vmatprep.subr.mxu0 0.0
        %1893 = vmatpush1.msra.mxu0 0.0
        %1894 = vmatprep.subr.mxu0 0.0
        %1895 = vmatpush1.msra.mxu0 0.0
        %1896 = vmatprep.subr.mxu0 0.0
        %1897 = vmatpush1.msra.mxu0 0.0
        %1898 = vmatprep.subr.mxu0 0.0
        %1899 = vmatpush1.msra.mxu0 0.0
        %1900 = vmatprep.subr.mxu0 0.0
        %1901 = vmatpush1.msra.mxu0 0.0
        %1902 = vmatprep.subr.mxu0 0.0
        %1903 = vmatpush1.msra.mxu0 0.0
        %1904 = vmatprep.subr.mxu0 0.0
        %1905 = vmatpush1.msra.mxu0 0.0
        %1906 = vmatprep.subr.mxu0 0.0
        %1907 = vmatpush1.msra.mxu0 0.0
        %1908 = vmatprep.subr.mxu0 0.0
        %1909 = vmatpush1.msra.mxu0 0.0
        %1910 = vmatprep.subr.mxu0 0.0
        %1911 = vmatpush1.msra.mxu0 0.0
        %1912 = vmatprep.subr.mxu0 0.0
        %1913 = vmatpush1.msra.mxu0 0.0
        %1914 = vmatprep.subr.mxu0 0.0
        %1915 = vmatpush1.msra.mxu0 0.0
        %1916 = vmatprep.mubr.f32.mxu0 0.0
        %1917 = vmatmul.mubr.f32.gmra.mrb[0].mxu0 %v1850
        %v1918 = vpop.f32.mrb[0].mxu0
        %v1919 = vadd.f32 0.0, %v1918
        %v1920 = vpop.f32.mrb[0].mxu0
        %1921 = vdwg.mxu0
        %v1923 = vsel %vm720, %v1398, 0
        %1925 = vmatprep.subr.mxu0 0.0
        %1926 = vmatpush1.msra.mxu0 %v1847
        %1927 = vmatprep.subr.mxu0 0.0
        %1928 = vmatpush1.msra.mxu0 0.0
        %1929 = vmatprep.subr.mxu0 0.0
        %1930 = vmatpush1.msra.mxu0 0.0
        %1931 = vmatprep.subr.mxu0 0.0
        %1932 = vmatpush1.msra.mxu0 0.0
        %1933 = vmatprep.subr.mxu0 0.0
        %1934 = vmatpush1.msra.mxu0 0.0
        %1935 = vmatprep.subr.mxu0 0.0
        %1936 = vmatpush1.msra.mxu0 0.0
        %1937 = vmatprep.subr.mxu0 0.0
        %1938 = vmatpush1.msra.mxu0 0.0
        %1939 = vmatprep.subr.mxu0 0.0
        %1940 = vmatpush1.msra.mxu0 0.0
        %1941 = vmatprep.subr.mxu0 0.0
        %1942 = vmatpush1.msra.mxu0 0.0
        %1943 = vmatprep.subr.mxu0 0.0
        %1944 = vmatpush1.msra.mxu0 0.0
        %1945 = vmatprep.subr.mxu0 0.0
        %1946 = vmatpush1.msra.mxu0 0.0
        %1947 = vmatprep.subr.mxu0 0.0
        %1948 = vmatpush1.msra.mxu0 0.0
        %1949 = vmatprep.subr.mxu0 0.0
        %1950 = vmatpush1.msra.mxu0 0.0
        %1951 = vmatprep.subr.mxu0 0.0
        %1952 = vmatpush1.msra.mxu0 0.0
        %1953 = vmatprep.subr.mxu0 0.0
        %1954 = vmatpush1.msra.mxu0 0.0
        %1955 = vmatprep.subr.mxu0 0.0
        %1956 = vmatpush1.msra.mxu0 0.0
        %1957 = vmatprep.subr.mxu0 0.0
        %1958 = vmatpush1.msra.mxu0 0.0
        %1959 = vmatprep.subr.mxu0 0.0
        %1960 = vmatpush1.msra.mxu0 0.0
        %1961 = vmatprep.subr.mxu0 0.0
        %1962 = vmatpush1.msra.mxu0 0.0
        %1963 = vmatprep.subr.mxu0 0.0
        %1964 = vmatpush1.msra.mxu0 0.0
        %1965 = vmatprep.subr.mxu0 0.0
        %1966 = vmatpush1.msra.mxu0 0.0
        %1967 = vmatprep.subr.mxu0 0.0
        %1968 = vmatpush1.msra.mxu0 0.0
        %1969 = vmatprep.subr.mxu0 0.0
        %1970 = vmatpush1.msra.mxu0 0.0
        %1971 = vmatprep.subr.mxu0 0.0
        %1972 = vmatpush1.msra.mxu0 0.0
        %1973 = vmatprep.subr.mxu0 0.0
        %1974 = vmatpush1.msra.mxu0 0.0
        %1975 = vmatprep.subr.mxu0 0.0
        %1976 = vmatpush1.msra.mxu0 0.0
        %1977 = vmatprep.subr.mxu0 0.0
        %1978 = vmatpush1.msra.mxu0 0.0
        %1979 = vmatprep.subr.mxu0 0.0
        %1980 = vmatpush1.msra.mxu0 0.0
        %1981 = vmatprep.subr.mxu0 0.0
        %1982 = vmatpush1.msra.mxu0 0.0
        %1983 = vmatprep.subr.mxu0 0.0
        %1984 = vmatpush1.msra.mxu0 0.0
        %1985 = vmatprep.subr.mxu0 0.0
        %1986 = vmatpush1.msra.mxu0 0.0
        %1987 = vmatprep.subr.mxu0 0.0
        %1988 = vmatpush1.msra.mxu0 0.0
        %1989 = vmatprep.mubr.f32.mxu0 0.0
        %1990 = vmatmul.mubr.f32.gmra.mrb[0].mxu0 %v1923
        %v1991 = vpop.f32.mrb[0].mxu0
        %v1992 = vadd.f32 0.0, %v1991
        %v1993 = vpop.f32.mrb[0].mxu0
        %1994 = vdwg.mxu0
        %1996 = vrot.lane.b32.xlu0 %v1545, 8
        %v1997 = vpop.permute.xlu0 %1996
        %2000 = vrot.lane.b32.xlu0 %v1621, 16
        %v2001 = vpop.permute.xlu0 %2000
        %2004 = vrot.lane.b32.xlu0 %v1694, 24
        %v2005 = vpop.permute.xlu0 %2004
        %v2007 = vsel %vm720, %v1472, %v1997
        %vm2008 = vcmask 130048
        %v2009 = vsel %vm2008, %v2007, %v2001
        %vm2010 = vcmask 195584
        %v2011 = vsel %vm2010, %v2009, %v2005
        %2013 = vrot.lane.b32.xlu0 %v1843, 8
        %v2014 = vpop.permute.xlu0 %2013
        %2017 = vrot.lane.b32.xlu0 %v1919, 16
        %v2018 = vpop.permute.xlu0 %2017
        %2021 = vrot.lane.b32.xlu0 %v1992, 24
        %v2022 = vpop.permute.xlu0 %2021
        %v2024 = vsel %vm720, %v1770, %v2014
        %v2025 = vsel %vm2008, %v2024, %v2018
        %v2026 = vsel %vm2010, %v2025, %v2022
        %v2027 = vld [vmem:[%s543] sm:$0xff]
        %v2028 = vld [vmem:[%s543 + $0x8] sm:$0xff]
        %v2029 = vld [vmem:[%s543 + $0x10] sm:$0xff]
        %v2030 = vld [vmem:[%s543 + $0x18] sm:$0xff]
        %v2032 = vsel %vm563, %v2011, 0
        %v2035 = vsel %vm563, %v2026, 0
        %2037 = vmatprep.subr.mxu0 0.0
        %2038 = vmatpush1.msra.mxu0 %v2027
        %2039 = vmatprep.subr.mxu0 0.0
        %2040 = vmatpush1.msra.mxu0 %v2028
        %2041 = vmatprep.subr.mxu0 0.0
        %2042 = vmatpush1.msra.mxu0 %v2029
        %2043 = vmatprep.subr.mxu0 0.0
        %2044 = vmatpush1.msra.mxu0 %v2030
        %2045 = vmatprep.subr.mxu0 0.0
        %2046 = vmatpush1.msra.mxu0 0.0
        %2047 = vmatprep.subr.mxu0 0.0
        %2048 = vmatpush1.msra.mxu0 0.0
        %2049 = vmatprep.subr.mxu0 0.0
        %2050 = vmatpush1.msra.mxu0 0.0
        %2051 = vmatprep.subr.mxu0 0.0
        %2052 = vmatpush1.msra.mxu0 0.0
        %2053 = vmatprep.subr.mxu0 0.0
        %2054 = vmatpush1.msra.mxu0 0.0
        %2055 = vmatprep.subr.mxu0 0.0
        %2056 = vmatpush1.msra.mxu0 0.0
        %2057 = vmatprep.subr.mxu0 0.0
        %2058 = vmatpush1.msra.mxu0 0.0
        %2059 = vmatprep.subr.mxu0 0.0
        %2060 = vmatpush1.msra.mxu0 0.0
        %2061 = vmatprep.subr.mxu0 0.0
        %2062 = vmatpush1.msra.mxu0 0.0
        %2063 = vmatprep.subr.mxu0 0.0
        %2064 = vmatpush1.msra.mxu0 0.0
        %2065 = vmatprep.subr.mxu0 0.0
        %2066 = vmatpush1.msra.mxu0 0.0
        %2067 = vmatprep.subr.mxu0 0.0
        %2068 = vmatpush1.msra.mxu0 0.0
        %2069 = vmatprep.subr.mxu0 0.0
        %2070 = vmatpush1.msra.mxu0 0.0
        %2071 = vmatprep.subr.mxu0 0.0
        %2072 = vmatpush1.msra.mxu0 0.0
        %2073 = vmatprep.subr.mxu0 0.0
        %2074 = vmatpush1.msra.mxu0 0.0
        %2075 = vmatprep.subr.mxu0 0.0
        %2076 = vmatpush1.msra.mxu0 0.0
        %2077 = vmatprep.subr.mxu0 0.0
        %2078 = vmatpush1.msra.mxu0 0.0
        %2079 = vmatprep.subr.mxu0 0.0
        %2080 = vmatpush1.msra.mxu0 0.0
        %2081 = vmatprep.subr.mxu0 0.0
        %2082 = vmatpush1.msra.mxu0 0.0
        %2083 = vmatprep.subr.mxu0 0.0
        %2084 = vmatpush1.msra.mxu0 0.0
        %2085 = vmatprep.subr.mxu0 0.0
        %2086 = vmatpush1.msra.mxu0 0.0
        %2087 = vmatprep.subr.mxu0 0.0
        %2088 = vmatpush1.msra.mxu0 0.0
        %2089 = vmatprep.subr.mxu0 0.0
        %2090 = vmatpush1.msra.mxu0 0.0
        %2091 = vmatprep.subr.mxu0 0.0
        %2092 = vmatpush1.msra.mxu0 0.0
        %2093 = vmatprep.subr.mxu0 0.0
        %2094 = vmatpush1.msra.mxu0 0.0
        %2095 = vmatprep.subr.mxu0 0.0
        %2096 = vmatpush1.msra.mxu0 0.0
        %2097 = vmatprep.subr.mxu0 0.0
        %2098 = vmatpush1.msra.mxu0 0.0
        %2099 = vmatprep.subr.mxu0 0.0
        %2100 = vmatpush1.msra.mxu0 0.0
        %2101 = vmatprep.mubr.f32.mxu0 0.0
        %2102 = vmatmul.mubr.f32.gmra.mrb[0].mxu0 %v2032
        %v2103 = vpop.f32.mrb[0].mxu0
        %v2104 = vadd.f32 0.0, %v2103
        %v2105 = vpop.f32.mrb[0].mxu0
        %2106 = vmatprep.mubr.f32.mxu0 0.0
        %2107 = vmatmul.mubr.f32.gmra.mrb[0].mxu0 %v2035
        %v2108 = vpop.f32.mrb[0].mxu0
        %v2109 = vadd.f32 0.0, %v2108
        %v2110 = vpop.f32.mrb[0].mxu0
        %2111 = vdwg.mxu0
        %v2112 = vadd.f32 %v557, %v2104
        %v2113 = vadd.f32 %v558, %v2109
        %v2114 = vmul.f32 %v2112, %v2112
        %v2115 = vmul.f32 %v2113, %v2113
        %v2116 = vsel %vm563, %v2114, 0.0
        %2117 = vadd.xlane.f32.xlu0 %v2116
        %v2118 = vpop.xlane.xlu0 %2117
        %v2119 = vsel %vm563, %v2115, 0.0
        %2120 = vadd.xlane.f32.xlu0 %v2119
        %v2121 = vpop.xlane.xlu0 %2120
        %v2122 = vmul.f32 %v2118, %v570
        %v2123 = vmul.f32 %v2121, %v570
        %v2124 = vadd.f32 %v2122, 1e-05
        %v2125 = vadd.f32 %v2123, 1e-05
        %v2126 = vrsqrt.pop %v2124
        %v2127 = vrsqrt.pop %v2125
        %v2128 = vmul.f32 %v2112, %v2126
        %v2129 = vmul.f32 %v2113, %v2127
        %v2130 = vlaneseq
        %v2131 = vshrl.u32 %v2130, 7
        %v2132 = vsub.s32 0, %v2131
        %v2133 = vrot.slane %v560, %v2132
        %v2134 = vmul.f32 %v2128, %v2133
        %v2135 = vmul.f32 %v2129, %v2133
        %v2136 = vld [vmem:[%s548] sm:$0xff]
        %v2137 = vld [vmem:[%s548 + $0x8] sm:$0xff]
        %v2138 = vld [vmem:[%s548 + $0x10] sm:$0xff]
        %v2139 = vld [vmem:[%s548 + $0x18] sm:$0xff]
        %v2140 = vld [vmem:[%s548 + $0x20] sm:$0xff]
        %v2141 = vld [vmem:[%s548 + $0x28] sm:$0xff]
        %v2142 = vld [vmem:[%s548 + $0x30] sm:$0xff]
        %v2143 = vld [vmem:[%s548 + $0x38] sm:$0xff]
        %v2145 = vsel %vm563, %v2134, 0
        %v2148 = vsel %vm563, %v2135, 0
        %2150 = vmatprep.subr.mxu0 %v2137
        %2151 = vmatpush1.msra.mxu0 %v2136
        %2152 = vmatprep.subr.mxu0 %v2139
        %2153 = vmatpush1.msra.mxu0 %v2138
        %2154 = vmatprep.subr.mxu0 %v2141
        %2155 = vmatpush1.msra.mxu0 %v2140
        %2156 = vmatprep.subr.mxu0 %v2143
        %2157 = vmatpush1.msra.mxu0 %v2142
        %2158 = vmatprep.subr.mxu0 0.0
        %2159 = vmatpush1.msra.mxu0 0.0
        %2160 = vmatprep.subr.mxu0 0.0
        %2161 = vmatpush1.msra.mxu0 0.0
        %2162 = vmatprep.subr.mxu0 0.0
        %2163 = vmatpush1.msra.mxu0 0.0
        %2164 = vmatprep.subr.mxu0 0.0
        %2165 = vmatpush1.msra.mxu0 0.0
        %2166 = vmatprep.subr.mxu0 0.0
        %2167 = vmatpush1.msra.mxu0 0.0
        %2168 = vmatprep.subr.mxu0 0.0
        %2169 = vmatpush1.msra.mxu0 0.0
        %2170 = vmatprep.subr.mxu0 0.0
        %2171 = vmatpush1.msra.mxu0 0.0
        %2172 = vmatprep.subr.mxu0 0.0
        %2173 = vmatpush1.msra.mxu0 0.0
        %2174 = vmatprep.subr.mxu0 0.0
        %2175 = vmatpush1.msra.mxu0 0.0
        %2176 = vmatprep.subr.mxu0 0.0
        %2177 = vmatpush1.msra.mxu0 0.0
        %2178 = vmatprep.subr.mxu0 0.0
        %2179 = vmatpush1.msra.mxu0 0.0
        %2180 = vmatprep.subr.mxu0 0.0
        %2181 = vmatpush1.msra.mxu0 0.0
        %2182 = vmatprep.subr.mxu0 0.0
        %2183 = vmatpush1.msra.mxu0 0.0
        %2184 = vmatprep.subr.mxu0 0.0
        %2185 = vmatpush1.msra.mxu0 0.0
        %2186 = vmatprep.subr.mxu0 0.0
        %2187 = vmatpush1.msra.mxu0 0.0
        %2188 = vmatprep.subr.mxu0 0.0
        %2189 = vmatpush1.msra.mxu0 0.0
        %2190 = vmatprep.subr.mxu0 0.0
        %2191 = vmatpush1.msra.mxu0 0.0
        %2192 = vmatprep.subr.mxu0 0.0
        %2193 = vmatpush1.msra.mxu0 0.0
        %2194 = vmatprep.subr.mxu0 0.0
        %2195 = vmatpush1.msra.mxu0 0.0
        %2196 = vmatprep.subr.mxu0 0.0
        %2197 = vmatpush1.msra.mxu0 0.0
        %2198 = vmatprep.subr.mxu0 0.0
        %2199 = vmatpush1.msra.mxu0 0.0
        %2200 = vmatprep.subr.mxu0 0.0
        %2201 = vmatpush1.msra.mxu0 0.0
        %2202 = vmatprep.subr.mxu0 0.0
        %2203 = vmatpush1.msra.mxu0 0.0
        %2204 = vmatprep.subr.mxu0 0.0
        %2205 = vmatpush1.msra.mxu0 0.0
        %2206 = vmatprep.subr.mxu0 0.0
        %2207 = vmatpush1.msra.mxu0 0.0
        %2208 = vmatprep.subr.mxu0 0.0
        %2209 = vmatpush1.msra.mxu0 0.0
        %2210 = vmatprep.subr.mxu0 0.0
        %2211 = vmatpush1.msra.mxu0 0.0
        %2212 = vmatprep.subr.mxu0 0.0
        %2213 = vmatpush1.msra.mxu0 0.0
        %2214 = vmatprep.mubr.f32.mxu0 0.0
        %2215 = vmatmul.mubr.f32.gmra.mrb[0].mxu0 %v2145
        %v2216 = vpop.f32.mrb[0].mxu0
        %v2217 = vadd.f32 0.0, %v2216
        %v2218 = vpop.f32.mrb[0].mxu0
        %v2219 = vadd.f32 0.0, %v2218
        %2220 = vmatprep.mubr.f32.mxu0 0.0
        %2221 = vmatmul.mubr.f32.gmra.mrb[0].mxu0 %v2148
        %v2222 = vpop.f32.mrb[0].mxu0
        %v2223 = vadd.f32 0.0, %v2222
        %v2224 = vpop.f32.mrb[0].mxu0
        %v2225 = vadd.f32 0.0, %v2224
        %2226 = vdwg.mxu0
        %v2227 = vxor.u32 %v2217, 2147483648
        %v2228 = vxor.u32 %v2223, 2147483648
        %v2229 = vmul.f32 %v2227, 1.442695
        %v2230 = vpow.pop %v2229
        %v2231 = vmul.f32 %v2228, 1.442695
        %v2232 = vpow.pop %v2231
        %v2233 = vadd.f32 %v2230, 1.0
        %v2234 = vadd.f32 %v2232, 1.0
        %v2235 = vrcp.pop %v2233
        %v2236 = vmul.f32 1.0, %v2235
        %v2237 = vrcp.pop %v2234
        %v2238 = vmul.f32 1.0, %v2237
        %v2239 = vmul.f32 %v2217, %v2236
        %v2240 = vmul.f32 %v2223, %v2238
        %2245 = vrot.lane.b32.xlu0 %v2217, 32
        %v2246 = vpop.permute.xlu0 %2245
        %2247 = vrot.lane.b32.xlu0 %v2219, 32
        %v2248 = vpop.permute.xlu0 %2247
        %2249 = vrot.lane.b32.xlu0 %v2223, 32
        %v2250 = vpop.permute.xlu0 %2249
        %2251 = vrot.lane.b32.xlu0 %v2225, 32
        %v2252 = vpop.permute.xlu0 %2251
        %v2253 = vsel %vm563, %v2246, %v2248
        %v2254 = vsel %vm563, %v2250, %v2252
        %v2257 = vmul.f32 %v2239, %v2253
        %v2258 = vmul.f32 %v2240, %v2254
        %v2259 = vld [vmem:[%s553] sm:$0xff]
        %v2260 = vld [vmem:[%s553 + $0x8] sm:$0xff]
        %v2261 = vld [vmem:[%s553 + $0x10] sm:$0xff]
        %v2262 = vld [vmem:[%s553 + $0x18] sm:$0xff]
        %v2263 = vld [vmem:[%s553 + $0x20] sm:$0xff]
        %v2264 = vld [vmem:[%s553 + $0x28] sm:$0xff]
        %v2265 = vld [vmem:[%s553 + $0x30] sm:$0xff]
        %v2266 = vld [vmem:[%s553 + $0x38] sm:$0xff]
        %v2267 = vld [vmem:[%s553 + $0x40] sm:$0xff]
        %v2268 = vld [vmem:[%s553 + $0x48] sm:$0xff]
        %v2269 = vld [vmem:[%s553 + $0x50] sm:$0xff]
        %v2270 = vld [vmem:[%s553 + $0x58] sm:$0xff]
        %vm2271 = vcmask 785408
        %v2273 = vsel %vm2271, %v2257, 0
        %v2276 = vsel %vm2271, %v2258, 0
        %2278 = vmatprep.subr.mxu0 0.0
        %2279 = vmatpush1.msra.mxu0 %v2259
        %2280 = vmatprep.subr.mxu0 0.0
        %2281 = vmatpush1.msra.mxu0 %v2260
        %2282 = vmatprep.subr.mxu0 0.0
        %2283 = vmatpush1.msra.mxu0 %v2261
        %2284 = vmatprep.subr.mxu0 0.0
        %2285 = vmatpush1.msra.mxu0 %v2262
        %2286 = vmatprep.subr.mxu0 0.0
        %2287 = vmatpush1.msra.mxu0 %v2263
        %2288 = vmatprep.subr.mxu0 0.0
        %2289 = vmatpush1.msra.mxu0 %v2264
        %2290 = vmatprep.subr.mxu0 0.0
        %2291 = vmatpush1.msra.mxu0 %v2265
        %2292 = vmatprep.subr.mxu0 0.0
        %2293 = vmatpush1.msra.mxu0 %v2266
        %2294 = vmatprep.subr.mxu0 0.0
        %2295 = vmatpush1.msra.mxu0 %v2267
        %2296 = vmatprep.subr.mxu0 0.0
        %2297 = vmatpush1.msra.mxu0 %v2268
        %2298 = vmatprep.subr.mxu0 0.0
        %2299 = vmatpush1.msra.mxu0 %v2269
        %2300 = vmatprep.subr.mxu0 0.0
        %2301 = vmatpush1.msra.mxu0 %v2270
        %2302 = vmatprep.subr.mxu0 0.0
        %2303 = vmatpush1.msra.mxu0 0.0
        %2304 = vmatprep.subr.mxu0 0.0
        %2305 = vmatpush1.msra.mxu0 0.0
        %2306 = vmatprep.subr.mxu0 0.0
        %2307 = vmatpush1.msra.mxu0 0.0
        %2308 = vmatprep.subr.mxu0 0.0
        %2309 = vmatpush1.msra.mxu0 0.0
        %2310 = vmatprep.subr.mxu0 0.0
        %2311 = vmatpush1.msra.mxu0 0.0
        %2312 = vmatprep.subr.mxu0 0.0
        %2313 = vmatpush1.msra.mxu0 0.0
        %2314 = vmatprep.subr.mxu0 0.0
        %2315 = vmatpush1.msra.mxu0 0.0
        %2316 = vmatprep.subr.mxu0 0.0
        %2317 = vmatpush1.msra.mxu0 0.0
        %2318 = vmatprep.subr.mxu0 0.0
        %2319 = vmatpush1.msra.mxu0 0.0
        %2320 = vmatprep.subr.mxu0 0.0
        %2321 = vmatpush1.msra.mxu0 0.0
        %2322 = vmatprep.subr.mxu0 0.0
        %2323 = vmatpush1.msra.mxu0 0.0
        %2324 = vmatprep.subr.mxu0 0.0
        %2325 = vmatpush1.msra.mxu0 0.0
        %2326 = vmatprep.subr.mxu0 0.0
        %2327 = vmatpush1.msra.mxu0 0.0
        %2328 = vmatprep.subr.mxu0 0.0
        %2329 = vmatpush1.msra.mxu0 0.0
        %2330 = vmatprep.subr.mxu0 0.0
        %2331 = vmatpush1.msra.mxu0 0.0
        %2332 = vmatprep.subr.mxu0 0.0
        %2333 = vmatpush1.msra.mxu0 0.0
        %2334 = vmatprep.subr.mxu0 0.0
        %2335 = vmatpush1.msra.mxu0 0.0
        %2336 = vmatprep.subr.mxu0 0.0
        %2337 = vmatpush1.msra.mxu0 0.0
        %2338 = vmatprep.subr.mxu0 0.0
        %2339 = vmatpush1.msra.mxu0 0.0
        %2340 = vmatprep.subr.mxu0 0.0
        %2341 = vmatpush1.msra.mxu0 0.0
        %2342 = vmatprep.mubr.f32.mxu0 0.0
        %2343 = vmatmul.mubr.f32.gmra.mrb[0].mxu0 %v2273
        %v2344 = vpop.f32.mrb[0].mxu0
        %v2345 = vadd.f32 0.0, %v2344
        %v2346 = vpop.f32.mrb[0].mxu0
        %2347 = vmatprep.mubr.f32.mxu0 0.0
        %2348 = vmatmul.mubr.f32.gmra.mrb[0].mxu0 %v2276
        %v2349 = vpop.f32.mrb[0].mxu0
        %v2350 = vadd.f32 0.0, %v2349
        %v2351 = vpop.f32.mrb[0].mxu0
        %2352 = vdwg.mxu0
        %v2353 = vadd.f32 %v2112, %v2345
        %v2354 = vadd.f32 %v2113, %v2350
        %2355 = vst.msk [vmem:[%s521] sm:$0xff] %vm563, %v2353
        %2356 = vst.msk [vmem:[%s521 + $0x8] sm:$0xff] %vm563, %v2354
        %v2357 = vld [vmem:[%s7] sm:$0x1]
        %v2359 = vlaneseq
        %v2360 = vshrl.u32 %v2359, 7
        %v2361 = vsub.s32 0, %v2360
        %v2362 = vrot.slane %v2357, %v2361
        %v2364 = vmul.f32 %v577, %v2362
        %v2365 = vmul.f32 %v578, %v2362
        %v2366 = vld [vmem:[%s8] sm:$0xff]
        %v2367 = vld [vmem:[%s8 + $0x8] sm:$0xff]
        %v2368 = vld [vmem:[%s8 + $0x10] sm:$0xff]
        %v2369 = vld [vmem:[%s8 + $0x18] sm:$0xff]
        %v2371 = vsel %vm563, %v2364, 0
        %v2374 = vsel %vm563, %v2365, 0
        %2376 = vmatprep.subr.mxu0 0.0
        %2377 = vmatpush1.msra.mxu0 %v2366
        %2378 = vmatprep.subr.mxu0 0.0
        %2379 = vmatpush1.msra.mxu0 %v2367
        %2380 = vmatprep.subr.mxu0 0.0
        %2381 = vmatpush1.msra.mxu0 %v2368
        %2382 = vmatprep.subr.mxu0 0.0
        %2383 = vmatpush1.msra.mxu0 %v2369
        %2384 = vmatprep.subr.mxu0 0.0
        %2385 = vmatpush1.msra.mxu0 0.0
        %2386 = vmatprep.subr.mxu0 0.0
        %2387 = vmatpush1.msra.mxu0 0.0
        %2388 = vmatprep.subr.mxu0 0.0
        %2389 = vmatpush1.msra.mxu0 0.0
        %2390 = vmatprep.subr.mxu0 0.0
        %2391 = vmatpush1.msra.mxu0 0.0
        %2392 = vmatprep.subr.mxu0 0.0
        %2393 = vmatpush1.msra.mxu0 0.0
        %2394 = vmatprep.subr.mxu0 0.0
        %2395 = vmatpush1.msra.mxu0 0.0
        %2396 = vmatprep.subr.mxu0 0.0
        %2397 = vmatpush1.msra.mxu0 0.0
        %2398 = vmatprep.subr.mxu0 0.0
        %2399 = vmatpush1.msra.mxu0 0.0
        %2400 = vmatprep.subr.mxu0 0.0
        %2401 = vmatpush1.msra.mxu0 0.0
        %2402 = vmatprep.subr.mxu0 0.0
        %2403 = vmatpush1.msra.mxu0 0.0
        %2404 = vmatprep.subr.mxu0 0.0
        %2405 = vmatpush1.msra.mxu0 0.0
        %2406 = vmatprep.subr.mxu0 0.0
        %2407 = vmatpush1.msra.mxu0 0.0
        %2408 = vmatprep.subr.mxu0 0.0
        %2409 = vmatpush1.msra.mxu0 0.0
        %2410 = vmatprep.subr.mxu0 0.0
        %2411 = vmatpush1.msra.mxu0 0.0
        %2412 = vmatprep.subr.mxu0 0.0
        %2413 = vmatpush1.msra.mxu0 0.0
        %2414 = vmatprep.subr.mxu0 0.0
        %2415 = vmatpush1.msra.mxu0 0.0
        %2416 = vmatprep.subr.mxu0 0.0
        %2417 = vmatpush1.msra.mxu0 0.0
        %2418 = vmatprep.subr.mxu0 0.0
        %2419 = vmatpush1.msra.mxu0 0.0
        %2420 = vmatprep.subr.mxu0 0.0
        %2421 = vmatpush1.msra.mxu0 0.0
        %2422 = vmatprep.subr.mxu0 0.0
        %2423 = vmatpush1.msra.mxu0 0.0
        %2424 = vmatprep.subr.mxu0 0.0
        %2425 = vmatpush1.msra.mxu0 0.0
        %2426 = vmatprep.subr.mxu0 0.0
        %2427 = vmatpush1.msra.mxu0 0.0
        %2428 = vmatprep.subr.mxu0 0.0
        %2429 = vmatpush1.msra.mxu0 0.0
        %2430 = vmatprep.subr.mxu0 0.0
        %2431 = vmatpush1.msra.mxu0 0.0
        %2432 = vmatprep.subr.mxu0 0.0
        %2433 = vmatpush1.msra.mxu0 0.0
        %2434 = vmatprep.subr.mxu0 0.0
        %2435 = vmatpush1.msra.mxu0 0.0
        %2436 = vmatprep.subr.mxu0 0.0
        %2437 = vmatpush1.msra.mxu0 0.0
        %2438 = vmatprep.subr.mxu0 0.0
        %2439 = vmatpush1.msra.mxu0 0.0
        %2440 = vmatprep.mubr.f32.mxu0 0.0
        %2441 = vmatmul.mubr.f32.gmra.mrb[0].mxu0 %v2371
        %v2442 = vpop.f32.mrb[0].mxu0
        %v2443 = vadd.f32 0.0, %v2442
        %v2444 = vpop.f32.mrb[0].mxu0
        %2445 = vmatprep.mubr.f32.mxu0 0.0
        %2446 = vmatmul.mubr.f32.gmra.mrb[0].mxu0 %v2374
        %v2447 = vpop.f32.mrb[0].mxu0
        %v2448 = vadd.f32 0.0, %v2447
        %v2449 = vpop.f32.mrb[0].mxu0
        %2450 = vdwg.mxu0
        %vm2451 = vcmask 523264
        %2452 = vst.msk [vmem:[%s528] sm:$0xff] %vm2451, %v2443
        %2453 = vst.msk [vmem:[%s528 + $0x8] sm:$0xff] %vm2451, %v2448
        %v2454 = vsel %vm2451, %v2443, -inf
        %2455 = vmax.xlane.f32.xlu0 %v2454
        %v2456 = vpop.xlane.xlu0 %2455
        %v2457 = vsel %vm2451, %v2448, -inf
        %2458 = vmax.xlane.f32.xlu0 %v2457
        %v2459 = vpop.xlane.xlu0 %2458
        %v2460 = vsub.f32 %v2443, %v2456
        %v2461 = vsub.f32 %v2448, %v2459
        %v2462 = vmul.f32 %v2460, 1.442695
        %v2463 = vpow.pop %v2462
        %v2464 = vmul.f32 %v2461, 1.442695
        %v2465 = vpow.pop %v2464
        %v2466 = vsel %vm2451, %v2463, 0.0
        %2467 = vadd.xlane.f32.xlu0 %v2466
        %v2468 = vpop.xlane.xlu0 %2467
        %v2469 = vsel %vm2451, %v2465, 0.0
        %2470 = vadd.xlane.f32.xlu0 %v2469
        %v2471 = vpop.xlane.xlu0 %2470
        %v2472 = vlog2.pop %v2468
        %v2473 = vmul.f32 %v2472, 0.6931472
        %v2474 = vlog2.pop %v2471
        %v2475 = vmul.f32 %v2474, 0.6931472
        %v2476 = vadd.f32 %v2473, %v2456
        %v2477 = vadd.f32 %v2475, %v2459
        %v2478 = vlaneseq
        %v2479 = vand.u32 %v2478, 127
        %v2480 = vld [vmem:[%s9] sm:$0xff]
        %v2481 = vld [vmem:[%s9 + $0x8] sm:$0xff]
        %2482 = vset.pattern.permute.xlu0 0
        %2483 = vperm.xlu0 %2482, %v2480
        %v2484 = vpop.permute.xlu0 %2483
        %2485 = vset.pattern.permute.xlu0 0
        %2486 = vperm.xlu0 %2485, %v2481
        %v2487 = vpop.permute.xlu0 %2486
        %vm2488 = vcmp.eq.s32.totalorder %v2479, %v2484
        %vm2489 = vcmp.eq.s32.totalorder %v2479, %v2487
        %v2490 = vsel %vm2488, %v2443, 0.0
        %v2491 = vsel %vm2489, %v2448, 0.0
        %v2492 = vsel %vm2451, %v2490, 0.0
        %2493 = vadd.xlane.f32.xlu0 %v2492
        %v2494 = vpop.xlane.xlu0 %2493
        %v2495 = vsel %vm2451, %v2491, 0.0
        %2496 = vadd.xlane.f32.xlu0 %v2495
        %v2497 = vpop.xlane.xlu0 %2496
        %v2498 = vsub.f32 %v2476, %v2494
        %v2499 = vsub.f32 %v2477, %v2497
        %v2500 = vadd.f32 %v2498, %v2499
        %v2501 = vrot.slane %v2500, 4
        %v2502 = vadd.f32 %v2500, %v2501
        %v2503 = vrot.slane %v2502, 2
        %v2504 = vadd.f32 %v2502, %v2503
        %v2505 = vrot.slane %v2504, 1
        %v2506 = vadd.f32 %v2504, %v2505
        %v2507 = vmul.f32 %v2506, 0.0625
        %vm2508 = vcmask 0
        %2509 = vst.msk [vmem:[%s556] sm:$0x1] %vm2508, %v2507
        %s2510 = sand.u32 %s277, 1
        %s2511 = scalar_lea.sflag [#allocation4], %s2510
        %s2512 = sand.u32 %s277, 1
        %s2513 = smul.addr %s2512, 16
        %s2514 = scalar_lea.vmem [#allocation8], %s2513
        %s2515 = sand.u32 %s303, 1
        %s2516 = scalar_lea.sflag [#allocation10], %s2515
        %s2517 = sand.u32 %s303, 1
        %s2518 = smul.addr %s2517, 16
        %s2519 = scalar_lea.vmem [#allocation9], %s2518
        %p2520 = scmp.lt.s32.totalorder %s34, 1
        %s2521 = scalar_select %p2520, %s34, 1
        %s2522 = scalar_lea.vmem %s12, %s2521
        // Predicated region
        $region73: #{tpu_custom_call.1} parent=59 // pred_check
          %p2523 = pneg %p287
        $region74: #{tpu_custom_call.1} parent=59 // pred_check_branch
          %2525 = sbr.rel (%p2523) target = $region76
        $region75: #{tpu_custom_call.1} parent=59 // pred_region
          %s2527 = ssub.s32 256, 256
          %2528 = vsyncadd %s2511, %s2527
          %s2529 = smul.addr %s34, 2
          %s2530 = smul.addr %s2529, 128
          %s2531 = scalar_lea.hbm %s10, %s2530
          %s2532 = sshll.u32 %s2514, 4
          %s2533 = int_to_ptr.vmem [resolvable:$true] %s2532
          %2538 = dma.vmem_to_hbm [thread:$0]  %s2533, 256, %s2531, %s2511, 128, 128, 8
        $region76: #{tpu_custom_call.1} parent=59 // pred_fallthru
          _
        // Predicated region
        $region77: #{tpu_custom_call.1} parent=59 // pred_check
          %p2539 = pneg %p313
        $region78: #{tpu_custom_call.1} parent=59 // pred_check_branch
          %2541 = sbr.rel (%p2539) target = $region80
        $region79: #{tpu_custom_call.1} parent=59 // pred_region
          %s2543 = ssub.s32 256, 256
          %2544 = vsyncadd %s2516, %s2543
          %s2545 = smul.addr %s34, 2
          %s2546 = smul.addr %s2545, 128
          %s2547 = scalar_lea.hbm %s11, %s2546
          %s2548 = sshll.u32 %s2519, 4
          %s2549 = int_to_ptr.vmem [resolvable:$true] %s2548
          %2554 = dma.vmem_to_hbm [thread:$0]  %s2549, 256, %s2547, %s2516, 128, 128, 8
        $region80: #{tpu_custom_call.1} parent=59 // pred_fallthru
          _
        // Predicated region
        $region81: #{tpu_custom_call.1} parent=59 // pred_check
          %p2555 = pneg %p339
        $region82: #{tpu_custom_call.1} parent=59 // pred_check_branch
          %2557 = sbr.rel (%p2555) target = $region84
        $region83: #{tpu_custom_call.1} parent=59 // pred_region
          _
        $region84: #{tpu_custom_call.1} parent=59 // pred_fallthru
          _
      $region60: #{tpu_custom_call.1} parent=5 // pred_fallthru
        _
      %p2558 = scmp.le.s32.totalorder 2, %s29
      // Predicated region
      $region85: #{tpu_custom_call.1} parent=5 // pred_check
        %p2559 = pneg %p2558
      $region86: #{tpu_custom_call.1} parent=5 // pred_check_branch
        %2561 = sbr.rel (%p2559) target = $region88
      $region87: #{tpu_custom_call.1} parent=5 // pred_region
        %s2562 = ssub.s32 %s29, 2
        // Predicated region
        $region89: #{tpu_custom_call.1} parent=87 // pred_check
          %p2563 = pneg %p293
        $region90: #{tpu_custom_call.1} parent=87 // pred_check_branch
          %2565 = sbr.rel (%p2563) target = $region92
        $region91: #{tpu_custom_call.1} parent=87 // pred_region
          %s2566 = sand.u32 %s278, 1
          %s2567 = scalar_lea.sflag [#allocation4], %s2566
          %s2568 = sand.u32 %s278, 1
          %s2569 = smul.addr %s2568, 16
          %s2570 = scalar_lea.vmem [#allocation8], %s2569
          %2571 = dma.done %s2567, 256
        $region92: #{tpu_custom_call.1} parent=87 // pred_fallthru
          _
        // Predicated region
        $region93: #{tpu_custom_call.1} parent=87 // pred_check
          %p2572 = pneg %p319
        $region94: #{tpu_custom_call.1} parent=87 // pred_check_branch
          %2574 = sbr.rel (%p2572) target = $region96
        $region95: #{tpu_custom_call.1} parent=87 // pred_region
          %s2575 = sand.u32 %s304, 1
          %s2576 = scalar_lea.sflag [#allocation10], %s2575
          %s2577 = sand.u32 %s304, 1
          %s2578 = smul.addr %s2577, 16
          %s2579 = scalar_lea.vmem [#allocation9], %s2578
          %2580 = dma.done %s2576, 256
        $region96: #{tpu_custom_call.1} parent=87 // pred_fallthru
          _
        // Predicated region
        $region97: #{tpu_custom_call.1} parent=87 // pred_check
          %p2581 = pneg %p345
        $region98: #{tpu_custom_call.1} parent=87 // pred_check_branch
          %2583 = sbr.rel (%p2581) target = $region100
        $region99: #{tpu_custom_call.1} parent=87 // pred_region
          %p2584 = scmp.lt.s32.totalorder %s35, 1
          %s2585 = scalar_select %p2584, %s35, 1
          %s2586 = scalar_lea.vmem %s12, %s2585
        $region100: #{tpu_custom_call.1} parent=87 // pred_fallthru
          _
      $region88: #{tpu_custom_call.1} parent=5 // pred_fallthru
        _
    $region6: #{tpu_custom_call.1} parent=1 // loop_footer
      %s33 = sadd.s32 1, %s29
    $region7: #{tpu_custom_call.1} parent=1 // loop_footer_branch
      %28 = sbr.rel target = $region3
    $region8: #{tpu_custom_call.1} parent=1 // loop_exit
      _
    %2587 = vsyncpa [#allocation3], 1
    %s2588 = scalar_lea.sflag [#allocation3], 1
    %2589 = vsyncpa %s2588, 1
    %2590 = vsyncpa [#allocation6], 1
    %s2591 = scalar_lea.sflag [#allocation6], 1
    %2592 = vsyncpa %s2591, 1
    %2593 = vsyncpa [#allocation4], 1
    %s2594 = scalar_lea.sflag [#allocation4], 1
    %2595 = vsyncpa %s2594, 1
    %2596 = vsyncpa [#allocation10], 1
    %s2597 = scalar_lea.sflag [#allocation10], 1
    %2598 = vsyncpa %s2597, 1

</llo_original>
